<compile_context>
chip_gen: v7x
topology: tpu7x:2x2x1
jax: 0.10.0
libtpu: 0.0.40
codegen_flags: <defaults>
</compile_context>

<pallas_src>
import functools

import jax
import jax.numpy as jnp
from jax import lax
from jax.experimental import pallas as pl
from jax.experimental.pallas import tpu as pltpu

EPS = 1e-5  # nn.InstanceNorm2d default eps


def _fill_reflect_pad1(xp_ref, src, H, W):
    """Write reflection-pad-1 of src (H, W, C) into xp_ref (H+2, W+2, C).

    Static-slice ref stores only (no value-level concatenates): one full-tile
    interior store plus four thin border stores.  Columns are filled last so
    the corners come out of the already-padded rows.
    """
    xp_ref[1:H + 1, 1:W + 1, :] = src                        # interior
    xp_ref[0:1, 1:W + 1, :] = src[1:2]                       # top    (reflect row 1)
    xp_ref[H + 1:H + 2, 1:W + 1, :] = src[H - 2:H - 1]       # bottom (reflect row H-2)
    xp_ref[:, 0:1, :] = xp_ref[:, 2:3, :]                    # left  col (+corners)
    xp_ref[:, W + 1:W + 2, :] = xp_ref[:, W - 1:W, :]        # right col (+corners)


def _conv3x3_instance_norm(xp_ref, w_ref, H, W, C, use_im2col):
    """3x3 valid conv over the padded image in xp_ref, then InstanceNorm2d.

    w_ref: (9*C, C) flattened HWIO weights, rows ordered (dy, dx, cin).
    Returns (H*W, C) float32, normalized (affine=False, bias-free).
    """
    if use_im2col:
        # Small-C path: collapse the 9 taps into ONE MXU matmul with K = 9C so
        # the contraction dim is not 9x underfilled (critical on v5e's
        # 4x128^2 MXU when C < 128).
        taps = [xp_ref[dy:dy + H, dx:dx + W, :].reshape(H * W, C)
                for dy in range(3) for dx in range(3)]
        patches = jnp.concatenate(taps, axis=-1)                       # (H*W, 9C)
        y = jnp.dot(patches, w_ref[...],
                    preferred_element_type=jnp.float32)                # (H*W, C) f32
    else:
        # Large-C path: 9 accumulating matmuls straight off the scratch ref
        # (no im2col buffer, no concatenates); K = C already fills the MXU.
        y = jnp.zeros((H * W, C), jnp.float32)
        for t in range(9):
            dy, dx = t // 3, t % 3
            tap = xp_ref[dy:dy + H, dx:dx + W, :].reshape(H * W, C)
            y = y + jnp.dot(tap, w_ref[t * C:(t + 1) * C, :],
                            preferred_element_type=jnp.float32)

    # InstanceNorm2d(affine=False) statistics.  The sums ride the MXU as M=1
    # matmuls (frees XLU/VPU slots); accumulation stays f32, so the one-pass
    # E[y^2] - E[y]^2 form is numerically safe even with bf16 MXU inputs.
    inv_n = 1.0 / (H * W)
    ones_row = jnp.ones((1, H * W), jnp.float32)
    s = jnp.dot(ones_row, y, preferred_element_type=jnp.float32)       # (1, C)
    s2 = jnp.dot(ones_row, y * y, preferred_element_type=jnp.float32)  # (1, C)
    mean = s * inv_n
    var = jnp.maximum(s2 * inv_n - mean * mean, 0.0)
    return (y - mean) * lax.rsqrt(var + EPS)


def _make_resnet_block_kernel(H, W, C, use_im2col, mxu_dtype):
    def kernel(x_ref, w1_ref, w2_ref, o_ref, xp_ref):
        # x_ref / o_ref: (1, H, W, C);  w*_ref: (9C, C) in mxu_dtype;
        # xp_ref: (H+2, W+2, C) VMEM scratch in mxu_dtype, reused by both convs.
        x = x_ref[0]                                                   # (H, W, C)

        # conv1: reflect-pad -> 3x3 conv -> instance norm -> ReLU
        _fill_reflect_pad1(xp_ref, x.astype(mxu_dtype), H, W)
        h = _conv3x3_instance_norm(xp_ref, w1_ref, H, W, C, use_im2col)
        h = jnp.maximum(h, 0.0)

        # conv2: reflect-pad (scratch reused) -> 3x3 conv -> instance norm
        _fill_reflect_pad1(xp_ref, h.reshape(H, W, C).astype(mxu_dtype), H, W)
        y = _conv3x3_instance_norm(xp_ref, w2_ref, H, W, C, use_im2col)

        # residual add in f32
        o_ref[0] = (x.astype(jnp.float32) + y.reshape(H, W, C)).astype(o_ref.dtype)

    return kernel


def _vmem_working_set_bytes(H, W, C, in_itemsize, mxu_itemsize, use_im2col):
    """Rough per-grid-step VMEM footprint: I/O blocks + weights + scratch + temps."""
    hw = H * W
    io = 2 * 2 * hw * C * in_itemsize                 # double-buffered in + out blocks
    wts = 2 * 2 * 9 * C * C * mxu_itemsize            # two weight tensors, double-buffered
    xp = (H + 2) * (W + 2) * C * mxu_itemsize         # padded-image scratch
    interm = 4 * hw * C * 4                           # y / y*y / h / residual temps (f32)
    patches = 9 * hw * C * mxu_itemsize if use_im2col else 0
    return io + wts + xp + interm + patches


def resnet_block_forward_nhwc(x_nhwc, w1, b1, w2, b2, *, mxu_dtype=jnp.bfloat16):
    """Fused ResnetBlock forward on an NHWC tensor (C on lanes).

    w1/w2 in HWIO layout (3, 3, Cin, Cout).  b1/b2 are accepted for API parity
    but unused: InstanceNorm2d(affine=False) cancels a per-channel conv bias
    exactly, so the add is dead work.  (Only valid for this module config —
    an affine/BatchNorm variant would need the bias back.)
    """
    del b1, b2
    B, H, W, C = x_nhwc.shape
    mxu_dtype = jnp.dtype(mxu_dtype)
    # MXU operands in bf16 (f32 accumulation): halves weight DMA + scratch,
    # ~2x MXU rate on v6e/v7x.
    w1f = w1.reshape(9 * C, C).astype(mxu_dtype)       # rows ordered (dy, dx, cin)
    w2f = w2.reshape(9 * C, C).astype(mxu_dtype)

    try:
        vmem_cap = int(pltpu.get_tpu_info().vmem_capacity_bytes)
    except Exception:  # conservative fallback if the query is unavailable
        vmem_cap = 128 << 20

    in_isz = jnp.dtype(x_nhwc.dtype).itemsize
    mxu_isz = mxu_dtype.itemsize
    # Chip-aware im2col decision: only when C is small enough that a K=C
    # per-tap matmul would underfill the MXU AND the FULL working set (not
    # just the patches buffer) leaves comfortable VMEM headroom.
    use_im2col = (C <= 128) and (
        _vmem_working_set_bytes(H, W, C, in_isz, mxu_isz, True) <= vmem_cap // 4)
    est = _vmem_working_set_bytes(H, W, C, in_isz, mxu_isz, use_im2col)
    vmem_limit = int(min(max(2 * est, 32 << 20), int(vmem_cap * 0.75)))

    kernel = _make_resnet_block_kernel(H, W, C, use_im2col, mxu_dtype)
    return pl.pallas_call(
        kernel,
        out_shape=jax.ShapeDtypeStruct((B, H, W, C), x_nhwc.dtype),
        grid=(B,),
        in_specs=[
            pl.BlockSpec((1, H, W, C), lambda b: (b, 0, 0, 0)),
            pl.BlockSpec((9 * C, C), lambda b: (0, 0)),   # weights stay resident
            pl.BlockSpec((9 * C, C), lambda b: (0, 0)),
        ],
        out_specs=pl.BlockSpec((1, H, W, C), lambda b: (b, 0, 0, 0)),
        scratch_shapes=[pltpu.VMEM((H + 2, W + 2, C), mxu_dtype)],
        compiler_params=pltpu.CompilerParams(
            dimension_semantics=("parallel",),            # shards B over v7x's 2 TCs
            vmem_limit_bytes=vmem_limit),
    )(x_nhwc, w1f, w2f)


def resnet_block_forward(x_nchw, w1, b1, w2, b2, *, mxu_dtype=jnp.bfloat16):
    """NCHW wrapper for parity with the PyTorch module.

    When chaining the 6-9 ResnetBlocks of a CycleGAN generator, call
    `resnet_block_forward_nhwc` directly and transpose once at the generator
    boundary — each per-block transpose here is a full-tensor HBM round trip.
    """
    x = jnp.transpose(x_nchw, (0, 2, 3, 1))               # NCHW -> NHWC (C on lanes)
    out = resnet_block_forward_nhwc(x, w1, b1, w2, b2, mxu_dtype=mxu_dtype)
    return jnp.transpose(out, (0, 3, 1, 2))                # NHWC -> NCHW


def resnet_block_reference(x_nchw, w1, b1, w2, b2):
    """Pure-JAX f32 reference (matches the PyTorch module, bias included)."""
    x = jnp.transpose(x_nchw, (0, 2, 3, 1))

    def conv(inp, w, b):
        inp_p = jnp.pad(inp, ((0, 0), (1, 1), (1, 1), (0, 0)), mode="reflect")
        y = lax.conv_general_dilated(
            inp_p, w, window_strides=(1, 1), padding="VALID",
            dimension_numbers=("NHWC", "HWIO", "NHWC"))
        return y + b.reshape(1, 1, 1, -1)

    def inorm(y):
        m = jnp.mean(y, axis=(1, 2), keepdims=True)
        v = jnp.mean((y - m) ** 2, axis=(1, 2), keepdims=True)
        return (y - m) / jnp.sqrt(v + EPS)

    h = jax.nn.relu(inorm(conv(x, w1, b1)))
    out = x + inorm(conv(h, w2, b2))
    return jnp.transpose(out, (0, 3, 1, 2))


@jax.jit
def _fwd_exact(x, w1, b1, w2, b2):
    # f32 MXU operands: bit-level parity check of the fused structure.
    return resnet_block_forward(x, w1, b1, w2, b2, mxu_dtype=jnp.float32)


@jax.jit
def _fwd_fast(x, w1, b1, w2, b2):
    # Default fast path: bf16 MXU operands, f32 accumulation.
    return resnet_block_forward(x, w1, b1, w2, b2)


if __name__ == "__main__":
    B, C, H, W = 2, 4, 16, 16
    key = jax.random.PRNGKey(0)
    kx, k1, k2, k3, k4 = jax.random.split(key, 5)

    x = jax.random.normal(kx, (B, C, H, W), dtype=jnp.float32)
    # Conv weights in HWIO layout (3, 3, Cin, Cout), deterministic init.
    w1 = jax.random.normal(k1, (3, 3, C, C), dtype=jnp.float32) * 0.1
    b1 = jax.random.normal(k2, (C,), dtype=jnp.float32) * 0.1
    w2 = jax.random.normal(k3, (3, 3, C, C), dtype=jnp.float32) * 0.1
    b2 = jax.random.normal(k4, (C,), dtype=jnp.float32) * 0.1

    ref = jax.block_until_ready(resnet_block_reference(x, w1, b1, w2, b2))

    # 1) Exactness of the fused structure (f32 MXU operands, tight tolerance).
    out_exact = jax.block_until_ready(_fwd_exact(x, w1, b1, w2, b2))
    assert out_exact.shape == (B, C, H, W), out_exact.shape
    assert jnp.allclose(out_exact, ref, rtol=1e-4, atol=1e-4), \
        float(jnp.max(jnp.abs(out_exact - ref)))

    # 2) Default fast path (bf16 MXU operands, f32 accumulation) — looser
    #    tolerance commensurate with bf16 input rounding.
    out_fast = jax.block_until_ready(_fwd_fast(x, w1, b1, w2, b2))
    assert out_fast.shape == (B, C, H, W), out_fast.shape
    assert jnp.allclose(out_fast, ref, rtol=1e-1, atol=1e-1), \
        float(jnp.max(jnp.abs(out_fast - ref)))

    print("KERNEL_OK")
</pallas_src>

<mosaic_0001>
module attributes {stable_mosaic.version = 11 : i64} {
  func.func @kernel(%arg0: i32, %arg1: memref<1x16x16x4xf32, #tpu.memory_space<vmem>>, %arg2: memref<36x4xf32, #tpu.memory_space<vmem>>, %arg3: memref<36x4xf32, #tpu.memory_space<vmem>>, %arg4: memref<1x16x16x4xf32, #tpu.memory_space<vmem>>, %arg5: memref<18x18x4xf32, #tpu.memory_space<vmem>>) attributes {dimension_semantics = [#tpu.dimension_semantics<parallel>], iteration_bounds = array<i64: 2>, scalar_prefetch = 0 : i64, scratch_operands = 1 : i64, tpu.core_type = #tpu.core_type<tc>, window_params = [{transform_indices = @transform_0, window_bounds = array<i64: 1, 16, 16, 4>}, {pipeline_mode = #tpu.pipeline_mode<synchronous>, transform_indices = @transform_1, window_bounds = array<i64: 36, 4>}, {pipeline_mode = #tpu.pipeline_mode<synchronous>, transform_indices = @transform_2, window_bounds = array<i64: 36, 4>}, {transform_indices = @transform_3, window_bounds = array<i64: 1, 16, 16, 4>}]} {
    %c0 = arith.constant 0 : index
    %c0_0 = arith.constant 0 : index
    %c0_1 = arith.constant 0 : index
    %c0_2 = arith.constant 0 : index
    %0 = vector.load %arg1[%c0, %c0_0, %c0_1, %c0_2] : memref<1x16x16x4xf32, #tpu.memory_space<vmem>>, vector<1x16x16x4xf32>
    %1 = vector.shape_cast %0 : vector<1x16x16x4xf32> to vector<16x16x4xf32>
    %c1 = arith.constant 1 : index
    %c1_3 = arith.constant 1 : index
    %c0_4 = arith.constant 0 : index
    %2 = vector.load %arg5[%c1, %c1_3, %c0_4] : memref<18x18x4xf32, #tpu.memory_space<vmem>>, vector<16x16x4xf32>
    tpu.vector_store %arg5[%c1, %c1_3, %c0_4], %1 {strides = array<i32>} : memref<18x18x4xf32, #tpu.memory_space<vmem>>, vector<16x16x4xf32>,
    %3 = vector.extract_strided_slice %1 {offsets = [1, 0, 0], sizes = [1, 16, 4], strides = [1, 1, 1]} : vector<16x16x4xf32> to vector<1x16x4xf32>
    %c0_5 = arith.constant 0 : index
    %c1_6 = arith.constant 1 : index
    %c0_7 = arith.constant 0 : index
    %4 = vector.load %arg5[%c0_5, %c1_6, %c0_7] : memref<18x18x4xf32, #tpu.memory_space<vmem>>, vector<1x16x4xf32>
    tpu.vector_store %arg5[%c0_5, %c1_6, %c0_7], %3 {strides = array<i32>} : memref<18x18x4xf32, #tpu.memory_space<vmem>>, vector<1x16x4xf32>,
    %5 = vector.extract_strided_slice %1 {offsets = [14, 0, 0], sizes = [1, 16, 4], strides = [1, 1, 1]} : vector<16x16x4xf32> to vector<1x16x4xf32>
    %c17 = arith.constant 17 : index
    %c1_8 = arith.constant 1 : index
    %c0_9 = arith.constant 0 : index
    %6 = vector.load %arg5[%c17, %c1_8, %c0_9] : memref<18x18x4xf32, #tpu.memory_space<vmem>>, vector<1x16x4xf32>
    tpu.vector_store %arg5[%c17, %c1_8, %c0_9], %5 {strides = array<i32>} : memref<18x18x4xf32, #tpu.memory_space<vmem>>, vector<1x16x4xf32>,
    %c0_10 = arith.constant 0 : index
    %c2 = arith.constant 2 : index
    %c0_11 = arith.constant 0 : index
    %7 = vector.load %arg5[%c0_10, %c2, %c0_11] : memref<18x18x4xf32, #tpu.memory_space<vmem>>, vector<18x1x4xf32>
    %c0_12 = arith.constant 0 : index
    %c0_13 = arith.constant 0 : index
    %c0_14 = arith.constant 0 : index
    %8 = vector.load %arg5[%c0_12, %c0_13, %c0_14] : memref<18x18x4xf32, #tpu.memory_space<vmem>>, vector<18x1x4xf32>
    tpu.vector_store %arg5[%c0_12, %c0_13, %c0_14], %7 {strides = array<i32>} : memref<18x18x4xf32, #tpu.memory_space<vmem>>, vector<18x1x4xf32>,
    %c0_15 = arith.constant 0 : index
    %c15 = arith.constant 15 : index
    %c0_16 = arith.constant 0 : index
    %9 = vector.load %arg5[%c0_15, %c15, %c0_16] : memref<18x18x4xf32, #tpu.memory_space<vmem>>, vector<18x1x4xf32>
    %c0_17 = arith.constant 0 : index
    %c17_18 = arith.constant 17 : index
    %c0_19 = arith.constant 0 : index
    %10 = vector.load %arg5[%c0_17, %c17_18, %c0_19] : memref<18x18x4xf32, #tpu.memory_space<vmem>>, vector<18x1x4xf32>
    tpu.vector_store %arg5[%c0_17, %c17_18, %c0_19], %9 {strides = array<i32>} : memref<18x18x4xf32, #tpu.memory_space<vmem>>, vector<18x1x4xf32>,
    %c0_20 = arith.constant 0 : index
    %c0_21 = arith.constant 0 : index
    %c0_22 = arith.constant 0 : index
    %11 = vector.load %arg5[%c0_20, %c0_21, %c0_22] : memref<18x18x4xf32, #tpu.memory_space<vmem>>, vector<16x16x4xf32>
    %12 = vector.shape_cast %11 : vector<16x16x4xf32> to vector<256x4xf32>
    %c0_23 = arith.constant 0 : index
    %c1_24 = arith.constant 1 : index
    %c0_25 = arith.constant 0 : index
    %13 = vector.load %arg5[%c0_23, %c1_24, %c0_25] : memref<18x18x4xf32, #tpu.memory_space<vmem>>, vector<16x16x4xf32>
    %14 = vector.shape_cast %13 : vector<16x16x4xf32> to vector<256x4xf32>
    %c0_26 = arith.constant 0 : index
    %c2_27 = arith.constant 2 : index
    %c0_28 = arith.constant 0 : index
    %15 = vector.load %arg5[%c0_26, %c2_27, %c0_28] : memref<18x18x4xf32, #tpu.memory_space<vmem>>, vector<16x16x4xf32>
    %16 = vector.shape_cast %15 : vector<16x16x4xf32> to vector<256x4xf32>
    %c1_29 = arith.constant 1 : index
    %c0_30 = arith.constant 0 : index
    %c0_31 = arith.constant 0 : index
    %17 = vector.load %arg5[%c1_29, %c0_30, %c0_31] : memref<18x18x4xf32, #tpu.memory_space<vmem>>, vector<16x16x4xf32>
    %18 = vector.shape_cast %17 : vector<16x16x4xf32> to vector<256x4xf32>
    %c1_32 = arith.constant 1 : index
    %c1_33 = arith.constant 1 : index
    %c0_34 = arith.constant 0 : index
    %19 = vector.load %arg5[%c1_32, %c1_33, %c0_34] : memref<18x18x4xf32, #tpu.memory_space<vmem>>, vector<16x16x4xf32>
    %20 = vector.shape_cast %19 : vector<16x16x4xf32> to vector<256x4xf32>
    %c1_35 = arith.constant 1 : index
    %c2_36 = arith.constant 2 : index
    %c0_37 = arith.constant 0 : index
    %21 = vector.load %arg5[%c1_35, %c2_36, %c0_37] : memref<18x18x4xf32, #tpu.memory_space<vmem>>, vector<16x16x4xf32>
    %22 = vector.shape_cast %21 : vector<16x16x4xf32> to vector<256x4xf32>
    %c2_38 = arith.constant 2 : index
    %c0_39 = arith.constant 0 : index
    %c0_40 = arith.constant 0 : index
    %23 = vector.load %arg5[%c2_38, %c0_39, %c0_40] : memref<18x18x4xf32, #tpu.memory_space<vmem>>, vector<16x16x4xf32>
    %24 = vector.shape_cast %23 : vector<16x16x4xf32> to vector<256x4xf32>
    %c2_41 = arith.constant 2 : index
    %c1_42 = arith.constant 1 : index
    %c0_43 = arith.constant 0 : index
    %25 = vector.load %arg5[%c2_41, %c1_42, %c0_43] : memref<18x18x4xf32, #tpu.memory_space<vmem>>, vector<16x16x4xf32>
    %26 = vector.shape_cast %25 : vector<16x16x4xf32> to vector<256x4xf32>
    %c2_44 = arith.constant 2 : index
    %c2_45 = arith.constant 2 : index
    %c0_46 = arith.constant 0 : index
    %27 = vector.load %arg5[%c2_44, %c2_45, %c0_46] : memref<18x18x4xf32, #tpu.memory_space<vmem>>, vector<16x16x4xf32>
    %28 = vector.shape_cast %27 : vector<16x16x4xf32> to vector<256x4xf32>
    %29 = tpu.concatenate %12, %14, %16, %18, %20, %22, %24, %26, %28 in 1 : vector<256x4xf32>, vector<256x4xf32>, vector<256x4xf32>, vector<256x4xf32>, vector<256x4xf32>, vector<256x4xf32>, vector<256x4xf32>, vector<256x4xf32>, vector<256x4xf32> -> vector<256x36xf32>
    %c0_47 = arith.constant 0 : index
    %c0_48 = arith.constant 0 : index
    %30 = vector.load %arg2[%c0_47, %c0_48] : memref<36x4xf32, #tpu.memory_space<vmem>>, vector<36x4xf32>
    %cst = arith.constant dense<0.000000e+00> : vector<256x4xf32>
    %31 = tpu.matmul %29, %30, %cst {dimension_numbers = #tpu.dot_dimension_numbers<[1], [0], [0], [1], [0, 0, 1, 1], [], []>} : vector<256x36xf32>, vector<36x4xf32>, vector<256x4xf32> -> vector<256x4xf32>
    %cst_49 = arith.constant 1.000000e+00 : f32
    %32 = vector.broadcast %cst_49 : f32 to vector<1x256xf32>
    %cst_50 = arith.constant dense<0.000000e+00> : vector<1x4xf32>
    %33 = tpu.matmul %32, %31, %cst_50 {dimension_numbers = #tpu.dot_dimension_numbers<[1], [0], [0], [1], [0, 0, 1, 1], [], []>} : vector<1x256xf32>, vector<256x4xf32>, vector<1x4xf32> -> vector<1x4xf32>
    %34 = arith.mulf %31, %31 : vector<256x4xf32>
    %cst_51 = arith.constant dense<0.000000e+00> : vector<1x4xf32>
    %35 = tpu.matmul %32, %34, %cst_51 {dimension_numbers = #tpu.dot_dimension_numbers<[1], [0], [0], [1], [0, 0, 1, 1], [], []>} : vector<1x256xf32>, vector<256x4xf32>, vector<1x4xf32> -> vector<1x4xf32>
    %cst_52 = arith.constant 3.906250e-03 : f32
    %36 = vector.broadcast %cst_52 : f32 to vector<1x4xf32>
    %37 = arith.mulf %33, %36 : vector<1x4xf32>
    %cst_53 = arith.constant 3.906250e-03 : f32
    %38 = vector.broadcast %cst_53 : f32 to vector<1x4xf32>
    %39 = arith.mulf %35, %38 : vector<1x4xf32>
    %40 = arith.mulf %37, %37 : vector<1x4xf32>
    %41 = arith.subf %39, %40 : vector<1x4xf32>
    %cst_54 = arith.constant 0.000000e+00 : f32
    %42 = vector.broadcast %cst_54 : f32 to vector<1x4xf32>
    %43 = arith.maximumf %41, %42 : vector<1x4xf32>
    %44 = vector.broadcast %37 : vector<1x4xf32> to vector<256x4xf32>
    %45 = arith.subf %31, %44 : vector<256x4xf32>
    %cst_55 = arith.constant 9.99999974E-6 : f32
    %46 = vector.broadcast %cst_55 : f32 to vector<1x4xf32>
    %47 = arith.addf %43, %46 : vector<1x4xf32>
    %48 = math.rsqrt %47 : vector<1x4xf32>
    %49 = vector.broadcast %48 : vector<1x4xf32> to vector<256x4xf32>
    %50 = arith.mulf %45, %49 : vector<256x4xf32>
    %cst_56 = arith.constant 0.000000e+00 : f32
    %51 = vector.broadcast %cst_56 : f32 to vector<256x4xf32>
    %52 = arith.maximumf %50, %51 : vector<256x4xf32>
    %53 = vector.shape_cast %52 : vector<256x4xf32> to vector<16x16x4xf32>
    %c1_57 = arith.constant 1 : index
    %c1_58 = arith.constant 1 : index
    %c0_59 = arith.constant 0 : index
    %54 = vector.load %arg5[%c1_57, %c1_58, %c0_59] : memref<18x18x4xf32, #tpu.memory_space<vmem>>, vector<16x16x4xf32>
    tpu.vector_store %arg5[%c1_57, %c1_58, %c0_59], %53 {strides = array<i32>} : memref<18x18x4xf32, #tpu.memory_space<vmem>>, vector<16x16x4xf32>,
    %55 = vector.extract_strided_slice %53 {offsets = [1, 0, 0], sizes = [1, 16, 4], strides = [1, 1, 1]} : vector<16x16x4xf32> to vector<1x16x4xf32>
    %c0_60 = arith.constant 0 : index
    %c1_61 = arith.constant 1 : index
    %c0_62 = arith.constant 0 : index
    %56 = vector.load %arg5[%c0_60, %c1_61, %c0_62] : memref<18x18x4xf32, #tpu.memory_space<vmem>>, vector<1x16x4xf32>
    tpu.vector_store %arg5[%c0_60, %c1_61, %c0_62], %55 {strides = array<i32>} : memref<18x18x4xf32, #tpu.memory_space<vmem>>, vector<1x16x4xf32>,
    %57 = vector.extract_strided_slice %53 {offsets = [14, 0, 0], sizes = [1, 16, 4], strides = [1, 1, 1]} : vector<16x16x4xf32> to vector<1x16x4xf32>
    %c17_63 = arith.constant 17 : index
    %c1_64 = arith.constant 1 : index
    %c0_65 = arith.constant 0 : index
    %58 = vector.load %arg5[%c17_63, %c1_64, %c0_65] : memref<18x18x4xf32, #tpu.memory_space<vmem>>, vector<1x16x4xf32>
    tpu.vector_store %arg5[%c17_63, %c1_64, %c0_65], %57 {strides = array<i32>} : memref<18x18x4xf32, #tpu.memory_space<vmem>>, vector<1x16x4xf32>,
    %c0_66 = arith.constant 0 : index
    %c2_67 = arith.constant 2 : index
    %c0_68 = arith.constant 0 : index
    %59 = vector.load %arg5[%c0_66, %c2_67, %c0_68] : memref<18x18x4xf32, #tpu.memory_space<vmem>>, vector<18x1x4xf32>
    %c0_69 = arith.constant 0 : index
    %c0_70 = arith.constant 0 : index
    %c0_71 = arith.constant 0 : index
    %60 = vector.load %arg5[%c0_69, %c0_70, %c0_71] : memref<18x18x4xf32, #tpu.memory_space<vmem>>, vector<18x1x4xf32>
    tpu.vector_store %arg5[%c0_69, %c0_70, %c0_71], %59 {strides = array<i32>} : memref<18x18x4xf32, #tpu.memory_space<vmem>>, vector<18x1x4xf32>,
    %c0_72 = arith.constant 0 : index
    %c15_73 = arith.constant 15 : index
    %c0_74 = arith.constant 0 : index
    %61 = vector.load %arg5[%c0_72, %c15_73, %c0_74] : memref<18x18x4xf32, #tpu.memory_space<vmem>>, vector<18x1x4xf32>
    %c0_75 = arith.constant 0 : index
    %c17_76 = arith.constant 17 : index
    %c0_77 = arith.constant 0 : index
    %62 = vector.load %arg5[%c0_75, %c17_76, %c0_77] : memref<18x18x4xf32, #tpu.memory_space<vmem>>, vector<18x1x4xf32>
    tpu.vector_store %arg5[%c0_75, %c17_76, %c0_77], %61 {strides = array<i32>} : memref<18x18x4xf32, #tpu.memory_space<vmem>>, vector<18x1x4xf32>,
    %c0_78 = arith.constant 0 : index
    %c0_79 = arith.constant 0 : index
    %c0_80 = arith.constant 0 : index
    %63 = vector.load %arg5[%c0_78, %c0_79, %c0_80] : memref<18x18x4xf32, #tpu.memory_space<vmem>>, vector<16x16x4xf32>
    %64 = vector.shape_cast %63 : vector<16x16x4xf32> to vector<256x4xf32>
    %c0_81 = arith.constant 0 : index
    %c1_82 = arith.constant 1 : index
    %c0_83 = arith.constant 0 : index
    %65 = vector.load %arg5[%c0_81, %c1_82, %c0_83] : memref<18x18x4xf32, #tpu.memory_space<vmem>>, vector<16x16x4xf32>
    %66 = vector.shape_cast %65 : vector<16x16x4xf32> to vector<256x4xf32>
    %c0_84 = arith.constant 0 : index
    %c2_85 = arith.constant 2 : index
    %c0_86 = arith.constant 0 : index
    %67 = vector.load %arg5[%c0_84, %c2_85, %c0_86] : memref<18x18x4xf32, #tpu.memory_space<vmem>>, vector<16x16x4xf32>
    %68 = vector.shape_cast %67 : vector<16x16x4xf32> to vector<256x4xf32>
    %c1_87 = arith.constant 1 : index
    %c0_88 = arith.constant 0 : index
    %c0_89 = arith.constant 0 : index
    %69 = vector.load %arg5[%c1_87, %c0_88, %c0_89] : memref<18x18x4xf32, #tpu.memory_space<vmem>>, vector<16x16x4xf32>
    %70 = vector.shape_cast %69 : vector<16x16x4xf32> to vector<256x4xf32>
    %c1_90 = arith.constant 1 : index
    %c1_91 = arith.constant 1 : index
    %c0_92 = arith.constant 0 : index
    %71 = vector.load %arg5[%c1_90, %c1_91, %c0_92] : memref<18x18x4xf32, #tpu.memory_space<vmem>>, vector<16x16x4xf32>
    %72 = vector.shape_cast %71 : vector<16x16x4xf32> to vector<256x4xf32>
    %c1_93 = arith.constant 1 : index
    %c2_94 = arith.constant 2 : index
    %c0_95 = arith.constant 0 : index
    %73 = vector.load %arg5[%c1_93, %c2_94, %c0_95] : memref<18x18x4xf32, #tpu.memory_space<vmem>>, vector<16x16x4xf32>
    %74 = vector.shape_cast %73 : vector<16x16x4xf32> to vector<256x4xf32>
    %c2_96 = arith.constant 2 : index
    %c0_97 = arith.constant 0 : index
    %c0_98 = arith.constant 0 : index
    %75 = vector.load %arg5[%c2_96, %c0_97, %c0_98] : memref<18x18x4xf32, #tpu.memory_space<vmem>>, vector<16x16x4xf32>
    %76 = vector.shape_cast %75 : vector<16x16x4xf32> to vector<256x4xf32>
    %c2_99 = arith.constant 2 : index
    %c1_100 = arith.constant 1 : index
    %c0_101 = arith.constant 0 : index
    %77 = vector.load %arg5[%c2_99, %c1_100, %c0_101] : memref<18x18x4xf32, #tpu.memory_space<vmem>>, vector<16x16x4xf32>
    %78 = vector.shape_cast %77 : vector<16x16x4xf32> to vector<256x4xf32>
    %c2_102 = arith.constant 2 : index
    %c2_103 = arith.constant 2 : index
    %c0_104 = arith.constant 0 : index
    %79 = vector.load %arg5[%c2_102, %c2_103, %c0_104] : memref<18x18x4xf32, #tpu.memory_space<vmem>>, vector<16x16x4xf32>
    %80 = vector.shape_cast %79 : vector<16x16x4xf32> to vector<256x4xf32>
    %81 = tpu.concatenate %64, %66, %68, %70, %72, %74, %76, %78, %80 in 1 : vector<256x4xf32>, vector<256x4xf32>, vector<256x4xf32>, vector<256x4xf32>, vector<256x4xf32>, vector<256x4xf32>, vector<256x4xf32>, vector<256x4xf32>, vector<256x4xf32> -> vector<256x36xf32>
    %c0_105 = arith.constant 0 : index
    %c0_106 = arith.constant 0 : index
    %82 = vector.load %arg3[%c0_105, %c0_106] : memref<36x4xf32, #tpu.memory_space<vmem>>, vector<36x4xf32>
    %cst_107 = arith.constant dense<0.000000e+00> : vector<256x4xf32>
    %83 = tpu.matmul %81, %82, %cst_107 {dimension_numbers = #tpu.dot_dimension_numbers<[1], [0], [0], [1], [0, 0, 1, 1], [], []>} : vector<256x36xf32>, vector<36x4xf32>, vector<256x4xf32> -> vector<256x4xf32>
    %cst_108 = arith.constant 1.000000e+00 : f32
    %84 = vector.broadcast %cst_108 : f32 to vector<1x256xf32>
    %cst_109 = arith.constant dense<0.000000e+00> : vector<1x4xf32>
    %85 = tpu.matmul %84, %83, %cst_109 {dimension_numbers = #tpu.dot_dimension_numbers<[1], [0], [0], [1], [0, 0, 1, 1], [], []>} : vector<1x256xf32>, vector<256x4xf32>, vector<1x4xf32> -> vector<1x4xf32>
    %86 = arith.mulf %83, %83 : vector<256x4xf32>
    %cst_110 = arith.constant dense<0.000000e+00> : vector<1x4xf32>
    %87 = tpu.matmul %84, %86, %cst_110 {dimension_numbers = #tpu.dot_dimension_numbers<[1], [0], [0], [1], [0, 0, 1, 1], [], []>} : vector<1x256xf32>, vector<256x4xf32>, vector<1x4xf32> -> vector<1x4xf32>
    %cst_111 = arith.constant 3.906250e-03 : f32
    %88 = vector.broadcast %cst_111 : f32 to vector<1x4xf32>
    %89 = arith.mulf %85, %88 : vector<1x4xf32>
    %cst_112 = arith.constant 3.906250e-03 : f32
    %90 = vector.broadcast %cst_112 : f32 to vector<1x4xf32>
    %91 = arith.mulf %87, %90 : vector<1x4xf32>
    %92 = arith.mulf %89, %89 : vector<1x4xf32>
    %93 = arith.subf %91, %92 : vector<1x4xf32>
    %cst_113 = arith.constant 0.000000e+00 : f32
    %94 = vector.broadcast %cst_113 : f32 to vector<1x4xf32>
    %95 = arith.maximumf %93, %94 : vector<1x4xf32>
    %96 = vector.broadcast %89 : vector<1x4xf32> to vector<256x4xf32>
    %97 = arith.subf %83, %96 : vector<256x4xf32>
    %cst_114 = arith.constant 9.99999974E-6 : f32
    %98 = vector.broadcast %cst_114 : f32 to vector<1x4xf32>
    %99 = arith.addf %95, %98 : vector<1x4xf32>
    %100 = math.rsqrt %99 : vector<1x4xf32>
    %101 = vector.broadcast %100 : vector<1x4xf32> to vector<256x4xf32>
    %102 = arith.mulf %97, %101 : vector<256x4xf32>
    %103 = vector.shape_cast %102 : vector<256x4xf32> to vector<16x16x4xf32>
    %104 = arith.addf %1, %103 : vector<16x16x4xf32>
    %c0_115 = arith.constant 0 : index
    %c0_116 = arith.constant 0 : index
    %c0_117 = arith.constant 0 : index
    %c0_118 = arith.constant 0 : index
    %105 = vector.load %arg4[%c0_115, %c0_116, %c0_117, %c0_118] : memref<1x16x16x4xf32, #tpu.memory_space<vmem>>, vector<1x16x16x4xf32>
    %106 = vector.shape_cast %105 : vector<1x16x16x4xf32> to vector<16x16x4xf32>
    %107 = vector.shape_cast %104 : vector<16x16x4xf32> to vector<1x16x16x4xf32>
    tpu.vector_store %arg4[%c0_115, %c0_116, %c0_117, %c0_118], %107 {strides = array<i32>} : memref<1x16x16x4xf32, #tpu.memory_space<vmem>>, vector<1x16x16x4xf32>,
    return
  }
  func.func @transform_0(%arg0: i32) -> (i32, i32, i32, i32) {
    %c0_i32 = arith.constant 0 : i32
    %c0_i32_0 = arith.constant 0 : i32
    %c0_i32_1 = arith.constant 0 : i32
    %c0_i32_2 = arith.constant 0 : i32
    return %arg0, %c0_i32, %c0_i32_0, %c0_i32_1 : i32, i32, i32, i32
  }
  func.func @transform_1(%arg0: i32) -> (i32, i32) {
    %c0_i32 = arith.constant 0 : i32
    %c0_i32_0 = arith.constant 0 : i32
    %c0_i32_1 = arith.constant 0 : i32
    return %c0_i32, %c0_i32_0 : i32, i32
  }
  func.func @transform_2(%arg0: i32) -> (i32, i32) {
    %c0_i32 = arith.constant 0 : i32
    %c0_i32_0 = arith.constant 0 : i32
    %c0_i32_1 = arith.constant 0 : i32
    return %c0_i32, %c0_i32_0 : i32, i32
  }
  func.func @transform_3(%arg0: i32) -> (i32, i32, i32, i32) {
    %c0_i32 = arith.constant 0 : i32
    %c0_i32_0 = arith.constant 0 : i32
    %c0_i32_1 = arith.constant 0 : i32
    %c0_i32_2 = arith.constant 0 : i32
    return %arg0, %c0_i32, %c0_i32_0, %c0_i32_1 : i32, i32, i32, i32
  }
}

</mosaic_0001>

<llo_original>
// kernel: _fwd_exact.1
$region0: #{_fwd_exact.1}
  #allocation0 [shape = 'u32[]', space=smem, size = 0x4, offset = 0x4, fixed_abs, tag = 'smem constant byte address 0x4 - core index']
  #allocation1 [shape = 'u32[144,128]{1,0:T(1,128)}', space=vmem, size = 0x12000, scoped, tag = 'internal scratch']
  #allocation2 [shape = 'f32[18,18,4]{2,1,0:T(8,128)}', space=vmem, size = 0x36000, scoped, tag = 'scratch operand']
  %s0 = inlined_call_operand.vmem [shape: f32[2,16,16,4], index: 0, kind: input, shape index: {}]
  %s1 = inlined_call_operand.vmem [shape: f32[36,4], index: 1, kind: input, shape index: {}]
  %s2 = inlined_call_operand.vmem [shape: f32[36,4], index: 2, kind: input, shape index: {}]
  %s3 = inlined_call_operand.vmem [shape: f32[2,16,16,4], index: 3, kind: output, shape index: {}]
  %s4 = sld [smem:[#allocation0]]
  $region45: #{_fwd_exact.1} parent=0
    _
  %s6 = ssub.s32 1, %s4
  %s7 = scalar_select 0, %s6, %s4
  loop: start=0, step=1, limit=4
  $region2: #{_fwd_exact.1} parent=0 // loop_pre_header
    _
  $region3: #{_fwd_exact.1} parent=0 // loop_header
    %s9 = sphi 0, %s13
    %p10 = scmp.ge.s32.totalorder %s9, 4
    %s19 = sphi 0, %s21
    %s22 = sphi 0, %s19
    %s23 = sphi 0, %s22
    %s39 = sphi 0, %s23
    %s43 = sphi 0, %s43
    %s45 = sphi 0, %s43
    %s46 = sphi 0, %s45
    %s60 = sphi 0, %s46
    %s64 = sphi 0, %s64
    %s66 = sphi 0, %s64
    %s67 = sphi 0, %s66
    %s81 = sphi 0, %s67
    %s87 = sphi 0, %s89
    %s90 = sphi 0, %s87
    %s91 = sphi 0, %s90
    %s107 = sphi 0, %s91
  $region4: #{_fwd_exact.1} parent=0 // loop_header_branch
    %12 = sbr.rel (%p10) target = $region8
  $region5: #{_fwd_exact.1} parent=0 // loop_body
    %s14 = ssub.s32 %s9, 1
    %s15 = ssub.s32 %s9, 2
    %s16 = sadd.s32 %s9, 1
    %s17 = ssub.s32 %s9, %s16
    %p18 = scmp.eq.s32.totalorder %s17, 0
    %s20 = sadd.s32 %s19, 1
    %s21 = scalar_select %p18, %s19, %s20
    %p24 = pneg %p18
    %p25 = scmp.eq.s32.totalorder %s9, 1
    %p26 = por %p24, %p25
    %p27 = scmp.ne.s32.totalorder %s19, %s22
    %p28 = scmp.eq.s32.totalorder %s9, 0
    %p29 = por %p27, %p28
    %p30 = scmp.ne.s32.totalorder %s19, %s22
    %p31 = scmp.eq.s32.totalorder %s14, 1
    %p32 = por %p30, %p31
    %p33 = scmp.ne.s32.totalorder %s22, %s23
    %p34 = scmp.eq.s32.totalorder %s14, 0
    %p35 = por %p33, %p34
    %p36 = scmp.ne.s32.totalorder %s22, %s23
    %p37 = scmp.eq.s32.totalorder %s15, 1
    %p38 = por %p36, %p37
    %p40 = scmp.ne.s32.totalorder %s23, %s39
    %p41 = scmp.eq.s32.totalorder %s15, 0
    %p42 = por %p40, %p41
    %s44 = sadd.s32 %s43, 1
    %p47 = scmp.eq.s32.totalorder %s9, 1
    %p48 = scmp.ne.s32.totalorder %s43, %s45
    %p49 = scmp.eq.s32.totalorder %s9, 0
    %p50 = por %p48, %p49
    %p51 = scmp.ne.s32.totalorder %s43, %s45
    %p52 = scmp.eq.s32.totalorder %s14, 1
    %p53 = por %p51, %p52
    %p54 = scmp.ne.s32.totalorder %s45, %s46
    %p55 = scmp.eq.s32.totalorder %s14, 0
    %p56 = por %p54, %p55
    %p57 = scmp.ne.s32.totalorder %s45, %s46
    %p58 = scmp.eq.s32.totalorder %s15, 1
    %p59 = por %p57, %p58
    %p61 = scmp.ne.s32.totalorder %s46, %s60
    %p62 = scmp.eq.s32.totalorder %s15, 0
    %p63 = por %p61, %p62
    %s65 = sadd.s32 %s64, 1
    %p68 = scmp.eq.s32.totalorder %s9, 1
    %p69 = scmp.ne.s32.totalorder %s64, %s66
    %p70 = scmp.eq.s32.totalorder %s9, 0
    %p71 = por %p69, %p70
    %p72 = scmp.ne.s32.totalorder %s64, %s66
    %p73 = scmp.eq.s32.totalorder %s14, 1
    %p74 = por %p72, %p73
    %p75 = scmp.ne.s32.totalorder %s66, %s67
    %p76 = scmp.eq.s32.totalorder %s14, 0
    %p77 = por %p75, %p76
    %p78 = scmp.ne.s32.totalorder %s66, %s67
    %p79 = scmp.eq.s32.totalorder %s15, 1
    %p80 = por %p78, %p79
    %p82 = scmp.ne.s32.totalorder %s67, %s81
    %p83 = scmp.eq.s32.totalorder %s15, 0
    %p84 = por %p82, %p83
    %s85 = ssub.s32 %s9, %s16
    %p86 = scmp.eq.s32.totalorder %s85, 0
    %s88 = sadd.s32 %s87, 1
    %s89 = scalar_select %p86, %s87, %s88
    %p92 = pneg %p86
    %p93 = scmp.eq.s32.totalorder %s9, 1
    %p94 = por %p92, %p93
    %p95 = scmp.ne.s32.totalorder %s87, %s90
    %p96 = scmp.eq.s32.totalorder %s9, 0
    %p97 = por %p95, %p96
    %p98 = scmp.ne.s32.totalorder %s87, %s90
    %p99 = scmp.eq.s32.totalorder %s14, 1
    %p100 = por %p98, %p99
    %p101 = scmp.ne.s32.totalorder %s90, %s91
    %p102 = scmp.eq.s32.totalorder %s14, 0
    %p103 = por %p101, %p102
    %p104 = scmp.ne.s32.totalorder %s90, %s91
    %p105 = scmp.eq.s32.totalorder %s15, 1
    %p106 = por %p104, %p105
    %p108 = scmp.ne.s32.totalorder %s91, %s107
    %p109 = scmp.eq.s32.totalorder %s15, 0
    %p110 = por %p108, %p109
    %p111 = scmp.le.s32.totalorder 1, %s9
    %p112 = scmp.lt.s32.totalorder %s9, 3
    %p113 = pnand %p111, %p112
    %p114 = pneg %p113
    // Predicated region
    $region9: #{_fwd_exact.1} parent=5 // pred_check
      _
    $region10: #{_fwd_exact.1} parent=5 // pred_check_branch
      %116 = sbr.rel (%p113) target = $region12
    $region11: #{_fwd_exact.1} parent=5 // pred_region
      %s117 = ssub.s32 %s9, 1
      // Predicated region
      $region13: #{_fwd_exact.1} parent=11 // pred_check
        %p118 = pneg %p56
      $region14: #{_fwd_exact.1} parent=11 // pred_check_branch
        %120 = sbr.rel (%p118) target = $region16
      $region15: #{_fwd_exact.1} parent=11 // pred_region
        _
      $region16: #{_fwd_exact.1} parent=11 // pred_fallthru
        _
      // Predicated region
      $region17: #{_fwd_exact.1} parent=11 // pred_check
        %p121 = pneg %p77
      $region18: #{_fwd_exact.1} parent=11 // pred_check_branch
        %123 = sbr.rel (%p121) target = $region20
      $region19: #{_fwd_exact.1} parent=11 // pred_region
        _
      $region20: #{_fwd_exact.1} parent=11 // pred_fallthru
        _
    $region12: #{_fwd_exact.1} parent=5 // pred_fallthru
      _
    %p124 = scmp.lt.s32.totalorder %s9, 2
    // Predicated region
    $region21: #{_fwd_exact.1} parent=5 // pred_check
      %p125 = pneg %p124
    $region22: #{_fwd_exact.1} parent=5 // pred_check_branch
      %127 = sbr.rel (%p125) target = $region24
    $region23: #{_fwd_exact.1} parent=5 // pred_region
      // Predicated region
      $region25: #{_fwd_exact.1} parent=23 // pred_check
        %p128 = pneg %p29
      $region26: #{_fwd_exact.1} parent=23 // pred_check_branch
        %130 = sbr.rel (%p128) target = $region28
      $region27: #{_fwd_exact.1} parent=23 // pred_region
        %p131 = scmp.lt.s32.totalorder %s9, 1
        %s132 = scalar_select %p131, %s9, 1
        %s133 = smul.addr %s132, 32
        %s134 = smul.addr %s133, 8
        %s135 = scalar_lea.vmem %s0, %s134
      $region28: #{_fwd_exact.1} parent=23 // pred_fallthru
        _
    $region24: #{_fwd_exact.1} parent=5 // pred_fallthru
      _
    %p136 = scmp.le.s32.totalorder 1, %s9
    %p137 = scmp.lt.s32.totalorder %s9, 3
    %p138 = pnand %p136, %p137
    %p139 = pneg %p138
    // Predicated region
    $region29: #{_fwd_exact.1} parent=5 // pred_check
      _
    $region30: #{_fwd_exact.1} parent=5 // pred_check_branch
      %141 = sbr.rel (%p138) target = $region32
    $region31: #{_fwd_exact.1} parent=5 // pred_region
      %s142 = ssub.s32 %s9, 1
      %p143 = scmp.lt.s32.totalorder %s14, 1
      %s144 = scalar_select %p143, %s14, 1
      %s145 = smul.addr %s144, 32
      %s146 = smul.addr %s145, 8
      %s147 = scalar_lea.vmem %s0, %s146
      %p148 = pneg %p35
      %p149 = pneg %p32
      %p150 = pneg %p56
      %p151 = pneg %p53
      %p152 = pneg %p77
      %p153 = pneg %p74
      %p154 = pneg %p103
      %p155 = pneg %p100
      %p156 = scmp.lt.s32.totalorder %s14, 1
      %s157 = scalar_select %p156, %s14, 1
      %s158 = smul.addr %s157, 32
      %s159 = smul.addr %s158, 8
      %s160 = scalar_lea.vmem %s3, %s159
      %p161 = scmp.lt.s32.totalorder %s14, 1
      %s162 = scalar_select %p161, %s14, 1
      %s163 = smul.addr %s162, 32
      %s164 = smul.addr %s163, 8
      %s165 = scalar_lea.vmem %s0, %s164
      %p166 = scmp.lt.s32.totalorder %s14, 1
      %s167 = scalar_select %p166, %s14, 1
      %s168 = smul.addr %s167, 32
      %s169 = smul.addr %s168, 8
      %s170 = scalar_lea.vmem %s3, %s169
      %v171 = vld [vmem:[%s165] sm:$0xff]
      %v172 = vld [vmem:[%s165 + $0x8] sm:$0xff]
      %v173 = vld [vmem:[%s165 + $0x10] sm:$0xff]
      %v174 = vld [vmem:[%s165 + $0x18] sm:$0xff]
      %v175 = vld [vmem:[%s165 + $0x20] sm:$0xff]
      %v176 = vld [vmem:[%s165 + $0x28] sm:$0xff]
      %v177 = vld [vmem:[%s165 + $0x30] sm:$0xff]
      %v178 = vld [vmem:[%s165 + $0x38] sm:$0xff]
      %v179 = vld [vmem:[%s165 + $0x40] sm:$0xff]
      %v180 = vld [vmem:[%s165 + $0x48] sm:$0xff]
      %v181 = vld [vmem:[%s165 + $0x50] sm:$0xff]
      %v182 = vld [vmem:[%s165 + $0x58] sm:$0xff]
      %v183 = vld [vmem:[%s165 + $0x60] sm:$0xff]
      %v184 = vld [vmem:[%s165 + $0x68] sm:$0xff]
      %v185 = vld [vmem:[%s165 + $0x70] sm:$0xff]
      %v186 = vld [vmem:[%s165 + $0x78] sm:$0xff]
      %v187 = vld [vmem:[%s165 + $0x80] sm:$0xff]
      %v188 = vld [vmem:[%s165 + $0x88] sm:$0xff]
      %v189 = vld [vmem:[%s165 + $0x90] sm:$0xff]
      %v190 = vld [vmem:[%s165 + $0x98] sm:$0xff]
      %v191 = vld [vmem:[%s165 + $0xa0] sm:$0xff]
      %v192 = vld [vmem:[%s165 + $0xa8] sm:$0xff]
      %v193 = vld [vmem:[%s165 + $0xb0] sm:$0xff]
      %v194 = vld [vmem:[%s165 + $0xb8] sm:$0xff]
      %v195 = vld [vmem:[%s165 + $0xc0] sm:$0xff]
      %v196 = vld [vmem:[%s165 + $0xc8] sm:$0xff]
      %v197 = vld [vmem:[%s165 + $0xd0] sm:$0xff]
      %v198 = vld [vmem:[%s165 + $0xd8] sm:$0xff]
      %v199 = vld [vmem:[%s165 + $0xe0] sm:$0xff]
      %v200 = vld [vmem:[%s165 + $0xe8] sm:$0xff]
      %v201 = vld [vmem:[%s165 + $0xf0] sm:$0xff]
      %v202 = vld [vmem:[%s165 + $0xf8] sm:$0xff]
      %s203 = scalar_lea.vmem [#allocation2], 24
      %vm204 = vcmask 31744
      %205 = vst.msk [vmem:[%s203 + $0x1] sm:$0xff] %vm204, %v171
      %206 = vst.msk [vmem:[%s203 + $0x9] sm:$0xff] %vm204, %v172
      %207 = vst.msk [vmem:[%s203 + $0x19] sm:$0xff] %vm204, %v173
      %208 = vst.msk [vmem:[%s203 + $0x21] sm:$0xff] %vm204, %v174
      %209 = vst.msk [vmem:[%s203 + $0x31] sm:$0xff] %vm204, %v175
      %210 = vst.msk [vmem:[%s203 + $0x39] sm:$0xff] %vm204, %v176
      %211 = vst.msk [vmem:[%s203 + $0x49] sm:$0xff] %vm204, %v177
      %212 = vst.msk [vmem:[%s203 + $0x51] sm:$0xff] %vm204, %v178
      %213 = vst.msk [vmem:[%s203 + $0x61] sm:$0xff] %vm204, %v179
      %214 = vst.msk [vmem:[%s203 + $0x69] sm:$0xff] %vm204, %v180
      %215 = vst.msk [vmem:[%s203 + $0x79] sm:$0xff] %vm204, %v181
      %216 = vst.msk [vmem:[%s203 + $0x81] sm:$0xff] %vm204, %v182
      %217 = vst.msk [vmem:[%s203 + $0x91] sm:$0xff] %vm204, %v183
      %218 = vst.msk [vmem:[%s203 + $0x99] sm:$0xff] %vm204, %v184
      %219 = vst.msk [vmem:[%s203 + $0xa9] sm:$0xff] %vm204, %v185
      %220 = vst.msk [vmem:[%s203 + $0xb1] sm:$0xff] %vm204, %v186
      %221 = vst.msk [vmem:[%s203 + $0xc1] sm:$0xff] %vm204, %v187
      %222 = vst.msk [vmem:[%s203 + $0xc9] sm:$0xff] %vm204, %v188
      %223 = vst.msk [vmem:[%s203 + $0xd9] sm:$0xff] %vm204, %v189
      %224 = vst.msk [vmem:[%s203 + $0xe1] sm:$0xff] %vm204, %v190
      %225 = vst.msk [vmem:[%s203 + $0xf1] sm:$0xff] %vm204, %v191
      %226 = vst.msk [vmem:[%s203 + $0xf9] sm:$0xff] %vm204, %v192
      %227 = vst.msk [vmem:[%s203 + $0x109] sm:$0xff] %vm204, %v193
      %228 = vst.msk [vmem:[%s203 + $0x111] sm:$0xff] %vm204, %v194
      %229 = vst.msk [vmem:[%s203 + $0x121] sm:$0xff] %vm204, %v195
      %230 = vst.msk [vmem:[%s203 + $0x129] sm:$0xff] %vm204, %v196
      %231 = vst.msk [vmem:[%s203 + $0x139] sm:$0xff] %vm204, %v197
      %232 = vst.msk [vmem:[%s203 + $0x141] sm:$0xff] %vm204, %v198
      %233 = vst.msk [vmem:[%s203 + $0x151] sm:$0xff] %vm204, %v199
      %234 = vst.msk [vmem:[%s203 + $0x159] sm:$0xff] %vm204, %v200
      %235 = vst.msk [vmem:[%s203 + $0x169] sm:$0xff] %vm204, %v201
      %236 = vst.msk [vmem:[%s203 + $0x171] sm:$0xff] %vm204, %v202
      %237 = vst.msk [vmem:[#allocation2 + $0x1] sm:$0xff] %vm204, %v173
      %238 = vst.msk [vmem:[#allocation2 + $0x9] sm:$0xff] %vm204, %v174
      %s239 = scalar_lea.vmem [#allocation2], 408
      %240 = vst.msk [vmem:[%s239 + $0x1] sm:$0xff] %vm204, %v199
      %241 = vst.msk [vmem:[%s239 + $0x9] sm:$0xff] %vm204, %v200
      %v242 = vld [vmem:[#allocation2 + $0x2] sm:$0x1]
      %v243 = vld [vmem:[#allocation2 + $0x1a] sm:$0x1]
      %v244 = vld [vmem:[#allocation2 + $0x32] sm:$0x1]
      %v245 = vld [vmem:[#allocation2 + $0x4a] sm:$0x1]
      %v246 = vld [vmem:[#allocation2 + $0x62] sm:$0x1]
      %v247 = vld [vmem:[#allocation2 + $0x7a] sm:$0x1]
      %v248 = vld [vmem:[#allocation2 + $0x92] sm:$0x1]
      %v249 = vld [vmem:[#allocation2 + $0xaa] sm:$0x1]
      %v250 = vld [vmem:[#allocation2 + $0xc2] sm:$0x1]
      %v251 = vld [vmem:[#allocation2 + $0xda] sm:$0x1]
      %v252 = vld [vmem:[#allocation2 + $0xf2] sm:$0x1]
      %v253 = vld [vmem:[#allocation2 + $0x10a] sm:$0x1]
      %v254 = vld [vmem:[#allocation2 + $0x122] sm:$0x1]
      %v255 = vld [vmem:[#allocation2 + $0x13a] sm:$0x1]
      %v256 = vld [vmem:[#allocation2 + $0x152] sm:$0x1]
      %v257 = vld [vmem:[#allocation2 + $0x16a] sm:$0x1]
      %v258 = vld [vmem:[#allocation2 + $0x182] sm:$0x1]
      %v259 = vld [vmem:[#allocation2 + $0x19a] sm:$0x1]
      %vm260 = vcmask 24576
      %261 = vst.msk [vmem:[#allocation2] sm:$0x1] %vm260, %v242
      %262 = vst.msk [vmem:[#allocation2 + $0x18] sm:$0x1] %vm260, %v243
      %263 = vst.msk [vmem:[#allocation2 + $0x30] sm:$0x1] %vm260, %v244
      %264 = vst.msk [vmem:[#allocation2 + $0x48] sm:$0x1] %vm260, %v245
      %265 = vst.msk [vmem:[#allocation2 + $0x60] sm:$0x1] %vm260, %v246
      %266 = vst.msk [vmem:[#allocation2 + $0x78] sm:$0x1] %vm260, %v247
      %267 = vst.msk [vmem:[#allocation2 + $0x90] sm:$0x1] %vm260, %v248
      %268 = vst.msk [vmem:[#allocation2 + $0xa8] sm:$0x1] %vm260, %v249
      %269 = vst.msk [vmem:[#allocation2 + $0xc0] sm:$0x1] %vm260, %v250
      %270 = vst.msk [vmem:[#allocation2 + $0xd8] sm:$0x1] %vm260, %v251
      %271 = vst.msk [vmem:[#allocation2 + $0xf0] sm:$0x1] %vm260, %v252
      %272 = vst.msk [vmem:[#allocation2 + $0x108] sm:$0x1] %vm260, %v253
      %273 = vst.msk [vmem:[#allocation2 + $0x120] sm:$0x1] %vm260, %v254
      %274 = vst.msk [vmem:[#allocation2 + $0x138] sm:$0x1] %vm260, %v255
      %275 = vst.msk [vmem:[#allocation2 + $0x150] sm:$0x1] %vm260, %v256
      %276 = vst.msk [vmem:[#allocation2 + $0x168] sm:$0x1] %vm260, %v257
      %277 = vst.msk [vmem:[#allocation2 + $0x180] sm:$0x1] %vm260, %v258
      %278 = vst.msk [vmem:[#allocation2 + $0x198] sm:$0x1] %vm260, %v259
      %v279 = vld [vmem:[#allocation2 + $0xf] sm:$0x1]
      %v280 = vld [vmem:[#allocation2 + $0x27] sm:$0x1]
      %v281 = vld [vmem:[#allocation2 + $0x3f] sm:$0x1]
      %v282 = vld [vmem:[#allocation2 + $0x57] sm:$0x1]
      %v283 = vld [vmem:[#allocation2 + $0x6f] sm:$0x1]
      %v284 = vld [vmem:[#allocation2 + $0x87] sm:$0x1]
      %v285 = vld [vmem:[#allocation2 + $0x9f] sm:$0x1]
      %v286 = vld [vmem:[#allocation2 + $0xb7] sm:$0x1]
      %v287 = vld [vmem:[#allocation2 + $0xcf] sm:$0x1]
      %v288 = vld [vmem:[#allocation2 + $0xe7] sm:$0x1]
      %v289 = vld [vmem:[#allocation2 + $0xff] sm:$0x1]
      %v290 = vld [vmem:[#allocation2 + $0x117] sm:$0x1]
      %v291 = vld [vmem:[#allocation2 + $0x12f] sm:$0x1]
      %v292 = vld [vmem:[#allocation2 + $0x147] sm:$0x1]
      %v293 = vld [vmem:[#allocation2 + $0x15f] sm:$0x1]
      %v294 = vld [vmem:[#allocation2 + $0x177] sm:$0x1]
      %v295 = vld [vmem:[#allocation2 + $0x18f] sm:$0x1]
      %v296 = vld [vmem:[#allocation2 + $0x1a7] sm:$0x1]
      %297 = vst.msk [vmem:[#allocation2 + $0x11] sm:$0x1] %vm260, %v279
      %298 = vst.msk [vmem:[#allocation2 + $0x29] sm:$0x1] %vm260, %v280
      %299 = vst.msk [vmem:[#allocation2 + $0x41] sm:$0x1] %vm260, %v281
      %300 = vst.msk [vmem:[#allocation2 + $0x59] sm:$0x1] %vm260, %v282
      %301 = vst.msk [vmem:[#allocation2 + $0x71] sm:$0x1] %vm260, %v283
      %302 = vst.msk [vmem:[#allocation2 + $0x89] sm:$0x1] %vm260, %v284
      %303 = vst.msk [vmem:[#allocation2 + $0xa1] sm:$0x1] %vm260, %v285
      %304 = vst.msk [vmem:[#allocation2 + $0xb9] sm:$0x1] %vm260, %v286
      %305 = vst.msk [vmem:[#allocation2 + $0xd1] sm:$0x1] %vm260, %v287
      %306 = vst.msk [vmem:[#allocation2 + $0xe9] sm:$0x1] %vm260, %v288
      %307 = vst.msk [vmem:[#allocation2 + $0x101] sm:$0x1] %vm260, %v289
      %308 = vst.msk [vmem:[#allocation2 + $0x119] sm:$0x1] %vm260, %v290
      %309 = vst.msk [vmem:[#allocation2 + $0x131] sm:$0x1] %vm260, %v291
      %310 = vst.msk [vmem:[#allocation2 + $0x149] sm:$0x1] %vm260, %v292
      %311 = vst.msk [vmem:[#allocation2 + $0x161] sm:$0x1] %vm260, %v293
      %312 = vst.msk [vmem:[#allocation2 + $0x179] sm:$0x1] %vm260, %v294
      %313 = vst.msk [vmem:[#allocation2 + $0x191] sm:$0x1] %vm260, %v295
      %314 = vst.msk [vmem:[#allocation2 + $0x1a9] sm:$0x1] %vm260, %v296
      %v315 = vld [vmem:[#allocation2] sm:$0xff]
      %v316 = vld [vmem:[#allocation2 + $0x8] sm:$0xff]
      %v317 = vld [vmem:[#allocation2 + $0x18] sm:$0xff]
      %v318 = vld [vmem:[#allocation2 + $0x20] sm:$0xff]
      %v319 = vld [vmem:[#allocation2 + $0x30] sm:$0xff]
      %v320 = vld [vmem:[#allocation2 + $0x38] sm:$0xff]
      %v321 = vld [vmem:[#allocation2 + $0x48] sm:$0xff]
      %v322 = vld [vmem:[#allocation2 + $0x50] sm:$0xff]
      %v323 = vld [vmem:[#allocation2 + $0x60] sm:$0xff]
      %v324 = vld [vmem:[#allocation2 + $0x68] sm:$0xff]
      %v325 = vld [vmem:[#allocation2 + $0x78] sm:$0xff]
      %v326 = vld [vmem:[#allocation2 + $0x80] sm:$0xff]
      %v327 = vld [vmem:[#allocation2 + $0x90] sm:$0xff]
      %v328 = vld [vmem:[#allocation2 + $0x98] sm:$0xff]
      %v329 = vld [vmem:[#allocation2 + $0xa8] sm:$0xff]
      %v330 = vld [vmem:[#allocation2 + $0xb0] sm:$0xff]
      %v331 = vld [vmem:[#allocation2 + $0xc0] sm:$0xff]
      %v332 = vld [vmem:[#allocation2 + $0xc8] sm:$0xff]
      %v333 = vld [vmem:[#allocation2 + $0xd8] sm:$0xff]
      %v334 = vld [vmem:[#allocation2 + $0xe0] sm:$0xff]
      %v335 = vld [vmem:[#allocation2 + $0xf0] sm:$0xff]
      %v336 = vld [vmem:[#allocation2 + $0xf8] sm:$0xff]
      %v337 = vld [vmem:[#allocation2 + $0x108] sm:$0xff]
      %v338 = vld [vmem:[#allocation2 + $0x110] sm:$0xff]
      %v339 = vld [vmem:[#allocation2 + $0x120] sm:$0xff]
      %v340 = vld [vmem:[#allocation2 + $0x128] sm:$0xff]
      %v341 = vld [vmem:[#allocation2 + $0x138] sm:$0xff]
      %v342 = vld [vmem:[#allocation2 + $0x140] sm:$0xff]
      %v343 = vld [vmem:[#allocation2 + $0x150] sm:$0xff]
      %v344 = vld [vmem:[#allocation2 + $0x158] sm:$0xff]
      %v345 = vld [vmem:[#allocation2 + $0x168] sm:$0xff]
      %v346 = vld [vmem:[#allocation2 + $0x170] sm:$0xff]
      %v347 = vld [vmem:[#allocation2 + $0x1] sm:$0xff]
      %v348 = vld [vmem:[#allocation2 + $0x9] sm:$0xff]
      %v349 = vld [vmem:[#allocation2 + $0x19] sm:$0xff]
      %v350 = vld [vmem:[#allocation2 + $0x21] sm:$0xff]
      %v351 = vld [vmem:[#allocation2 + $0x31] sm:$0xff]
      %v352 = vld [vmem:[#allocation2 + $0x39] sm:$0xff]
      %v353 = vld [vmem:[#allocation2 + $0x49] sm:$0xff]
      %v354 = vld [vmem:[#allocation2 + $0x51] sm:$0xff]
      %v355 = vld [vmem:[#allocation2 + $0x61] sm:$0xff]
      %v356 = vld [vmem:[#allocation2 + $0x69] sm:$0xff]
      %v357 = vld [vmem:[#allocation2 + $0x79] sm:$0xff]
      %v358 = vld [vmem:[#allocation2 + $0x81] sm:$0xff]
      %v359 = vld [vmem:[#allocation2 + $0x91] sm:$0xff]
      %v360 = vld [vmem:[#allocation2 + $0x99] sm:$0xff]
      %v361 = vld [vmem:[#allocation2 + $0xa9] sm:$0xff]
      %v362 = vld [vmem:[#allocation2 + $0xb1] sm:$0xff]
      %v363 = vld [vmem:[#allocation2 + $0xc1] sm:$0xff]
      %v364 = vld [vmem:[#allocation2 + $0xc9] sm:$0xff]
      %v365 = vld [vmem:[#allocation2 + $0xd9] sm:$0xff]
      %v366 = vld [vmem:[#allocation2 + $0xe1] sm:$0xff]
      %v367 = vld [vmem:[#allocation2 + $0xf1] sm:$0xff]
      %v368 = vld [vmem:[#allocation2 + $0xf9] sm:$0xff]
      %v369 = vld [vmem:[#allocation2 + $0x109] sm:$0xff]
      %v370 = vld [vmem:[#allocation2 + $0x111] sm:$0xff]
      %v371 = vld [vmem:[#allocation2 + $0x121] sm:$0xff]
      %v372 = vld [vmem:[#allocation2 + $0x129] sm:$0xff]
      %v373 = vld [vmem:[#allocation2 + $0x139] sm:$0xff]
      %v374 = vld [vmem:[#allocation2 + $0x141] sm:$0xff]
      %v375 = vld [vmem:[#allocation2 + $0x151] sm:$0xff]
      %v376 = vld [vmem:[#allocation2 + $0x159] sm:$0xff]
      %v377 = vld [vmem:[#allocation2 + $0x169] sm:$0xff]
      %v378 = vld [vmem:[#allocation2 + $0x171] sm:$0xff]
      %v379 = vld [vmem:[#allocation2 + $0x2] sm:$0xff]
      %v380 = vld [vmem:[#allocation2 + $0xa] sm:$0xff]
      %v381 = vld [vmem:[#allocation2 + $0x1a] sm:$0xff]
      %v382 = vld [vmem:[#allocation2 + $0x22] sm:$0xff]
      %v383 = vld [vmem:[#allocation2 + $0x32] sm:$0xff]
      %v384 = vld [vmem:[#allocation2 + $0x3a] sm:$0xff]
      %v385 = vld [vmem:[#allocation2 + $0x4a] sm:$0xff]
      %v386 = vld [vmem:[#allocation2 + $0x52] sm:$0xff]
      %v387 = vld [vmem:[#allocation2 + $0x62] sm:$0xff]
      %v388 = vld [vmem:[#allocation2 + $0x6a] sm:$0xff]
      %v389 = vld [vmem:[#allocation2 + $0x7a] sm:$0xff]
      %v390 = vld [vmem:[#allocation2 + $0x82] sm:$0xff]
      %v391 = vld [vmem:[#allocation2 + $0x92] sm:$0xff]
      %v392 = vld [vmem:[#allocation2 + $0x9a] sm:$0xff]
      %v393 = vld [vmem:[#allocation2 + $0xaa] sm:$0xff]
      %v394 = vld [vmem:[#allocation2 + $0xb2] sm:$0xff]
      %v395 = vld [vmem:[#allocation2 + $0xc2] sm:$0xff]
      %v396 = vld [vmem:[#allocation2 + $0xca] sm:$0xff]
      %v397 = vld [vmem:[#allocation2 + $0xda] sm:$0xff]
      %v398 = vld [vmem:[#allocation2 + $0xe2] sm:$0xff]
      %v399 = vld [vmem:[#allocation2 + $0xf2] sm:$0xff]
      %v400 = vld [vmem:[#allocation2 + $0xfa] sm:$0xff]
      %v401 = vld [vmem:[#allocation2 + $0x10a] sm:$0xff]
      %v402 = vld [vmem:[#allocation2 + $0x112] sm:$0xff]
      %v403 = vld [vmem:[#allocation2 + $0x122] sm:$0xff]
      %v404 = vld [vmem:[#allocation2 + $0x12a] sm:$0xff]
      %v405 = vld [vmem:[#allocation2 + $0x13a] sm:$0xff]
      %v406 = vld [vmem:[#allocation2 + $0x142] sm:$0xff]
      %v407 = vld [vmem:[#allocation2 + $0x152] sm:$0xff]
      %v408 = vld [vmem:[#allocation2 + $0x15a] sm:$0xff]
      %v409 = vld [vmem:[#allocation2 + $0x16a] sm:$0xff]
      %v410 = vld [vmem:[#allocation2 + $0x172] sm:$0xff]
      %v411 = vld [vmem:[%s203] sm:$0xff]
      %v412 = vld [vmem:[%s203 + $0x8] sm:$0xff]
      %v413 = vld [vmem:[%s203 + $0x18] sm:$0xff]
      %v414 = vld [vmem:[%s203 + $0x20] sm:$0xff]
      %v415 = vld [vmem:[%s203 + $0x30] sm:$0xff]
      %v416 = vld [vmem:[%s203 + $0x38] sm:$0xff]
      %v417 = vld [vmem:[%s203 + $0x48] sm:$0xff]
      %v418 = vld [vmem:[%s203 + $0x50] sm:$0xff]
      %v419 = vld [vmem:[%s203 + $0x60] sm:$0xff]
      %v420 = vld [vmem:[%s203 + $0x68] sm:$0xff]
      %v421 = vld [vmem:[%s203 + $0x78] sm:$0xff]
      %v422 = vld [vmem:[%s203 + $0x80] sm:$0xff]
      %v423 = vld [vmem:[%s203 + $0x90] sm:$0xff]
      %v424 = vld [vmem:[%s203 + $0x98] sm:$0xff]
      %v425 = vld [vmem:[%s203 + $0xa8] sm:$0xff]
      %v426 = vld [vmem:[%s203 + $0xb0] sm:$0xff]
      %v427 = vld [vmem:[%s203 + $0xc0] sm:$0xff]
      %v428 = vld [vmem:[%s203 + $0xc8] sm:$0xff]
      %v429 = vld [vmem:[%s203 + $0xd8] sm:$0xff]
      %v430 = vld [vmem:[%s203 + $0xe0] sm:$0xff]
      %v431 = vld [vmem:[%s203 + $0xf0] sm:$0xff]
      %v432 = vld [vmem:[%s203 + $0xf8] sm:$0xff]
      %v433 = vld [vmem:[%s203 + $0x108] sm:$0xff]
      %v434 = vld [vmem:[%s203 + $0x110] sm:$0xff]
      %v435 = vld [vmem:[%s203 + $0x120] sm:$0xff]
      %v436 = vld [vmem:[%s203 + $0x128] sm:$0xff]
      %v437 = vld [vmem:[%s203 + $0x138] sm:$0xff]
      %v438 = vld [vmem:[%s203 + $0x140] sm:$0xff]
      %v439 = vld [vmem:[%s203 + $0x150] sm:$0xff]
      %v440 = vld [vmem:[%s203 + $0x158] sm:$0xff]
      %v441 = vld [vmem:[%s203 + $0x168] sm:$0xff]
      %v442 = vld [vmem:[%s203 + $0x170] sm:$0xff]
      %v443 = vld [vmem:[%s203 + $0x1] sm:$0xff]
      %v444 = vld [vmem:[%s203 + $0x9] sm:$0xff]
      %v445 = vld [vmem:[%s203 + $0x19] sm:$0xff]
      %v446 = vld [vmem:[%s203 + $0x21] sm:$0xff]
      %v447 = vld [vmem:[%s203 + $0x31] sm:$0xff]
      %v448 = vld [vmem:[%s203 + $0x39] sm:$0xff]
      %v449 = vld [vmem:[%s203 + $0x49] sm:$0xff]
      %v450 = vld [vmem:[%s203 + $0x51] sm:$0xff]
      %v451 = vld [vmem:[%s203 + $0x61] sm:$0xff]
      %v452 = vld [vmem:[%s203 + $0x69] sm:$0xff]
      %v453 = vld [vmem:[%s203 + $0x79] sm:$0xff]
      %v454 = vld [vmem:[%s203 + $0x81] sm:$0xff]
      %v455 = vld [vmem:[%s203 + $0x91] sm:$0xff]
      %v456 = vld [vmem:[%s203 + $0x99] sm:$0xff]
      %v457 = vld [vmem:[%s203 + $0xa9] sm:$0xff]
      %v458 = vld [vmem:[%s203 + $0xb1] sm:$0xff]
      %v459 = vld [vmem:[%s203 + $0xc1] sm:$0xff]
      %v460 = vld [vmem:[%s203 + $0xc9] sm:$0xff]
      %v461 = vld [vmem:[%s203 + $0xd9] sm:$0xff]
      %v462 = vld [vmem:[%s203 + $0xe1] sm:$0xff]
      %v463 = vld [vmem:[%s203 + $0xf1] sm:$0xff]
      %v464 = vld [vmem:[%s203 + $0xf9] sm:$0xff]
      %v465 = vld [vmem:[%s203 + $0x109] sm:$0xff]
      %v466 = vld [vmem:[%s203 + $0x111] sm:$0xff]
      %v467 = vld [vmem:[%s203 + $0x121] sm:$0xff]
      %v468 = vld [vmem:[%s203 + $0x129] sm:$0xff]
      %v469 = vld [vmem:[%s203 + $0x139] sm:$0xff]
      %v470 = vld [vmem:[%s203 + $0x141] sm:$0xff]
      %v471 = vld [vmem:[%s203 + $0x151] sm:$0xff]
      %v472 = vld [vmem:[%s203 + $0x159] sm:$0xff]
      %v473 = vld [vmem:[%s203 + $0x169] sm:$0xff]
      %v474 = vld [vmem:[%s203 + $0x171] sm:$0xff]
      %v475 = vld [vmem:[%s203 + $0x2] sm:$0xff]
      %v476 = vld [vmem:[%s203 + $0xa] sm:$0xff]
      %v477 = vld [vmem:[%s203 + $0x1a] sm:$0xff]
      %v478 = vld [vmem:[%s203 + $0x22] sm:$0xff]
      %v479 = vld [vmem:[%s203 + $0x32] sm:$0xff]
      %v480 = vld [vmem:[%s203 + $0x3a] sm:$0xff]
      %v481 = vld [vmem:[%s203 + $0x4a] sm:$0xff]
      %v482 = vld [vmem:[%s203 + $0x52] sm:$0xff]
      %v483 = vld [vmem:[%s203 + $0x62] sm:$0xff]
      %v484 = vld [vmem:[%s203 + $0x6a] sm:$0xff]
      %v485 = vld [vmem:[%s203 + $0x7a] sm:$0xff]
      %v486 = vld [vmem:[%s203 + $0x82] sm:$0xff]
      %v487 = vld [vmem:[%s203 + $0x92] sm:$0xff]
      %v488 = vld [vmem:[%s203 + $0x9a] sm:$0xff]
      %v489 = vld [vmem:[%s203 + $0xaa] sm:$0xff]
      %v490 = vld [vmem:[%s203 + $0xb2] sm:$0xff]
      %v491 = vld [vmem:[%s203 + $0xc2] sm:$0xff]
      %v492 = vld [vmem:[%s203 + $0xca] sm:$0xff]
      %v493 = vld [vmem:[%s203 + $0xda] sm:$0xff]
      %v494 = vld [vmem:[%s203 + $0xe2] sm:$0xff]
      %v495 = vld [vmem:[%s203 + $0xf2] sm:$0xff]
      %v496 = vld [vmem:[%s203 + $0xfa] sm:$0xff]
      %v497 = vld [vmem:[%s203 + $0x10a] sm:$0xff]
      %v498 = vld [vmem:[%s203 + $0x112] sm:$0xff]
      %v499 = vld [vmem:[%s203 + $0x122] sm:$0xff]
      %v500 = vld [vmem:[%s203 + $0x12a] sm:$0xff]
      %v501 = vld [vmem:[%s203 + $0x13a] sm:$0xff]
      %v502 = vld [vmem:[%s203 + $0x142] sm:$0xff]
      %v503 = vld [vmem:[%s203 + $0x152] sm:$0xff]
      %v504 = vld [vmem:[%s203 + $0x15a] sm:$0xff]
      %v505 = vld [vmem:[%s203 + $0x16a] sm:$0xff]
      %v506 = vld [vmem:[%s203 + $0x172] sm:$0xff]
      %s507 = scalar_lea.vmem [#allocation2], 48
      %v508 = vld [vmem:[%s507] sm:$0xff]
      %v509 = vld [vmem:[%s507 + $0x8] sm:$0xff]
      %v510 = vld [vmem:[%s507 + $0x18] sm:$0xff]
      %v511 = vld [vmem:[%s507 + $0x20] sm:$0xff]
      %v512 = vld [vmem:[%s507 + $0x30] sm:$0xff]
      %v513 = vld [vmem:[%s507 + $0x38] sm:$0xff]
      %v514 = vld [vmem:[%s507 + $0x48] sm:$0xff]
      %v515 = vld [vmem:[%s507 + $0x50] sm:$0xff]
      %v516 = vld [vmem:[%s507 + $0x60] sm:$0xff]
      %v517 = vld [vmem:[%s507 + $0x68] sm:$0xff]
      %v518 = vld [vmem:[%s507 + $0x78] sm:$0xff]
      %v519 = vld [vmem:[%s507 + $0x80] sm:$0xff]
      %v520 = vld [vmem:[%s507 + $0x90] sm:$0xff]
      %v521 = vld [vmem:[%s507 + $0x98] sm:$0xff]
      %v522 = vld [vmem:[%s507 + $0xa8] sm:$0xff]
      %v523 = vld [vmem:[%s507 + $0xb0] sm:$0xff]
      %v524 = vld [vmem:[%s507 + $0xc0] sm:$0xff]
      %v525 = vld [vmem:[%s507 + $0xc8] sm:$0xff]
      %v526 = vld [vmem:[%s507 + $0xd8] sm:$0xff]
      %v527 = vld [vmem:[%s507 + $0xe0] sm:$0xff]
      %v528 = vld [vmem:[%s507 + $0xf0] sm:$0xff]
      %v529 = vld [vmem:[%s507 + $0xf8] sm:$0xff]
      %v530 = vld [vmem:[%s507 + $0x108] sm:$0xff]
      %v531 = vld [vmem:[%s507 + $0x110] sm:$0xff]
      %v532 = vld [vmem:[%s507 + $0x120] sm:$0xff]
      %v533 = vld [vmem:[%s507 + $0x128] sm:$0xff]
      %v534 = vld [vmem:[%s507 + $0x138] sm:$0xff]
      %v535 = vld [vmem:[%s507 + $0x140] sm:$0xff]
      %v536 = vld [vmem:[%s507 + $0x150] sm:$0xff]
      %v537 = vld [vmem:[%s507 + $0x158] sm:$0xff]
      %v538 = vld [vmem:[%s507 + $0x168] sm:$0xff]
      %v539 = vld [vmem:[%s507 + $0x170] sm:$0xff]
      %v540 = vld [vmem:[%s507 + $0x1] sm:$0xff]
      %v541 = vld [vmem:[%s507 + $0x9] sm:$0xff]
      %v542 = vld [vmem:[%s507 + $0x19] sm:$0xff]
      %v543 = vld [vmem:[%s507 + $0x21] sm:$0xff]
      %v544 = vld [vmem:[%s507 + $0x31] sm:$0xff]
      %v545 = vld [vmem:[%s507 + $0x39] sm:$0xff]
      %v546 = vld [vmem:[%s507 + $0x49] sm:$0xff]
      %v547 = vld [vmem:[%s507 + $0x51] sm:$0xff]
      %v548 = vld [vmem:[%s507 + $0x61] sm:$0xff]
      %v549 = vld [vmem:[%s507 + $0x69] sm:$0xff]
      %v550 = vld [vmem:[%s507 + $0x79] sm:$0xff]
      %v551 = vld [vmem:[%s507 + $0x81] sm:$0xff]
      %v552 = vld [vmem:[%s507 + $0x91] sm:$0xff]
      %v553 = vld [vmem:[%s507 + $0x99] sm:$0xff]
      %v554 = vld [vmem:[%s507 + $0xa9] sm:$0xff]
      %v555 = vld [vmem:[%s507 + $0xb1] sm:$0xff]
      %v556 = vld [vmem:[%s507 + $0xc1] sm:$0xff]
      %v557 = vld [vmem:[%s507 + $0xc9] sm:$0xff]
      %v558 = vld [vmem:[%s507 + $0xd9] sm:$0xff]
      %v559 = vld [vmem:[%s507 + $0xe1] sm:$0xff]
      %v560 = vld [vmem:[%s507 + $0xf1] sm:$0xff]
      %v561 = vld [vmem:[%s507 + $0xf9] sm:$0xff]
      %v562 = vld [vmem:[%s507 + $0x109] sm:$0xff]
      %v563 = vld [vmem:[%s507 + $0x111] sm:$0xff]
      %v564 = vld [vmem:[%s507 + $0x121] sm:$0xff]
      %v565 = vld [vmem:[%s507 + $0x129] sm:$0xff]
      %v566 = vld [vmem:[%s507 + $0x139] sm:$0xff]
      %v567 = vld [vmem:[%s507 + $0x141] sm:$0xff]
      %v568 = vld [vmem:[%s507 + $0x151] sm:$0xff]
      %v569 = vld [vmem:[%s507 + $0x159] sm:$0xff]
      %v570 = vld [vmem:[%s507 + $0x169] sm:$0xff]
      %v571 = vld [vmem:[%s507 + $0x171] sm:$0xff]
      %v572 = vld [vmem:[%s507 + $0x2] sm:$0xff]
      %v573 = vld [vmem:[%s507 + $0xa] sm:$0xff]
      %v574 = vld [vmem:[%s507 + $0x1a] sm:$0xff]
      %v575 = vld [vmem:[%s507 + $0x22] sm:$0xff]
      %v576 = vld [vmem:[%s507 + $0x32] sm:$0xff]
      %v577 = vld [vmem:[%s507 + $0x3a] sm:$0xff]
      %v578 = vld [vmem:[%s507 + $0x4a] sm:$0xff]
      %v579 = vld [vmem:[%s507 + $0x52] sm:$0xff]
      %v580 = vld [vmem:[%s507 + $0x62] sm:$0xff]
      %v581 = vld [vmem:[%s507 + $0x6a] sm:$0xff]
      %v582 = vld [vmem:[%s507 + $0x7a] sm:$0xff]
      %v583 = vld [vmem:[%s507 + $0x82] sm:$0xff]
      %v584 = vld [vmem:[%s507 + $0x92] sm:$0xff]
      %v585 = vld [vmem:[%s507 + $0x9a] sm:$0xff]
      %v586 = vld [vmem:[%s507 + $0xaa] sm:$0xff]
      %v587 = vld [vmem:[%s507 + $0xb2] sm:$0xff]
      %v588 = vld [vmem:[%s507 + $0xc2] sm:$0xff]
      %v589 = vld [vmem:[%s507 + $0xca] sm:$0xff]
      %v590 = vld [vmem:[%s507 + $0xda] sm:$0xff]
      %v591 = vld [vmem:[%s507 + $0xe2] sm:$0xff]
      %v592 = vld [vmem:[%s507 + $0xf2] sm:$0xff]
      %v593 = vld [vmem:[%s507 + $0xfa] sm:$0xff]
      %v594 = vld [vmem:[%s507 + $0x10a] sm:$0xff]
      %v595 = vld [vmem:[%s507 + $0x112] sm:$0xff]
      %v596 = vld [vmem:[%s507 + $0x122] sm:$0xff]
      %v597 = vld [vmem:[%s507 + $0x12a] sm:$0xff]
      %v598 = vld [vmem:[%s507 + $0x13a] sm:$0xff]
      %v599 = vld [vmem:[%s507 + $0x142] sm:$0xff]
      %v600 = vld [vmem:[%s507 + $0x152] sm:$0xff]
      %v601 = vld [vmem:[%s507 + $0x15a] sm:$0xff]
      %v602 = vld [vmem:[%s507 + $0x16a] sm:$0xff]
      %v603 = vld [vmem:[%s507 + $0x172] sm:$0xff]
      %636 = vrot.lane.b32.xlu0 %v347, 4
      %v637 = vpop.permute.xlu0 %636
      %638 = vrot.lane.b32.xlu0 %v348, 4
      %v639 = vpop.permute.xlu0 %638
      %640 = vrot.lane.b32.xlu0 %v349, 4
      %v641 = vpop.permute.xlu0 %640
      %642 = vrot.lane.b32.xlu0 %v350, 4
      %v643 = vpop.permute.xlu0 %642
      %644 = vrot.lane.b32.xlu0 %v351, 4
      %v645 = vpop.permute.xlu0 %644
      %646 = vrot.lane.b32.xlu0 %v352, 4
      %v647 = vpop.permute.xlu0 %646
      %648 = vrot.lane.b32.xlu0 %v353, 4
      %v649 = vpop.permute.xlu0 %648
      %650 = vrot.lane.b32.xlu0 %v354, 4
      %v651 = vpop.permute.xlu0 %650
      %652 = vrot.lane.b32.xlu0 %v355, 4
      %v653 = vpop.permute.xlu0 %652
      %654 = vrot.lane.b32.xlu0 %v356, 4
      %v655 = vpop.permute.xlu0 %654
      %656 = vrot.lane.b32.xlu0 %v357, 4
      %v657 = vpop.permute.xlu0 %656
      %658 = vrot.lane.b32.xlu0 %v358, 4
      %v659 = vpop.permute.xlu0 %658
      %660 = vrot.lane.b32.xlu0 %v359, 4
      %v661 = vpop.permute.xlu0 %660
      %662 = vrot.lane.b32.xlu0 %v360, 4
      %v663 = vpop.permute.xlu0 %662
      %664 = vrot.lane.b32.xlu0 %v361, 4
      %v665 = vpop.permute.xlu0 %664
      %666 = vrot.lane.b32.xlu0 %v362, 4
      %v667 = vpop.permute.xlu0 %666
      %668 = vrot.lane.b32.xlu0 %v363, 4
      %v669 = vpop.permute.xlu0 %668
      %670 = vrot.lane.b32.xlu0 %v364, 4
      %v671 = vpop.permute.xlu0 %670
      %672 = vrot.lane.b32.xlu0 %v365, 4
      %v673 = vpop.permute.xlu0 %672
      %674 = vrot.lane.b32.xlu0 %v366, 4
      %v675 = vpop.permute.xlu0 %674
      %676 = vrot.lane.b32.xlu0 %v367, 4
      %v677 = vpop.permute.xlu0 %676
      %678 = vrot.lane.b32.xlu0 %v368, 4
      %v679 = vpop.permute.xlu0 %678
      %680 = vrot.lane.b32.xlu0 %v369, 4
      %v681 = vpop.permute.xlu0 %680
      %682 = vrot.lane.b32.xlu0 %v370, 4
      %v683 = vpop.permute.xlu0 %682
      %684 = vrot.lane.b32.xlu0 %v371, 4
      %v685 = vpop.permute.xlu0 %684
      %686 = vrot.lane.b32.xlu0 %v372, 4
      %v687 = vpop.permute.xlu0 %686
      %688 = vrot.lane.b32.xlu0 %v373, 4
      %v689 = vpop.permute.xlu0 %688
      %690 = vrot.lane.b32.xlu0 %v374, 4
      %v691 = vpop.permute.xlu0 %690
      %692 = vrot.lane.b32.xlu0 %v375, 4
      %v693 = vpop.permute.xlu0 %692
      %694 = vrot.lane.b32.xlu0 %v376, 4
      %v695 = vpop.permute.xlu0 %694
      %696 = vrot.lane.b32.xlu0 %v377, 4
      %v697 = vpop.permute.xlu0 %696
      %698 = vrot.lane.b32.xlu0 %v378, 4
      %v699 = vpop.permute.xlu0 %698
      %764 = vrot.lane.b32.xlu0 %v379, 8
      %v765 = vpop.permute.xlu0 %764
      %766 = vrot.lane.b32.xlu0 %v380, 8
      %v767 = vpop.permute.xlu0 %766
      %768 = vrot.lane.b32.xlu0 %v381, 8
      %v769 = vpop.permute.xlu0 %768
      %770 = vrot.lane.b32.xlu0 %v382, 8
      %v771 = vpop.permute.xlu0 %770
      %772 = vrot.lane.b32.xlu0 %v383, 8
      %v773 = vpop.permute.xlu0 %772
      %774 = vrot.lane.b32.xlu0 %v384, 8
      %v775 = vpop.permute.xlu0 %774
      %776 = vrot.lane.b32.xlu0 %v385, 8
      %v777 = vpop.permute.xlu0 %776
      %778 = vrot.lane.b32.xlu0 %v386, 8
      %v779 = vpop.permute.xlu0 %778
      %780 = vrot.lane.b32.xlu0 %v387, 8
      %v781 = vpop.permute.xlu0 %780
      %782 = vrot.lane.b32.xlu0 %v388, 8
      %v783 = vpop.permute.xlu0 %782
      %784 = vrot.lane.b32.xlu0 %v389, 8
      %v785 = vpop.permute.xlu0 %784
      %786 = vrot.lane.b32.xlu0 %v390, 8
      %v787 = vpop.permute.xlu0 %786
      %788 = vrot.lane.b32.xlu0 %v391, 8
      %v789 = vpop.permute.xlu0 %788
      %790 = vrot.lane.b32.xlu0 %v392, 8
      %v791 = vpop.permute.xlu0 %790
      %792 = vrot.lane.b32.xlu0 %v393, 8
      %v793 = vpop.permute.xlu0 %792
      %794 = vrot.lane.b32.xlu0 %v394, 8
      %v795 = vpop.permute.xlu0 %794
      %796 = vrot.lane.b32.xlu0 %v395, 8
      %v797 = vpop.permute.xlu0 %796
      %798 = vrot.lane.b32.xlu0 %v396, 8
      %v799 = vpop.permute.xlu0 %798
      %800 = vrot.lane.b32.xlu0 %v397, 8
      %v801 = vpop.permute.xlu0 %800
      %802 = vrot.lane.b32.xlu0 %v398, 8
      %v803 = vpop.permute.xlu0 %802
      %804 = vrot.lane.b32.xlu0 %v399, 8
      %v805 = vpop.permute.xlu0 %804
      %806 = vrot.lane.b32.xlu0 %v400, 8
      %v807 = vpop.permute.xlu0 %806
      %808 = vrot.lane.b32.xlu0 %v401, 8
      %v809 = vpop.permute.xlu0 %808
      %810 = vrot.lane.b32.xlu0 %v402, 8
      %v811 = vpop.permute.xlu0 %810
      %812 = vrot.lane.b32.xlu0 %v403, 8
      %v813 = vpop.permute.xlu0 %812
      %814 = vrot.lane.b32.xlu0 %v404, 8
      %v815 = vpop.permute.xlu0 %814
      %816 = vrot.lane.b32.xlu0 %v405, 8
      %v817 = vpop.permute.xlu0 %816
      %818 = vrot.lane.b32.xlu0 %v406, 8
      %v819 = vpop.permute.xlu0 %818
      %820 = vrot.lane.b32.xlu0 %v407, 8
      %v821 = vpop.permute.xlu0 %820
      %822 = vrot.lane.b32.xlu0 %v408, 8
      %v823 = vpop.permute.xlu0 %822
      %824 = vrot.lane.b32.xlu0 %v409, 8
      %v825 = vpop.permute.xlu0 %824
      %826 = vrot.lane.b32.xlu0 %v410, 8
      %v827 = vpop.permute.xlu0 %826
      %892 = vrot.lane.b32.xlu0 %v411, 12
      %v893 = vpop.permute.xlu0 %892
      %894 = vrot.lane.b32.xlu0 %v412, 12
      %v895 = vpop.permute.xlu0 %894
      %896 = vrot.lane.b32.xlu0 %v413, 12
      %v897 = vpop.permute.xlu0 %896
      %898 = vrot.lane.b32.xlu0 %v414, 12
      %v899 = vpop.permute.xlu0 %898
      %900 = vrot.lane.b32.xlu0 %v415, 12
      %v901 = vpop.permute.xlu0 %900
      %902 = vrot.lane.b32.xlu0 %v416, 12
      %v903 = vpop.permute.xlu0 %902
      %904 = vrot.lane.b32.xlu0 %v417, 12
      %v905 = vpop.permute.xlu0 %904
      %906 = vrot.lane.b32.xlu0 %v418, 12
      %v907 = vpop.permute.xlu0 %906
      %908 = vrot.lane.b32.xlu0 %v419, 12
      %v909 = vpop.permute.xlu0 %908
      %910 = vrot.lane.b32.xlu0 %v420, 12
      %v911 = vpop.permute.xlu0 %910
      %912 = vrot.lane.b32.xlu0 %v421, 12
      %v913 = vpop.permute.xlu0 %912
      %914 = vrot.lane.b32.xlu0 %v422, 12
      %v915 = vpop.permute.xlu0 %914
      %916 = vrot.lane.b32.xlu0 %v423, 12
      %v917 = vpop.permute.xlu0 %916
      %918 = vrot.lane.b32.xlu0 %v424, 12
      %v919 = vpop.permute.xlu0 %918
      %920 = vrot.lane.b32.xlu0 %v425, 12
      %v921 = vpop.permute.xlu0 %920
      %922 = vrot.lane.b32.xlu0 %v426, 12
      %v923 = vpop.permute.xlu0 %922
      %924 = vrot.lane.b32.xlu0 %v427, 12
      %v925 = vpop.permute.xlu0 %924
      %926 = vrot.lane.b32.xlu0 %v428, 12
      %v927 = vpop.permute.xlu0 %926
      %928 = vrot.lane.b32.xlu0 %v429, 12
      %v929 = vpop.permute.xlu0 %928
      %930 = vrot.lane.b32.xlu0 %v430, 12
      %v931 = vpop.permute.xlu0 %930
      %932 = vrot.lane.b32.xlu0 %v431, 12
      %v933 = vpop.permute.xlu0 %932
      %934 = vrot.lane.b32.xlu0 %v432, 12
      %v935 = vpop.permute.xlu0 %934
      %936 = vrot.lane.b32.xlu0 %v433, 12
      %v937 = vpop.permute.xlu0 %936
      %938 = vrot.lane.b32.xlu0 %v434, 12
      %v939 = vpop.permute.xlu0 %938
      %940 = vrot.lane.b32.xlu0 %v435, 12
      %v941 = vpop.permute.xlu0 %940
      %942 = vrot.lane.b32.xlu0 %v436, 12
      %v943 = vpop.permute.xlu0 %942
      %944 = vrot.lane.b32.xlu0 %v437, 12
      %v945 = vpop.permute.xlu0 %944
      %946 = vrot.lane.b32.xlu0 %v438, 12
      %v947 = vpop.permute.xlu0 %946
      %948 = vrot.lane.b32.xlu0 %v439, 12
      %v949 = vpop.permute.xlu0 %948
      %950 = vrot.lane.b32.xlu0 %v440, 12
      %v951 = vpop.permute.xlu0 %950
      %952 = vrot.lane.b32.xlu0 %v441, 12
      %v953 = vpop.permute.xlu0 %952
      %954 = vrot.lane.b32.xlu0 %v442, 12
      %v955 = vpop.permute.xlu0 %954
      %1020 = vrot.lane.b32.xlu0 %v443, 16
      %v1021 = vpop.permute.xlu0 %1020
      %1022 = vrot.lane.b32.xlu0 %v444, 16
      %v1023 = vpop.permute.xlu0 %1022
      %1024 = vrot.lane.b32.xlu0 %v445, 16
      %v1025 = vpop.permute.xlu0 %1024
      %1026 = vrot.lane.b32.xlu0 %v446, 16
      %v1027 = vpop.permute.xlu0 %1026
      %1028 = vrot.lane.b32.xlu0 %v447, 16
      %v1029 = vpop.permute.xlu0 %1028
      %1030 = vrot.lane.b32.xlu0 %v448, 16
      %v1031 = vpop.permute.xlu0 %1030
      %1032 = vrot.lane.b32.xlu0 %v449, 16
      %v1033 = vpop.permute.xlu0 %1032
      %1034 = vrot.lane.b32.xlu0 %v450, 16
      %v1035 = vpop.permute.xlu0 %1034
      %1036 = vrot.lane.b32.xlu0 %v451, 16
      %v1037 = vpop.permute.xlu0 %1036
      %1038 = vrot.lane.b32.xlu0 %v452, 16
      %v1039 = vpop.permute.xlu0 %1038
      %1040 = vrot.lane.b32.xlu0 %v453, 16
      %v1041 = vpop.permute.xlu0 %1040
      %1042 = vrot.lane.b32.xlu0 %v454, 16
      %v1043 = vpop.permute.xlu0 %1042
      %1044 = vrot.lane.b32.xlu0 %v455, 16
      %v1045 = vpop.permute.xlu0 %1044
      %1046 = vrot.lane.b32.xlu0 %v456, 16
      %v1047 = vpop.permute.xlu0 %1046
      %1048 = vrot.lane.b32.xlu0 %v457, 16
      %v1049 = vpop.permute.xlu0 %1048
      %1050 = vrot.lane.b32.xlu0 %v458, 16
      %v1051 = vpop.permute.xlu0 %1050
      %1052 = vrot.lane.b32.xlu0 %v459, 16
      %v1053 = vpop.permute.xlu0 %1052
      %1054 = vrot.lane.b32.xlu0 %v460, 16
      %v1055 = vpop.permute.xlu0 %1054
      %1056 = vrot.lane.b32.xlu0 %v461, 16
      %v1057 = vpop.permute.xlu0 %1056
      %1058 = vrot.lane.b32.xlu0 %v462, 16
      %v1059 = vpop.permute.xlu0 %1058
      %1060 = vrot.lane.b32.xlu0 %v463, 16
      %v1061 = vpop.permute.xlu0 %1060
      %1062 = vrot.lane.b32.xlu0 %v464, 16
      %v1063 = vpop.permute.xlu0 %1062
      %1064 = vrot.lane.b32.xlu0 %v465, 16
      %v1065 = vpop.permute.xlu0 %1064
      %1066 = vrot.lane.b32.xlu0 %v466, 16
      %v1067 = vpop.permute.xlu0 %1066
      %1068 = vrot.lane.b32.xlu0 %v467, 16
      %v1069 = vpop.permute.xlu0 %1068
      %1070 = vrot.lane.b32.xlu0 %v468, 16
      %v1071 = vpop.permute.xlu0 %1070
      %1072 = vrot.lane.b32.xlu0 %v469, 16
      %v1073 = vpop.permute.xlu0 %1072
      %1074 = vrot.lane.b32.xlu0 %v470, 16
      %v1075 = vpop.permute.xlu0 %1074
      %1076 = vrot.lane.b32.xlu0 %v471, 16
      %v1077 = vpop.permute.xlu0 %1076
      %1078 = vrot.lane.b32.xlu0 %v472, 16
      %v1079 = vpop.permute.xlu0 %1078
      %1080 = vrot.lane.b32.xlu0 %v473, 16
      %v1081 = vpop.permute.xlu0 %1080
      %1082 = vrot.lane.b32.xlu0 %v474, 16
      %v1083 = vpop.permute.xlu0 %1082
      %1148 = vrot.lane.b32.xlu0 %v475, 20
      %v1149 = vpop.permute.xlu0 %1148
      %1150 = vrot.lane.b32.xlu0 %v476, 20
      %v1151 = vpop.permute.xlu0 %1150
      %1152 = vrot.lane.b32.xlu0 %v477, 20
      %v1153 = vpop.permute.xlu0 %1152
      %1154 = vrot.lane.b32.xlu0 %v478, 20
      %v1155 = vpop.permute.xlu0 %1154
      %1156 = vrot.lane.b32.xlu0 %v479, 20
      %v1157 = vpop.permute.xlu0 %1156
      %1158 = vrot.lane.b32.xlu0 %v480, 20
      %v1159 = vpop.permute.xlu0 %1158
      %1160 = vrot.lane.b32.xlu0 %v481, 20
      %v1161 = vpop.permute.xlu0 %1160
      %1162 = vrot.lane.b32.xlu0 %v482, 20
      %v1163 = vpop.permute.xlu0 %1162
      %1164 = vrot.lane.b32.xlu0 %v483, 20
      %v1165 = vpop.permute.xlu0 %1164
      %1166 = vrot.lane.b32.xlu0 %v484, 20
      %v1167 = vpop.permute.xlu0 %1166
      %1168 = vrot.lane.b32.xlu0 %v485, 20
      %v1169 = vpop.permute.xlu0 %1168
      %1170 = vrot.lane.b32.xlu0 %v486, 20
      %v1171 = vpop.permute.xlu0 %1170
      %1172 = vrot.lane.b32.xlu0 %v487, 20
      %v1173 = vpop.permute.xlu0 %1172
      %1174 = vrot.lane.b32.xlu0 %v488, 20
      %v1175 = vpop.permute.xlu0 %1174
      %1176 = vrot.lane.b32.xlu0 %v489, 20
      %v1177 = vpop.permute.xlu0 %1176
      %1178 = vrot.lane.b32.xlu0 %v490, 20
      %v1179 = vpop.permute.xlu0 %1178
      %1180 = vrot.lane.b32.xlu0 %v491, 20
      %v1181 = vpop.permute.xlu0 %1180
      %1182 = vrot.lane.b32.xlu0 %v492, 20
      %v1183 = vpop.permute.xlu0 %1182
      %1184 = vrot.lane.b32.xlu0 %v493, 20
      %v1185 = vpop.permute.xlu0 %1184
      %1186 = vrot.lane.b32.xlu0 %v494, 20
      %v1187 = vpop.permute.xlu0 %1186
      %1188 = vrot.lane.b32.xlu0 %v495, 20
      %v1189 = vpop.permute.xlu0 %1188
      %1190 = vrot.lane.b32.xlu0 %v496, 20
      %v1191 = vpop.permute.xlu0 %1190
      %1192 = vrot.lane.b32.xlu0 %v497, 20
      %v1193 = vpop.permute.xlu0 %1192
      %1194 = vrot.lane.b32.xlu0 %v498, 20
      %v1195 = vpop.permute.xlu0 %1194
      %1196 = vrot.lane.b32.xlu0 %v499, 20
      %v1197 = vpop.permute.xlu0 %1196
      %1198 = vrot.lane.b32.xlu0 %v500, 20
      %v1199 = vpop.permute.xlu0 %1198
      %1200 = vrot.lane.b32.xlu0 %v501, 20
      %v1201 = vpop.permute.xlu0 %1200
      %1202 = vrot.lane.b32.xlu0 %v502, 20
      %v1203 = vpop.permute.xlu0 %1202
      %1204 = vrot.lane.b32.xlu0 %v503, 20
      %v1205 = vpop.permute.xlu0 %1204
      %1206 = vrot.lane.b32.xlu0 %v504, 20
      %v1207 = vpop.permute.xlu0 %1206
      %1208 = vrot.lane.b32.xlu0 %v505, 20
      %v1209 = vpop.permute.xlu0 %1208
      %1210 = vrot.lane.b32.xlu0 %v506, 20
      %v1211 = vpop.permute.xlu0 %1210
      %1276 = vrot.lane.b32.xlu0 %v508, 24
      %v1277 = vpop.permute.xlu0 %1276
      %1278 = vrot.lane.b32.xlu0 %v509, 24
      %v1279 = vpop.permute.xlu0 %1278
      %1280 = vrot.lane.b32.xlu0 %v510, 24
      %v1281 = vpop.permute.xlu0 %1280
      %1282 = vrot.lane.b32.xlu0 %v511, 24
      %v1283 = vpop.permute.xlu0 %1282
      %1284 = vrot.lane.b32.xlu0 %v512, 24
      %v1285 = vpop.permute.xlu0 %1284
      %1286 = vrot.lane.b32.xlu0 %v513, 24
      %v1287 = vpop.permute.xlu0 %1286
      %1288 = vrot.lane.b32.xlu0 %v514, 24
      %v1289 = vpop.permute.xlu0 %1288
      %1290 = vrot.lane.b32.xlu0 %v515, 24
      %v1291 = vpop.permute.xlu0 %1290
      %1292 = vrot.lane.b32.xlu0 %v516, 24
      %v1293 = vpop.permute.xlu0 %1292
      %1294 = vrot.lane.b32.xlu0 %v517, 24
      %v1295 = vpop.permute.xlu0 %1294
      %1296 = vrot.lane.b32.xlu0 %v518, 24
      %v1297 = vpop.permute.xlu0 %1296
      %1298 = vrot.lane.b32.xlu0 %v519, 24
      %v1299 = vpop.permute.xlu0 %1298
      %1300 = vrot.lane.b32.xlu0 %v520, 24
      %v1301 = vpop.permute.xlu0 %1300
      %1302 = vrot.lane.b32.xlu0 %v521, 24
      %v1303 = vpop.permute.xlu0 %1302
      %1304 = vrot.lane.b32.xlu0 %v522, 24
      %v1305 = vpop.permute.xlu0 %1304
      %1306 = vrot.lane.b32.xlu0 %v523, 24
      %v1307 = vpop.permute.xlu0 %1306
      %1308 = vrot.lane.b32.xlu0 %v524, 24
      %v1309 = vpop.permute.xlu0 %1308
      %1310 = vrot.lane.b32.xlu0 %v525, 24
      %v1311 = vpop.permute.xlu0 %1310
      %1312 = vrot.lane.b32.xlu0 %v526, 24
      %v1313 = vpop.permute.xlu0 %1312
      %1314 = vrot.lane.b32.xlu0 %v527, 24
      %v1315 = vpop.permute.xlu0 %1314
      %1316 = vrot.lane.b32.xlu0 %v528, 24
      %v1317 = vpop.permute.xlu0 %1316
      %1318 = vrot.lane.b32.xlu0 %v529, 24
      %v1319 = vpop.permute.xlu0 %1318
      %1320 = vrot.lane.b32.xlu0 %v530, 24
      %v1321 = vpop.permute.xlu0 %1320
      %1322 = vrot.lane.b32.xlu0 %v531, 24
      %v1323 = vpop.permute.xlu0 %1322
      %1324 = vrot.lane.b32.xlu0 %v532, 24
      %v1325 = vpop.permute.xlu0 %1324
      %1326 = vrot.lane.b32.xlu0 %v533, 24
      %v1327 = vpop.permute.xlu0 %1326
      %1328 = vrot.lane.b32.xlu0 %v534, 24
      %v1329 = vpop.permute.xlu0 %1328
      %1330 = vrot.lane.b32.xlu0 %v535, 24
      %v1331 = vpop.permute.xlu0 %1330
      %1332 = vrot.lane.b32.xlu0 %v536, 24
      %v1333 = vpop.permute.xlu0 %1332
      %1334 = vrot.lane.b32.xlu0 %v537, 24
      %v1335 = vpop.permute.xlu0 %1334
      %1336 = vrot.lane.b32.xlu0 %v538, 24
      %v1337 = vpop.permute.xlu0 %1336
      %1338 = vrot.lane.b32.xlu0 %v539, 24
      %v1339 = vpop.permute.xlu0 %1338
      %1404 = vrot.lane.b32.xlu0 %v540, 28
      %v1405 = vpop.permute.xlu0 %1404
      %1406 = vrot.lane.b32.xlu0 %v541, 28
      %v1407 = vpop.permute.xlu0 %1406
      %1408 = vrot.lane.b32.xlu0 %v542, 28
      %v1409 = vpop.permute.xlu0 %1408
      %1410 = vrot.lane.b32.xlu0 %v543, 28
      %v1411 = vpop.permute.xlu0 %1410
      %1412 = vrot.lane.b32.xlu0 %v544, 28
      %v1413 = vpop.permute.xlu0 %1412
      %1414 = vrot.lane.b32.xlu0 %v545, 28
      %v1415 = vpop.permute.xlu0 %1414
      %1416 = vrot.lane.b32.xlu0 %v546, 28
      %v1417 = vpop.permute.xlu0 %1416
      %1418 = vrot.lane.b32.xlu0 %v547, 28
      %v1419 = vpop.permute.xlu0 %1418
      %1420 = vrot.lane.b32.xlu0 %v548, 28
      %v1421 = vpop.permute.xlu0 %1420
      %1422 = vrot.lane.b32.xlu0 %v549, 28
      %v1423 = vpop.permute.xlu0 %1422
      %1424 = vrot.lane.b32.xlu0 %v550, 28
      %v1425 = vpop.permute.xlu0 %1424
      %1426 = vrot.lane.b32.xlu0 %v551, 28
      %v1427 = vpop.permute.xlu0 %1426
      %1428 = vrot.lane.b32.xlu0 %v552, 28
      %v1429 = vpop.permute.xlu0 %1428
      %1430 = vrot.lane.b32.xlu0 %v553, 28
      %v1431 = vpop.permute.xlu0 %1430
      %1432 = vrot.lane.b32.xlu0 %v554, 28
      %v1433 = vpop.permute.xlu0 %1432
      %1434 = vrot.lane.b32.xlu0 %v555, 28
      %v1435 = vpop.permute.xlu0 %1434
      %1436 = vrot.lane.b32.xlu0 %v556, 28
      %v1437 = vpop.permute.xlu0 %1436
      %1438 = vrot.lane.b32.xlu0 %v557, 28
      %v1439 = vpop.permute.xlu0 %1438
      %1440 = vrot.lane.b32.xlu0 %v558, 28
      %v1441 = vpop.permute.xlu0 %1440
      %1442 = vrot.lane.b32.xlu0 %v559, 28
      %v1443 = vpop.permute.xlu0 %1442
      %1444 = vrot.lane.b32.xlu0 %v560, 28
      %v1445 = vpop.permute.xlu0 %1444
      %1446 = vrot.lane.b32.xlu0 %v561, 28
      %v1447 = vpop.permute.xlu0 %1446
      %1448 = vrot.lane.b32.xlu0 %v562, 28
      %v1449 = vpop.permute.xlu0 %1448
      %1450 = vrot.lane.b32.xlu0 %v563, 28
      %v1451 = vpop.permute.xlu0 %1450
      %1452 = vrot.lane.b32.xlu0 %v564, 28
      %v1453 = vpop.permute.xlu0 %1452
      %1454 = vrot.lane.b32.xlu0 %v565, 28
      %v1455 = vpop.permute.xlu0 %1454
      %1456 = vrot.lane.b32.xlu0 %v566, 28
      %v1457 = vpop.permute.xlu0 %1456
      %1458 = vrot.lane.b32.xlu0 %v567, 28
      %v1459 = vpop.permute.xlu0 %1458
      %1460 = vrot.lane.b32.xlu0 %v568, 28
      %v1461 = vpop.permute.xlu0 %1460
      %1462 = vrot.lane.b32.xlu0 %v569, 28
      %v1463 = vpop.permute.xlu0 %1462
      %1464 = vrot.lane.b32.xlu0 %v570, 28
      %v1465 = vpop.permute.xlu0 %1464
      %1466 = vrot.lane.b32.xlu0 %v571, 28
      %v1467 = vpop.permute.xlu0 %1466
      %1532 = vrot.lane.b32.xlu0 %v572, 32
      %v1533 = vpop.permute.xlu0 %1532
      %1534 = vrot.lane.b32.xlu0 %v573, 32
      %v1535 = vpop.permute.xlu0 %1534
      %1536 = vrot.lane.b32.xlu0 %v574, 32
      %v1537 = vpop.permute.xlu0 %1536
      %1538 = vrot.lane.b32.xlu0 %v575, 32
      %v1539 = vpop.permute.xlu0 %1538
      %1540 = vrot.lane.b32.xlu0 %v576, 32
      %v1541 = vpop.permute.xlu0 %1540
      %1542 = vrot.lane.b32.xlu0 %v577, 32
      %v1543 = vpop.permute.xlu0 %1542
      %1544 = vrot.lane.b32.xlu0 %v578, 32
      %v1545 = vpop.permute.xlu0 %1544
      %1546 = vrot.lane.b32.xlu0 %v579, 32
      %v1547 = vpop.permute.xlu0 %1546
      %1548 = vrot.lane.b32.xlu0 %v580, 32
      %v1549 = vpop.permute.xlu0 %1548
      %1550 = vrot.lane.b32.xlu0 %v581, 32
      %v1551 = vpop.permute.xlu0 %1550
      %1552 = vrot.lane.b32.xlu0 %v582, 32
      %v1553 = vpop.permute.xlu0 %1552
      %1554 = vrot.lane.b32.xlu0 %v583, 32
      %v1555 = vpop.permute.xlu0 %1554
      %1556 = vrot.lane.b32.xlu0 %v584, 32
      %v1557 = vpop.permute.xlu0 %1556
      %1558 = vrot.lane.b32.xlu0 %v585, 32
      %v1559 = vpop.permute.xlu0 %1558
      %1560 = vrot.lane.b32.xlu0 %v586, 32
      %v1561 = vpop.permute.xlu0 %1560
      %1562 = vrot.lane.b32.xlu0 %v587, 32
      %v1563 = vpop.permute.xlu0 %1562
      %1564 = vrot.lane.b32.xlu0 %v588, 32
      %v1565 = vpop.permute.xlu0 %1564
      %1566 = vrot.lane.b32.xlu0 %v589, 32
      %v1567 = vpop.permute.xlu0 %1566
      %1568 = vrot.lane.b32.xlu0 %v590, 32
      %v1569 = vpop.permute.xlu0 %1568
      %1570 = vrot.lane.b32.xlu0 %v591, 32
      %v1571 = vpop.permute.xlu0 %1570
      %1572 = vrot.lane.b32.xlu0 %v592, 32
      %v1573 = vpop.permute.xlu0 %1572
      %1574 = vrot.lane.b32.xlu0 %v593, 32
      %v1575 = vpop.permute.xlu0 %1574
      %1576 = vrot.lane.b32.xlu0 %v594, 32
      %v1577 = vpop.permute.xlu0 %1576
      %1578 = vrot.lane.b32.xlu0 %v595, 32
      %v1579 = vpop.permute.xlu0 %1578
      %1580 = vrot.lane.b32.xlu0 %v596, 32
      %v1581 = vpop.permute.xlu0 %1580
      %1582 = vrot.lane.b32.xlu0 %v597, 32
      %v1583 = vpop.permute.xlu0 %1582
      %1584 = vrot.lane.b32.xlu0 %v598, 32
      %v1585 = vpop.permute.xlu0 %1584
      %1586 = vrot.lane.b32.xlu0 %v599, 32
      %v1587 = vpop.permute.xlu0 %1586
      %1588 = vrot.lane.b32.xlu0 %v600, 32
      %v1589 = vpop.permute.xlu0 %1588
      %1590 = vrot.lane.b32.xlu0 %v601, 32
      %v1591 = vpop.permute.xlu0 %1590
      %1592 = vrot.lane.b32.xlu0 %v602, 32
      %v1593 = vpop.permute.xlu0 %1592
      %1594 = vrot.lane.b32.xlu0 %v603, 32
      %v1595 = vpop.permute.xlu0 %1594
      %v1628 = vsel %vm204, %v315, %v637
      %v1629 = vsel %vm204, %v316, %v639
      %v1630 = vsel %vm204, %v317, %v641
      %v1631 = vsel %vm204, %v318, %v643
      %v1632 = vsel %vm204, %v319, %v645
      %v1633 = vsel %vm204, %v320, %v647
      %v1634 = vsel %vm204, %v321, %v649
      %v1635 = vsel %vm204, %v322, %v651
      %v1636 = vsel %vm204, %v323, %v653
      %v1637 = vsel %vm204, %v324, %v655
      %v1638 = vsel %vm204, %v325, %v657
      %v1639 = vsel %vm204, %v326, %v659
      %v1640 = vsel %vm204, %v327, %v661
      %v1641 = vsel %vm204, %v328, %v663
      %v1642 = vsel %vm204, %v329, %v665
      %v1643 = vsel %vm204, %v330, %v667
      %v1644 = vsel %vm204, %v331, %v669
      %v1645 = vsel %vm204, %v332, %v671
      %v1646 = vsel %vm204, %v333, %v673
      %v1647 = vsel %vm204, %v334, %v675
      %v1648 = vsel %vm204, %v335, %v677
      %v1649 = vsel %vm204, %v336, %v679
      %v1650 = vsel %vm204, %v337, %v681
      %v1651 = vsel %vm204, %v338, %v683
      %v1652 = vsel %vm204, %v339, %v685
      %v1653 = vsel %vm204, %v340, %v687
      %v1654 = vsel %vm204, %v341, %v689
      %v1655 = vsel %vm204, %v342, %v691
      %v1656 = vsel %vm204, %v343, %v693
      %v1657 = vsel %vm204, %v344, %v695
      %v1658 = vsel %vm204, %v345, %v697
      %v1659 = vsel %vm204, %v346, %v699
      %vm1660 = vcmask 64512
      %v1661 = vsel %vm1660, %v1628, %v765
      %v1662 = vsel %vm1660, %v1629, %v767
      %v1663 = vsel %vm1660, %v1630, %v769
      %v1664 = vsel %vm1660, %v1631, %v771
      %v1665 = vsel %vm1660, %v1632, %v773
      %v1666 = vsel %vm1660, %v1633, %v775
      %v1667 = vsel %vm1660, %v1634, %v777
      %v1668 = vsel %vm1660, %v1635, %v779
      %v1669 = vsel %vm1660, %v1636, %v781
      %v1670 = vsel %vm1660, %v1637, %v783
      %v1671 = vsel %vm1660, %v1638, %v785
      %v1672 = vsel %vm1660, %v1639, %v787
      %v1673 = vsel %vm1660, %v1640, %v789
      %v1674 = vsel %vm1660, %v1641, %v791
      %v1675 = vsel %vm1660, %v1642, %v793
      %v1676 = vsel %vm1660, %v1643, %v795
      %v1677 = vsel %vm1660, %v1644, %v797
      %v1678 = vsel %vm1660, %v1645, %v799
      %v1679 = vsel %vm1660, %v1646, %v801
      %v1680 = vsel %vm1660, %v1647, %v803
      %v1681 = vsel %vm1660, %v1648, %v805
      %v1682 = vsel %vm1660, %v1649, %v807
      %v1683 = vsel %vm1660, %v1650, %v809
      %v1684 = vsel %vm1660, %v1651, %v811
      %v1685 = vsel %vm1660, %v1652, %v813
      %v1686 = vsel %vm1660, %v1653, %v815
      %v1687 = vsel %vm1660, %v1654, %v817
      %v1688 = vsel %vm1660, %v1655, %v819
      %v1689 = vsel %vm1660, %v1656, %v821
      %v1690 = vsel %vm1660, %v1657, %v823
      %v1691 = vsel %vm1660, %v1658, %v825
      %v1692 = vsel %vm1660, %v1659, %v827
      %vm1693 = vcmask 97280
      %v1694 = vsel %vm1693, %v1661, %v893
      %v1695 = vsel %vm1693, %v1662, %v895
      %v1696 = vsel %vm1693, %v1663, %v897
      %v1697 = vsel %vm1693, %v1664, %v899
      %v1698 = vsel %vm1693, %v1665, %v901
      %v1699 = vsel %vm1693, %v1666, %v903
      %v1700 = vsel %vm1693, %v1667, %v905
      %v1701 = vsel %vm1693, %v1668, %v907
      %v1702 = vsel %vm1693, %v1669, %v909
      %v1703 = vsel %vm1693, %v1670, %v911
      %v1704 = vsel %vm1693, %v1671, %v913
      %v1705 = vsel %vm1693, %v1672, %v915
      %v1706 = vsel %vm1693, %v1673, %v917
      %v1707 = vsel %vm1693, %v1674, %v919
      %v1708 = vsel %vm1693, %v1675, %v921
      %v1709 = vsel %vm1693, %v1676, %v923
      %v1710 = vsel %vm1693, %v1677, %v925
      %v1711 = vsel %vm1693, %v1678, %v927
      %v1712 = vsel %vm1693, %v1679, %v929
      %v1713 = vsel %vm1693, %v1680, %v931
      %v1714 = vsel %vm1693, %v1681, %v933
      %v1715 = vsel %vm1693, %v1682, %v935
      %v1716 = vsel %vm1693, %v1683, %v937
      %v1717 = vsel %vm1693, %v1684, %v939
      %v1718 = vsel %vm1693, %v1685, %v941
      %v1719 = vsel %vm1693, %v1686, %v943
      %v1720 = vsel %vm1693, %v1687, %v945
      %v1721 = vsel %vm1693, %v1688, %v947
      %v1722 = vsel %vm1693, %v1689, %v949
      %v1723 = vsel %vm1693, %v1690, %v951
      %v1724 = vsel %vm1693, %v1691, %v953
      %v1725 = vsel %vm1693, %v1692, %v955
      %vm1726 = vcmask 130048
      %v1727 = vsel %vm1726, %v1694, %v1021
      %v1728 = vsel %vm1726, %v1695, %v1023
      %v1729 = vsel %vm1726, %v1696, %v1025
      %v1730 = vsel %vm1726, %v1697, %v1027
      %v1731 = vsel %vm1726, %v1698, %v1029
      %v1732 = vsel %vm1726, %v1699, %v1031
      %v1733 = vsel %vm1726, %v1700, %v1033
      %v1734 = vsel %vm1726, %v1701, %v1035
      %v1735 = vsel %vm1726, %v1702, %v1037
      %v1736 = vsel %vm1726, %v1703, %v1039
      %v1737 = vsel %vm1726, %v1704, %v1041
      %v1738 = vsel %vm1726, %v1705, %v1043
      %v1739 = vsel %vm1726, %v1706, %v1045
      %v1740 = vsel %vm1726, %v1707, %v1047
      %v1741 = vsel %vm1726, %v1708, %v1049
      %v1742 = vsel %vm1726, %v1709, %v1051
      %v1743 = vsel %vm1726, %v1710, %v1053
      %v1744 = vsel %vm1726, %v1711, %v1055
      %v1745 = vsel %vm1726, %v1712, %v1057
      %v1746 = vsel %vm1726, %v1713, %v1059
      %v1747 = vsel %vm1726, %v1714, %v1061
      %v1748 = vsel %vm1726, %v1715, %v1063
      %v1749 = vsel %vm1726, %v1716, %v1065
      %v1750 = vsel %vm1726, %v1717, %v1067
      %v1751 = vsel %vm1726, %v1718, %v1069
      %v1752 = vsel %vm1726, %v1719, %v1071
      %v1753 = vsel %vm1726, %v1720, %v1073
      %v1754 = vsel %vm1726, %v1721, %v1075
      %v1755 = vsel %vm1726, %v1722, %v1077
      %v1756 = vsel %vm1726, %v1723, %v1079
      %v1757 = vsel %vm1726, %v1724, %v1081
      %v1758 = vsel %vm1726, %v1725, %v1083
      %vm1759 = vcmask 162816
      %v1760 = vsel %vm1759, %v1727, %v1149
      %v1761 = vsel %vm1759, %v1728, %v1151
      %v1762 = vsel %vm1759, %v1729, %v1153
      %v1763 = vsel %vm1759, %v1730, %v1155
      %v1764 = vsel %vm1759, %v1731, %v1157
      %v1765 = vsel %vm1759, %v1732, %v1159
      %v1766 = vsel %vm1759, %v1733, %v1161
      %v1767 = vsel %vm1759, %v1734, %v1163
      %v1768 = vsel %vm1759, %v1735, %v1165
      %v1769 = vsel %vm1759, %v1736, %v1167
      %v1770 = vsel %vm1759, %v1737, %v1169
      %v1771 = vsel %vm1759, %v1738, %v1171
      %v1772 = vsel %vm1759, %v1739, %v1173
      %v1773 = vsel %vm1759, %v1740, %v1175
      %v1774 = vsel %vm1759, %v1741, %v1177
      %v1775 = vsel %vm1759, %v1742, %v1179
      %v1776 = vsel %vm1759, %v1743, %v1181
      %v1777 = vsel %vm1759, %v1744, %v1183
      %v1778 = vsel %vm1759, %v1745, %v1185
      %v1779 = vsel %vm1759, %v1746, %v1187
      %v1780 = vsel %vm1759, %v1747, %v1189
      %v1781 = vsel %vm1759, %v1748, %v1191
      %v1782 = vsel %vm1759, %v1749, %v1193
      %v1783 = vsel %vm1759, %v1750, %v1195
      %v1784 = vsel %vm1759, %v1751, %v1197
      %v1785 = vsel %vm1759, %v1752, %v1199
      %v1786 = vsel %vm1759, %v1753, %v1201
      %v1787 = vsel %vm1759, %v1754, %v1203
      %v1788 = vsel %vm1759, %v1755, %v1205
      %v1789 = vsel %vm1759, %v1756, %v1207
      %v1790 = vsel %vm1759, %v1757, %v1209
      %v1791 = vsel %vm1759, %v1758, %v1211
      %vm1792 = vcmask 195584
      %v1793 = vsel %vm1792, %v1760, %v1277
      %v1794 = vsel %vm1792, %v1761, %v1279
      %v1795 = vsel %vm1792, %v1762, %v1281
      %v1796 = vsel %vm1792, %v1763, %v1283
      %v1797 = vsel %vm1792, %v1764, %v1285
      %v1798 = vsel %vm1792, %v1765, %v1287
      %v1799 = vsel %vm1792, %v1766, %v1289
      %v1800 = vsel %vm1792, %v1767, %v1291
      %v1801 = vsel %vm1792, %v1768, %v1293
      %v1802 = vsel %vm1792, %v1769, %v1295
      %v1803 = vsel %vm1792, %v1770, %v1297
      %v1804 = vsel %vm1792, %v1771, %v1299
      %v1805 = vsel %vm1792, %v1772, %v1301
      %v1806 = vsel %vm1792, %v1773, %v1303
      %v1807 = vsel %vm1792, %v1774, %v1305
      %v1808 = vsel %vm1792, %v1775, %v1307
      %v1809 = vsel %vm1792, %v1776, %v1309
      %v1810 = vsel %vm1792, %v1777, %v1311
      %v1811 = vsel %vm1792, %v1778, %v1313
      %v1812 = vsel %vm1792, %v1779, %v1315
      %v1813 = vsel %vm1792, %v1780, %v1317
      %v1814 = vsel %vm1792, %v1781, %v1319
      %v1815 = vsel %vm1792, %v1782, %v1321
      %v1816 = vsel %vm1792, %v1783, %v1323
      %v1817 = vsel %vm1792, %v1784, %v1325
      %v1818 = vsel %vm1792, %v1785, %v1327
      %v1819 = vsel %vm1792, %v1786, %v1329
      %v1820 = vsel %vm1792, %v1787, %v1331
      %v1821 = vsel %vm1792, %v1788, %v1333
      %v1822 = vsel %vm1792, %v1789, %v1335
      %v1823 = vsel %vm1792, %v1790, %v1337
      %v1824 = vsel %vm1792, %v1791, %v1339
      %vm1825 = vcmask 228352
      %v1826 = vsel %vm1825, %v1793, %v1405
      %v1827 = vsel %vm1825, %v1794, %v1407
      %v1828 = vsel %vm1825, %v1795, %v1409
      %v1829 = vsel %vm1825, %v1796, %v1411
      %v1830 = vsel %vm1825, %v1797, %v1413
      %v1831 = vsel %vm1825, %v1798, %v1415
      %v1832 = vsel %vm1825, %v1799, %v1417
      %v1833 = vsel %vm1825, %v1800, %v1419
      %v1834 = vsel %vm1825, %v1801, %v1421
      %v1835 = vsel %vm1825, %v1802, %v1423
      %v1836 = vsel %vm1825, %v1803, %v1425
      %v1837 = vsel %vm1825, %v1804, %v1427
      %v1838 = vsel %vm1825, %v1805, %v1429
      %v1839 = vsel %vm1825, %v1806, %v1431
      %v1840 = vsel %vm1825, %v1807, %v1433
      %v1841 = vsel %vm1825, %v1808, %v1435
      %v1842 = vsel %vm1825, %v1809, %v1437
      %v1843 = vsel %vm1825, %v1810, %v1439
      %v1844 = vsel %vm1825, %v1811, %v1441
      %v1845 = vsel %vm1825, %v1812, %v1443
      %v1846 = vsel %vm1825, %v1813, %v1445
      %v1847 = vsel %vm1825, %v1814, %v1447
      %v1848 = vsel %vm1825, %v1815, %v1449
      %v1849 = vsel %vm1825, %v1816, %v1451
      %v1850 = vsel %vm1825, %v1817, %v1453
      %v1851 = vsel %vm1825, %v1818, %v1455
      %v1852 = vsel %vm1825, %v1819, %v1457
      %v1853 = vsel %vm1825, %v1820, %v1459
      %v1854 = vsel %vm1825, %v1821, %v1461
      %v1855 = vsel %vm1825, %v1822, %v1463
      %v1856 = vsel %vm1825, %v1823, %v1465
      %v1857 = vsel %vm1825, %v1824, %v1467
      %vm1858 = vcmask 261120
      %v1859 = vsel %vm1858, %v1826, %v1533
      %v1860 = vsel %vm1858, %v1827, %v1535
      %v1861 = vsel %vm1858, %v1828, %v1537
      %v1862 = vsel %vm1858, %v1829, %v1539
      %v1863 = vsel %vm1858, %v1830, %v1541
      %v1864 = vsel %vm1858, %v1831, %v1543
      %v1865 = vsel %vm1858, %v1832, %v1545
      %v1866 = vsel %vm1858, %v1833, %v1547
      %v1867 = vsel %vm1858, %v1834, %v1549
      %v1868 = vsel %vm1858, %v1835, %v1551
      %v1869 = vsel %vm1858, %v1836, %v1553
      %v1870 = vsel %vm1858, %v1837, %v1555
      %v1871 = vsel %vm1858, %v1838, %v1557
      %v1872 = vsel %vm1858, %v1839, %v1559
      %v1873 = vsel %vm1858, %v1840, %v1561
      %v1874 = vsel %vm1858, %v1841, %v1563
      %v1875 = vsel %vm1858, %v1842, %v1565
      %v1876 = vsel %vm1858, %v1843, %v1567
      %v1877 = vsel %vm1858, %v1844, %v1569
      %v1878 = vsel %vm1858, %v1845, %v1571
      %v1879 = vsel %vm1858, %v1846, %v1573
      %v1880 = vsel %vm1858, %v1847, %v1575
      %v1881 = vsel %vm1858, %v1848, %v1577
      %v1882 = vsel %vm1858, %v1849, %v1579
      %v1883 = vsel %vm1858, %v1850, %v1581
      %v1884 = vsel %vm1858, %v1851, %v1583
      %v1885 = vsel %vm1858, %v1852, %v1585
      %v1886 = vsel %vm1858, %v1853, %v1587
      %v1887 = vsel %vm1858, %v1854, %v1589
      %v1888 = vsel %vm1858, %v1855, %v1591
      %v1889 = vsel %vm1858, %v1856, %v1593
      %v1890 = vsel %vm1858, %v1857, %v1595
      %v1891 = vld [vmem:[%s1] sm:$0xff]
      %v1892 = vld [vmem:[%s1 + $0x8] sm:$0xff]
      %v1893 = vld [vmem:[%s1 + $0x10] sm:$0xff]
      %v1894 = vld [vmem:[%s1 + $0x18] sm:$0xff]
      %v1895 = vld [vmem:[%s1 + $0x20] sm:$0xf]
      %vm1896 = vcmask 293888
      %v1898 = vsel %vm1896, %v1859, 0
      %v1901 = vsel %vm1896, %v1860, 0
      %v1904 = vsel %vm1896, %v1861, 0
      %v1907 = vsel %vm1896, %v1862, 0
      %v1910 = vsel %vm1896, %v1863, 0
      %v1913 = vsel %vm1896, %v1864, 0
      %v1916 = vsel %vm1896, %v1865, 0
      %v1919 = vsel %vm1896, %v1866, 0
      %v1922 = vsel %vm1896, %v1867, 0
      %v1925 = vsel %vm1896, %v1868, 0
      %v1928 = vsel %vm1896, %v1869, 0
      %v1931 = vsel %vm1896, %v1870, 0
      %v1934 = vsel %vm1896, %v1871, 0
      %v1937 = vsel %vm1896, %v1872, 0
      %v1940 = vsel %vm1896, %v1873, 0
      %v1943 = vsel %vm1896, %v1874, 0
      %v1946 = vsel %vm1896, %v1875, 0
      %v1949 = vsel %vm1896, %v1876, 0
      %v1952 = vsel %vm1896, %v1877, 0
      %v1955 = vsel %vm1896, %v1878, 0
      %v1958 = vsel %vm1896, %v1879, 0
      %v1961 = vsel %vm1896, %v1880, 0
      %v1964 = vsel %vm1896, %v1881, 0
      %v1967 = vsel %vm1896, %v1882, 0
      %v1970 = vsel %vm1896, %v1883, 0
      %v1973 = vsel %vm1896, %v1884, 0
      %v1976 = vsel %vm1896, %v1885, 0
      %v1979 = vsel %vm1896, %v1886, 0
      %v1982 = vsel %vm1896, %v1887, 0
      %v1985 = vsel %vm1896, %v1888, 0
      %v1988 = vsel %vm1896, %v1889, 0
      %v1991 = vsel %vm1896, %v1890, 0
      %vm1993 = vcmask 1043456
      %v1995 = vsel %vm1993, %v1895, 0
      %1997 = vmatprep.subr.mxu0 0.0
      %1998 = vmatpush1.msra.mxu0 %v1891
      %1999 = vmatprep.subr.mxu0 0.0
      %2000 = vmatpush1.msra.mxu0 %v1892
      %2001 = vmatprep.subr.mxu0 0.0
      %2002 = vmatpush1.msra.mxu0 %v1893
      %2003 = vmatprep.subr.mxu0 0.0
      %2004 = vmatpush1.msra.mxu0 %v1894
      %2005 = vmatprep.subr.mxu0 0.0
      %2006 = vmatpush1.msra.mxu0 %v1995
      %2007 = vmatprep.subr.mxu0 0.0
      %2008 = vmatpush1.msra.mxu0 0.0
      %2009 = vmatprep.subr.mxu0 0.0
      %2010 = vmatpush1.msra.mxu0 0.0
      %2011 = vmatprep.subr.mxu0 0.0
      %2012 = vmatpush1.msra.mxu0 0.0
      %2013 = vmatprep.subr.mxu0 0.0
      %2014 = vmatpush1.msra.mxu0 0.0
      %2015 = vmatprep.subr.mxu0 0.0
      %2016 = vmatpush1.msra.mxu0 0.0
      %2017 = vmatprep.subr.mxu0 0.0
      %2018 = vmatpush1.msra.mxu0 0.0
      %2019 = vmatprep.subr.mxu0 0.0
      %2020 = vmatpush1.msra.mxu0 0.0
      %2021 = vmatprep.subr.mxu0 0.0
      %2022 = vmatpush1.msra.mxu0 0.0
      %2023 = vmatprep.subr.mxu0 0.0
      %2024 = vmatpush1.msra.mxu0 0.0
      %2025 = vmatprep.subr.mxu0 0.0
      %2026 = vmatpush1.msra.mxu0 0.0
      %2027 = vmatprep.subr.mxu0 0.0
      %2028 = vmatpush1.msra.mxu0 0.0
      %2029 = vmatprep.subr.mxu0 0.0
      %2030 = vmatpush1.msra.mxu0 0.0
      %2031 = vmatprep.subr.mxu0 0.0
      %2032 = vmatpush1.msra.mxu0 0.0
      %2033 = vmatprep.subr.mxu0 0.0
      %2034 = vmatpush1.msra.mxu0 0.0
      %2035 = vmatprep.subr.mxu0 0.0
      %2036 = vmatpush1.msra.mxu0 0.0
      %2037 = vmatprep.subr.mxu0 0.0
      %2038 = vmatpush1.msra.mxu0 0.0
      %2039 = vmatprep.subr.mxu0 0.0
      %2040 = vmatpush1.msra.mxu0 0.0
      %2041 = vmatprep.subr.mxu0 0.0
      %2042 = vmatpush1.msra.mxu0 0.0
      %2043 = vmatprep.subr.mxu0 0.0
      %2044 = vmatpush1.msra.mxu0 0.0
      %2045 = vmatprep.subr.mxu0 0.0
      %2046 = vmatpush1.msra.mxu0 0.0
      %2047 = vmatprep.subr.mxu0 0.0
      %2048 = vmatpush1.msra.mxu0 0.0
      %2049 = vmatprep.subr.mxu0 0.0
      %2050 = vmatpush1.msra.mxu0 0.0
      %2051 = vmatprep.subr.mxu0 0.0
      %2052 = vmatpush1.msra.mxu0 0.0
      %2053 = vmatprep.subr.mxu0 0.0
      %2054 = vmatpush1.msra.mxu0 0.0
      %2055 = vmatprep.subr.mxu0 0.0
      %2056 = vmatpush1.msra.mxu0 0.0
      %2057 = vmatprep.subr.mxu0 0.0
      %2058 = vmatpush1.msra.mxu0 0.0
      %2059 = vmatprep.subr.mxu0 0.0
      %2060 = vmatpush1.msra.mxu0 0.0
      %2061 = vmatprep.mubr.f32.mxu0 0.0
      %2062 = vmatmul.mubr.f32.gmra.mrb[0].mxu0 %v1898
      %v2063 = vpop.f32.mrb[0].mxu0
      %v2064 = vadd.f32 0.0, %v2063
      %v2065 = vpop.f32.mrb[0].mxu0
      %2066 = vmatprep.mubr.f32.mxu0 0.0
      %2067 = vmatmul.mubr.f32.gmra.mrb[0].mxu0 %v1901
      %v2068 = vpop.f32.mrb[0].mxu0
      %v2069 = vadd.f32 0.0, %v2068
      %v2070 = vpop.f32.mrb[0].mxu0
      %2071 = vmatprep.mubr.f32.mxu0 0.0
      %2072 = vmatmul.mubr.f32.gmra.mrb[0].mxu0 %v1904
      %v2073 = vpop.f32.mrb[0].mxu0
      %v2074 = vadd.f32 0.0, %v2073
      %v2075 = vpop.f32.mrb[0].mxu0
      %2076 = vmatprep.mubr.f32.mxu0 0.0
      %2077 = vmatmul.mubr.f32.gmra.mrb[0].mxu0 %v1907
      %v2078 = vpop.f32.mrb[0].mxu0
      %v2079 = vadd.f32 0.0, %v2078
      %v2080 = vpop.f32.mrb[0].mxu0
      %2081 = vmatprep.mubr.f32.mxu0 0.0
      %2082 = vmatmul.mubr.f32.gmra.mrb[0].mxu0 %v1910
      %v2083 = vpop.f32.mrb[0].mxu0
      %v2084 = vadd.f32 0.0, %v2083
      %v2085 = vpop.f32.mrb[0].mxu0
      %2086 = vmatprep.mubr.f32.mxu0 0.0
      %2087 = vmatmul.mubr.f32.gmra.mrb[0].mxu0 %v1913
      %v2088 = vpop.f32.mrb[0].mxu0
      %v2089 = vadd.f32 0.0, %v2088
      %v2090 = vpop.f32.mrb[0].mxu0
      %2091 = vmatprep.mubr.f32.mxu0 0.0
      %2092 = vmatmul.mubr.f32.gmra.mrb[0].mxu0 %v1916
      %v2093 = vpop.f32.mrb[0].mxu0
      %v2094 = vadd.f32 0.0, %v2093
      %v2095 = vpop.f32.mrb[0].mxu0
      %2096 = vmatprep.mubr.f32.mxu0 0.0
      %2097 = vmatmul.mubr.f32.gmra.mrb[0].mxu0 %v1919
      %v2098 = vpop.f32.mrb[0].mxu0
      %v2099 = vadd.f32 0.0, %v2098
      %v2100 = vpop.f32.mrb[0].mxu0
      %2101 = vmatprep.mubr.f32.mxu0 0.0
      %2102 = vmatmul.mubr.f32.gmra.mrb[0].mxu0 %v1922
      %v2103 = vpop.f32.mrb[0].mxu0
      %v2104 = vadd.f32 0.0, %v2103
      %v2105 = vpop.f32.mrb[0].mxu0
      %2106 = vmatprep.mubr.f32.mxu0 0.0
      %2107 = vmatmul.mubr.f32.gmra.mrb[0].mxu0 %v1925
      %v2108 = vpop.f32.mrb[0].mxu0
      %v2109 = vadd.f32 0.0, %v2108
      %v2110 = vpop.f32.mrb[0].mxu0
      %2111 = vmatprep.mubr.f32.mxu0 0.0
      %2112 = vmatmul.mubr.f32.gmra.mrb[0].mxu0 %v1928
      %v2113 = vpop.f32.mrb[0].mxu0
      %v2114 = vadd.f32 0.0, %v2113
      %v2115 = vpop.f32.mrb[0].mxu0
      %2116 = vmatprep.mubr.f32.mxu0 0.0
      %2117 = vmatmul.mubr.f32.gmra.mrb[0].mxu0 %v1931
      %v2118 = vpop.f32.mrb[0].mxu0
      %v2119 = vadd.f32 0.0, %v2118
      %v2120 = vpop.f32.mrb[0].mxu0
      %2121 = vmatprep.mubr.f32.mxu0 0.0
      %2122 = vmatmul.mubr.f32.gmra.mrb[0].mxu0 %v1934
      %v2123 = vpop.f32.mrb[0].mxu0
      %v2124 = vadd.f32 0.0, %v2123
      %v2125 = vpop.f32.mrb[0].mxu0
      %2126 = vmatprep.mubr.f32.mxu0 0.0
      %2127 = vmatmul.mubr.f32.gmra.mrb[0].mxu0 %v1937
      %v2128 = vpop.f32.mrb[0].mxu0
      %v2129 = vadd.f32 0.0, %v2128
      %v2130 = vpop.f32.mrb[0].mxu0
      %2131 = vmatprep.mubr.f32.mxu0 0.0
      %2132 = vmatmul.mubr.f32.gmra.mrb[0].mxu0 %v1940
      %v2133 = vpop.f32.mrb[0].mxu0
      %v2134 = vadd.f32 0.0, %v2133
      %v2135 = vpop.f32.mrb[0].mxu0
      %2136 = vmatprep.mubr.f32.mxu0 0.0
      %2137 = vmatmul.mubr.f32.gmra.mrb[0].mxu0 %v1943
      %v2138 = vpop.f32.mrb[0].mxu0
      %v2139 = vadd.f32 0.0, %v2138
      %v2140 = vpop.f32.mrb[0].mxu0
      %2141 = vmatprep.mubr.f32.mxu0 0.0
      %2142 = vmatmul.mubr.f32.gmra.mrb[0].mxu0 %v1946
      %v2143 = vpop.f32.mrb[0].mxu0
      %v2144 = vadd.f32 0.0, %v2143
      %v2145 = vpop.f32.mrb[0].mxu0
      %2146 = vmatprep.mubr.f32.mxu0 0.0
      %2147 = vmatmul.mubr.f32.gmra.mrb[0].mxu0 %v1949
      %v2148 = vpop.f32.mrb[0].mxu0
      %v2149 = vadd.f32 0.0, %v2148
      %v2150 = vpop.f32.mrb[0].mxu0
      %2151 = vmatprep.mubr.f32.mxu0 0.0
      %2152 = vmatmul.mubr.f32.gmra.mrb[0].mxu0 %v1952
      %v2153 = vpop.f32.mrb[0].mxu0
      %v2154 = vadd.f32 0.0, %v2153
      %v2155 = vpop.f32.mrb[0].mxu0
      %2156 = vmatprep.mubr.f32.mxu0 0.0
      %2157 = vmatmul.mubr.f32.gmra.mrb[0].mxu0 %v1955
      %v2158 = vpop.f32.mrb[0].mxu0
      %v2159 = vadd.f32 0.0, %v2158
      %v2160 = vpop.f32.mrb[0].mxu0
      %2161 = vmatprep.mubr.f32.mxu0 0.0
      %2162 = vmatmul.mubr.f32.gmra.mrb[0].mxu0 %v1958
      %v2163 = vpop.f32.mrb[0].mxu0
      %v2164 = vadd.f32 0.0, %v2163
      %v2165 = vpop.f32.mrb[0].mxu0
      %2166 = vmatprep.mubr.f32.mxu0 0.0
      %2167 = vmatmul.mubr.f32.gmra.mrb[0].mxu0 %v1961
      %v2168 = vpop.f32.mrb[0].mxu0
      %v2169 = vadd.f32 0.0, %v2168
      %v2170 = vpop.f32.mrb[0].mxu0
      %2171 = vmatprep.mubr.f32.mxu0 0.0
      %2172 = vmatmul.mubr.f32.gmra.mrb[0].mxu0 %v1964
      %v2173 = vpop.f32.mrb[0].mxu0
      %v2174 = vadd.f32 0.0, %v2173
      %v2175 = vpop.f32.mrb[0].mxu0
      %2176 = vmatprep.mubr.f32.mxu0 0.0
      %2177 = vmatmul.mubr.f32.gmra.mrb[0].mxu0 %v1967
      %v2178 = vpop.f32.mrb[0].mxu0
      %v2179 = vadd.f32 0.0, %v2178
      %v2180 = vpop.f32.mrb[0].mxu0
      %2181 = vmatprep.mubr.f32.mxu0 0.0
      %2182 = vmatmul.mubr.f32.gmra.mrb[0].mxu0 %v1970
      %v2183 = vpop.f32.mrb[0].mxu0
      %v2184 = vadd.f32 0.0, %v2183
      %v2185 = vpop.f32.mrb[0].mxu0
      %2186 = vmatprep.mubr.f32.mxu0 0.0
      %2187 = vmatmul.mubr.f32.gmra.mrb[0].mxu0 %v1973
      %v2188 = vpop.f32.mrb[0].mxu0
      %v2189 = vadd.f32 0.0, %v2188
      %v2190 = vpop.f32.mrb[0].mxu0
      %2191 = vmatprep.mubr.f32.mxu0 0.0
      %2192 = vmatmul.mubr.f32.gmra.mrb[0].mxu0 %v1976
      %v2193 = vpop.f32.mrb[0].mxu0
      %v2194 = vadd.f32 0.0, %v2193
      %v2195 = vpop.f32.mrb[0].mxu0
      %2196 = vmatprep.mubr.f32.mxu0 0.0
      %2197 = vmatmul.mubr.f32.gmra.mrb[0].mxu0 %v1979
      %v2198 = vpop.f32.mrb[0].mxu0
      %v2199 = vadd.f32 0.0, %v2198
      %v2200 = vpop.f32.mrb[0].mxu0
      %2201 = vmatprep.mubr.f32.mxu0 0.0
      %2202 = vmatmul.mubr.f32.gmra.mrb[0].mxu0 %v1982
      %v2203 = vpop.f32.mrb[0].mxu0
      %v2204 = vadd.f32 0.0, %v2203
      %v2205 = vpop.f32.mrb[0].mxu0
      %2206 = vmatprep.mubr.f32.mxu0 0.0
      %2207 = vmatmul.mubr.f32.gmra.mrb[0].mxu0 %v1985
      %v2208 = vpop.f32.mrb[0].mxu0
      %v2209 = vadd.f32 0.0, %v2208
      %v2210 = vpop.f32.mrb[0].mxu0
      %2211 = vmatprep.mubr.f32.mxu0 0.0
      %2212 = vmatmul.mubr.f32.gmra.mrb[0].mxu0 %v1988
      %v2213 = vpop.f32.mrb[0].mxu0
      %v2214 = vadd.f32 0.0, %v2213
      %v2215 = vpop.f32.mrb[0].mxu0
      %2216 = vmatprep.mubr.f32.mxu0 0.0
      %2217 = vmatmul.mubr.f32.gmra.mrb[0].mxu0 %v1991
      %v2218 = vpop.f32.mrb[0].mxu0
      %v2219 = vadd.f32 0.0, %v2218
      %v2220 = vpop.f32.mrb[0].mxu0
      %2221 = vdwg.mxu0
      %2222 = vmatprep.subr.mxu0 0.0
      %2223 = vmatpush1.msra.mxu0 %v2064
      %2224 = vmatprep.subr.mxu0 0.0
      %2225 = vmatpush1.msra.mxu0 %v2069
      %2226 = vmatprep.subr.mxu0 0.0
      %2227 = vmatpush1.msra.mxu0 %v2074
      %2228 = vmatprep.subr.mxu0 0.0
      %2229 = vmatpush1.msra.mxu0 %v2079
      %2230 = vmatprep.subr.mxu0 0.0
      %2231 = vmatpush1.msra.mxu0 %v2084
      %2232 = vmatprep.subr.mxu0 0.0
      %2233 = vmatpush1.msra.mxu0 %v2089
      %2234 = vmatprep.subr.mxu0 0.0
      %2235 = vmatpush1.msra.mxu0 %v2094
      %2236 = vmatprep.subr.mxu0 0.0
      %2237 = vmatpush1.msra.mxu0 %v2099
      %2238 = vmatprep.subr.mxu0 0.0
      %2239 = vmatpush1.msra.mxu0 %v2104
      %2240 = vmatprep.subr.mxu0 0.0
      %2241 = vmatpush1.msra.mxu0 %v2109
      %2242 = vmatprep.subr.mxu0 0.0
      %2243 = vmatpush1.msra.mxu0 %v2114
      %2244 = vmatprep.subr.mxu0 0.0
      %2245 = vmatpush1.msra.mxu0 %v2119
      %2246 = vmatprep.subr.mxu0 0.0
      %2247 = vmatpush1.msra.mxu0 %v2124
      %2248 = vmatprep.subr.mxu0 0.0
      %2249 = vmatpush1.msra.mxu0 %v2129
      %2250 = vmatprep.subr.mxu0 0.0
      %2251 = vmatpush1.msra.mxu0 %v2134
      %2252 = vmatprep.subr.mxu0 0.0
      %2253 = vmatpush1.msra.mxu0 %v2139
      %2254 = vmatprep.subr.mxu0 0.0
      %2255 = vmatpush1.msra.mxu0 %v2144
      %2256 = vmatprep.subr.mxu0 0.0
      %2257 = vmatpush1.msra.mxu0 %v2149
      %2258 = vmatprep.subr.mxu0 0.0
      %2259 = vmatpush1.msra.mxu0 %v2154
      %2260 = vmatprep.subr.mxu0 0.0
      %2261 = vmatpush1.msra.mxu0 %v2159
      %2262 = vmatprep.subr.mxu0 0.0
      %2263 = vmatpush1.msra.mxu0 %v2164
      %2264 = vmatprep.subr.mxu0 0.0
      %2265 = vmatpush1.msra.mxu0 %v2169
      %2266 = vmatprep.subr.mxu0 0.0
      %2267 = vmatpush1.msra.mxu0 %v2174
      %2268 = vmatprep.subr.mxu0 0.0
      %2269 = vmatpush1.msra.mxu0 %v2179
      %2270 = vmatprep.subr.mxu0 0.0
      %2271 = vmatpush1.msra.mxu0 %v2184
      %2272 = vmatprep.subr.mxu0 0.0
      %2273 = vmatpush1.msra.mxu0 %v2189
      %2274 = vmatprep.subr.mxu0 0.0
      %2275 = vmatpush1.msra.mxu0 %v2194
      %2276 = vmatprep.subr.mxu0 0.0
      %2277 = vmatpush1.msra.mxu0 %v2199
      %2278 = vmatprep.subr.mxu0 0.0
      %2279 = vmatpush1.msra.mxu0 %v2204
      %2280 = vmatprep.subr.mxu0 0.0
      %2281 = vmatpush1.msra.mxu0 %v2209
      %2282 = vmatprep.subr.mxu0 0.0
      %2283 = vmatpush1.msra.mxu0 %v2214
      %2284 = vmatprep.subr.mxu0 0.0
      %2285 = vmatpush1.msra.mxu0 %v2219
      %2286 = vmatprep.mubr.f32.mxu0 1.0
      %2287 = vmatmul.mubr.f32.gmra.mrb[0].mxu0 1.0
      %v2288 = vpop.f32.mrb[0].mxu0
      %v2289 = vadd.f32 0.0, %v2288
      %v2290 = vpop.f32.mrb[0].mxu0
      %2291 = vdwg.mxu0
      %v2292 = vmul.f32 %v2064, %v2064
      %v2293 = vmul.f32 %v2069, %v2069
      %v2294 = vmul.f32 %v2074, %v2074
      %v2295 = vmul.f32 %v2079, %v2079
      %v2296 = vmul.f32 %v2084, %v2084
      %v2297 = vmul.f32 %v2089, %v2089
      %v2298 = vmul.f32 %v2094, %v2094
      %v2299 = vmul.f32 %v2099, %v2099
      %v2300 = vmul.f32 %v2104, %v2104
      %v2301 = vmul.f32 %v2109, %v2109
      %v2302 = vmul.f32 %v2114, %v2114
      %v2303 = vmul.f32 %v2119, %v2119
      %v2304 = vmul.f32 %v2124, %v2124
      %v2305 = vmul.f32 %v2129, %v2129
      %v2306 = vmul.f32 %v2134, %v2134
      %v2307 = vmul.f32 %v2139, %v2139
      %v2308 = vmul.f32 %v2144, %v2144
      %v2309 = vmul.f32 %v2149, %v2149
      %v2310 = vmul.f32 %v2154, %v2154
      %v2311 = vmul.f32 %v2159, %v2159
      %v2312 = vmul.f32 %v2164, %v2164
      %v2313 = vmul.f32 %v2169, %v2169
      %v2314 = vmul.f32 %v2174, %v2174
      %v2315 = vmul.f32 %v2179, %v2179
      %v2316 = vmul.f32 %v2184, %v2184
      %v2317 = vmul.f32 %v2189, %v2189
      %v2318 = vmul.f32 %v2194, %v2194
      %v2319 = vmul.f32 %v2199, %v2199
      %v2320 = vmul.f32 %v2204, %v2204
      %v2321 = vmul.f32 %v2209, %v2209
      %v2322 = vmul.f32 %v2214, %v2214
      %v2323 = vmul.f32 %v2219, %v2219
      %2324 = vmatprep.subr.mxu0 0.0
      %2325 = vmatpush1.msra.mxu0 %v2292
      %2326 = vmatprep.subr.mxu0 0.0
      %2327 = vmatpush1.msra.mxu0 %v2293
      %2328 = vmatprep.subr.mxu0 0.0
      %2329 = vmatpush1.msra.mxu0 %v2294
      %2330 = vmatprep.subr.mxu0 0.0
      %2331 = vmatpush1.msra.mxu0 %v2295
      %2332 = vmatprep.subr.mxu0 0.0
      %2333 = vmatpush1.msra.mxu0 %v2296
      %2334 = vmatprep.subr.mxu0 0.0
      %2335 = vmatpush1.msra.mxu0 %v2297
      %2336 = vmatprep.subr.mxu0 0.0
      %2337 = vmatpush1.msra.mxu0 %v2298
      %2338 = vmatprep.subr.mxu0 0.0
      %2339 = vmatpush1.msra.mxu0 %v2299
      %2340 = vmatprep.subr.mxu0 0.0
      %2341 = vmatpush1.msra.mxu0 %v2300
      %2342 = vmatprep.subr.mxu0 0.0
      %2343 = vmatpush1.msra.mxu0 %v2301
      %2344 = vmatprep.subr.mxu0 0.0
      %2345 = vmatpush1.msra.mxu0 %v2302
      %2346 = vmatprep.subr.mxu0 0.0
      %2347 = vmatpush1.msra.mxu0 %v2303
      %2348 = vmatprep.subr.mxu0 0.0
      %2349 = vmatpush1.msra.mxu0 %v2304
      %2350 = vmatprep.subr.mxu0 0.0
      %2351 = vmatpush1.msra.mxu0 %v2305
      %2352 = vmatprep.subr.mxu0 0.0
      %2353 = vmatpush1.msra.mxu0 %v2306
      %2354 = vmatprep.subr.mxu0 0.0
      %2355 = vmatpush1.msra.mxu0 %v2307
      %2356 = vmatprep.subr.mxu0 0.0
      %2357 = vmatpush1.msra.mxu0 %v2308
      %2358 = vmatprep.subr.mxu0 0.0
      %2359 = vmatpush1.msra.mxu0 %v2309
      %2360 = vmatprep.subr.mxu0 0.0
      %2361 = vmatpush1.msra.mxu0 %v2310
      %2362 = vmatprep.subr.mxu0 0.0
      %2363 = vmatpush1.msra.mxu0 %v2311
      %2364 = vmatprep.subr.mxu0 0.0
      %2365 = vmatpush1.msra.mxu0 %v2312
      %2366 = vmatprep.subr.mxu0 0.0
      %2367 = vmatpush1.msra.mxu0 %v2313
      %2368 = vmatprep.subr.mxu0 0.0
      %2369 = vmatpush1.msra.mxu0 %v2314
      %2370 = vmatprep.subr.mxu0 0.0
      %2371 = vmatpush1.msra.mxu0 %v2315
      %2372 = vmatprep.subr.mxu0 0.0
      %2373 = vmatpush1.msra.mxu0 %v2316
      %2374 = vmatprep.subr.mxu0 0.0
      %2375 = vmatpush1.msra.mxu0 %v2317
      %2376 = vmatprep.subr.mxu0 0.0
      %2377 = vmatpush1.msra.mxu0 %v2318
      %2378 = vmatprep.subr.mxu0 0.0
      %2379 = vmatpush1.msra.mxu0 %v2319
      %2380 = vmatprep.subr.mxu0 0.0
      %2381 = vmatpush1.msra.mxu0 %v2320
      %2382 = vmatprep.subr.mxu0 0.0
      %2383 = vmatpush1.msra.mxu0 %v2321
      %2384 = vmatprep.subr.mxu0 0.0
      %2385 = vmatpush1.msra.mxu0 %v2322
      %2386 = vmatprep.subr.mxu0 0.0
      %2387 = vmatpush1.msra.mxu0 %v2323
      %2388 = vmatprep.mubr.f32.mxu0 1.0
      %2389 = vmatmul.mubr.f32.gmra.mrb[0].mxu0 1.0
      %v2390 = vpop.f32.mrb[0].mxu0
      %v2391 = vadd.f32 0.0, %v2390
      %v2392 = vpop.f32.mrb[0].mxu0
      %2393 = vdwg.mxu0
      %v2394 = vmul.f32 %v2289, 0.00390625
      %v2395 = vmul.f32 %v2391, 0.00390625
      %v2396 = vmul.f32 %v2394, %v2394
      %v2397 = vsub.f32 %v2395, %v2396
      %v2398 = vmax.f32 %v2397, 0.0
      %v2399 = vlaneseq
      %v2400 = vshrl.u32 %v2399, 7
      %v2401 = vsub.s32 0, %v2400
      %v2402 = vrot.slane %v2394, %v2401
      %v2403 = vsub.f32 %v2064, %v2402
      %v2404 = vsub.f32 %v2069, %v2402
      %v2405 = vsub.f32 %v2074, %v2402
      %v2406 = vsub.f32 %v2079, %v2402
      %v2407 = vsub.f32 %v2084, %v2402
      %v2408 = vsub.f32 %v2089, %v2402
      %v2409 = vsub.f32 %v2094, %v2402
      %v2410 = vsub.f32 %v2099, %v2402
      %v2411 = vsub.f32 %v2104, %v2402
      %v2412 = vsub.f32 %v2109, %v2402
      %v2413 = vsub.f32 %v2114, %v2402
      %v2414 = vsub.f32 %v2119, %v2402
      %v2415 = vsub.f32 %v2124, %v2402
      %v2416 = vsub.f32 %v2129, %v2402
      %v2417 = vsub.f32 %v2134, %v2402
      %v2418 = vsub.f32 %v2139, %v2402
      %v2419 = vsub.f32 %v2144, %v2402
      %v2420 = vsub.f32 %v2149, %v2402
      %v2421 = vsub.f32 %v2154, %v2402
      %v2422 = vsub.f32 %v2159, %v2402
      %v2423 = vsub.f32 %v2164, %v2402
      %v2424 = vsub.f32 %v2169, %v2402
      %v2425 = vsub.f32 %v2174, %v2402
      %v2426 = vsub.f32 %v2179, %v2402
      %v2427 = vsub.f32 %v2184, %v2402
      %v2428 = vsub.f32 %v2189, %v2402
      %v2429 = vsub.f32 %v2194, %v2402
      %v2430 = vsub.f32 %v2199, %v2402
      %v2431 = vsub.f32 %v2204, %v2402
      %v2432 = vsub.f32 %v2209, %v2402
      %v2433 = vsub.f32 %v2214, %v2402
      %v2434 = vsub.f32 %v2219, %v2402
      %v2435 = vadd.f32 %v2398, 1e-05
      %v2436 = vrsqrt.pop %v2435
      %v2437 = vlaneseq
      %v2438 = vshrl.u32 %v2437, 7
      %v2439 = vsub.s32 0, %v2438
      %v2440 = vrot.slane %v2436, %v2439
      %v2441 = vmul.f32 %v2403, %v2440
      %v2442 = vmul.f32 %v2404, %v2440
      %v2443 = vmul.f32 %v2405, %v2440
      %v2444 = vmul.f32 %v2406, %v2440
      %v2445 = vmul.f32 %v2407, %v2440
      %v2446 = vmul.f32 %v2408, %v2440
      %v2447 = vmul.f32 %v2409, %v2440
      %v2448 = vmul.f32 %v2410, %v2440
      %v2449 = vmul.f32 %v2411, %v2440
      %v2450 = vmul.f32 %v2412, %v2440
      %v2451 = vmul.f32 %v2413, %v2440
      %v2452 = vmul.f32 %v2414, %v2440
      %v2453 = vmul.f32 %v2415, %v2440
      %v2454 = vmul.f32 %v2416, %v2440
      %v2455 = vmul.f32 %v2417, %v2440
      %v2456 = vmul.f32 %v2418, %v2440
      %v2457 = vmul.f32 %v2419, %v2440
      %v2458 = vmul.f32 %v2420, %v2440
      %v2459 = vmul.f32 %v2421, %v2440
      %v2460 = vmul.f32 %v2422, %v2440
      %v2461 = vmul.f32 %v2423, %v2440
      %v2462 = vmul.f32 %v2424, %v2440
      %v2463 = vmul.f32 %v2425, %v2440
      %v2464 = vmul.f32 %v2426, %v2440
      %v2465 = vmul.f32 %v2427, %v2440
      %v2466 = vmul.f32 %v2428, %v2440
      %v2467 = vmul.f32 %v2429, %v2440
      %v2468 = vmul.f32 %v2430, %v2440
      %v2469 = vmul.f32 %v2431, %v2440
      %v2470 = vmul.f32 %v2432, %v2440
      %v2471 = vmul.f32 %v2433, %v2440
      %v2472 = vmul.f32 %v2434, %v2440
      %v2473 = vmax.f32 %v2441, 0.0
      %v2474 = vmax.f32 %v2442, 0.0
      %v2475 = vmax.f32 %v2443, 0.0
      %v2476 = vmax.f32 %v2444, 0.0
      %v2477 = vmax.f32 %v2445, 0.0
      %v2478 = vmax.f32 %v2446, 0.0
      %v2479 = vmax.f32 %v2447, 0.0
      %v2480 = vmax.f32 %v2448, 0.0
      %v2481 = vmax.f32 %v2449, 0.0
      %v2482 = vmax.f32 %v2450, 0.0
      %v2483 = vmax.f32 %v2451, 0.0
      %v2484 = vmax.f32 %v2452, 0.0
      %v2485 = vmax.f32 %v2453, 0.0
      %v2486 = vmax.f32 %v2454, 0.0
      %v2487 = vmax.f32 %v2455, 0.0
      %v2488 = vmax.f32 %v2456, 0.0
      %v2489 = vmax.f32 %v2457, 0.0
      %v2490 = vmax.f32 %v2458, 0.0
      %v2491 = vmax.f32 %v2459, 0.0
      %v2492 = vmax.f32 %v2460, 0.0
      %v2493 = vmax.f32 %v2461, 0.0
      %v2494 = vmax.f32 %v2462, 0.0
      %v2495 = vmax.f32 %v2463, 0.0
      %v2496 = vmax.f32 %v2464, 0.0
      %v2497 = vmax.f32 %v2465, 0.0
      %v2498 = vmax.f32 %v2466, 0.0
      %v2499 = vmax.f32 %v2467, 0.0
      %v2500 = vmax.f32 %v2468, 0.0
      %v2501 = vmax.f32 %v2469, 0.0
      %v2502 = vmax.f32 %v2470, 0.0
      %v2503 = vmax.f32 %v2471, 0.0
      %v2504 = vmax.f32 %v2472, 0.0
      %2505 = vst.msk [vmem:[%s203 + $0x1] sm:$0xff] %vm204, %v2473
      %2506 = vst.msk [vmem:[%s203 + $0x9] sm:$0xff] %vm204, %v2474
      %2507 = vst.msk [vmem:[%s203 + $0x19] sm:$0xff] %vm204, %v2475
      %2508 = vst.msk [vmem:[%s203 + $0x21] sm:$0xff] %vm204, %v2476
      %2509 = vst.msk [vmem:[%s203 + $0x31] sm:$0xff] %vm204, %v2477
      %2510 = vst.msk [vmem:[%s203 + $0x39] sm:$0xff] %vm204, %v2478
      %2511 = vst.msk [vmem:[%s203 + $0x49] sm:$0xff] %vm204, %v2479
      %2512 = vst.msk [vmem:[%s203 + $0x51] sm:$0xff] %vm204, %v2480
      %2513 = vst.msk [vmem:[%s203 + $0x61] sm:$0xff] %vm204, %v2481
      %2514 = vst.msk [vmem:[%s203 + $0x69] sm:$0xff] %vm204, %v2482
      %2515 = vst.msk [vmem:[%s203 + $0x79] sm:$0xff] %vm204, %v2483
      %2516 = vst.msk [vmem:[%s203 + $0x81] sm:$0xff] %vm204, %v2484
      %2517 = vst.msk [vmem:[%s203 + $0x91] sm:$0xff] %vm204, %v2485
      %2518 = vst.msk [vmem:[%s203 + $0x99] sm:$0xff] %vm204, %v2486
      %2519 = vst.msk [vmem:[%s203 + $0xa9] sm:$0xff] %vm204, %v2487
      %2520 = vst.msk [vmem:[%s203 + $0xb1] sm:$0xff] %vm204, %v2488
      %2521 = vst.msk [vmem:[%s203 + $0xc1] sm:$0xff] %vm204, %v2489
      %2522 = vst.msk [vmem:[%s203 + $0xc9] sm:$0xff] %vm204, %v2490
      %2523 = vst.msk [vmem:[%s203 + $0xd9] sm:$0xff] %vm204, %v2491
      %2524 = vst.msk [vmem:[%s203 + $0xe1] sm:$0xff] %vm204, %v2492
      %2525 = vst.msk [vmem:[%s203 + $0xf1] sm:$0xff] %vm204, %v2493
      %2526 = vst.msk [vmem:[%s203 + $0xf9] sm:$0xff] %vm204, %v2494
      %2527 = vst.msk [vmem:[%s203 + $0x109] sm:$0xff] %vm204, %v2495
      %2528 = vst.msk [vmem:[%s203 + $0x111] sm:$0xff] %vm204, %v2496
      %2529 = vst.msk [vmem:[%s203 + $0x121] sm:$0xff] %vm204, %v2497
      %2530 = vst.msk [vmem:[%s203 + $0x129] sm:$0xff] %vm204, %v2498
      %2531 = vst.msk [vmem:[%s203 + $0x139] sm:$0xff] %vm204, %v2499
      %2532 = vst.msk [vmem:[%s203 + $0x141] sm:$0xff] %vm204, %v2500
      %2533 = vst.msk [vmem:[%s203 + $0x151] sm:$0xff] %vm204, %v2501
      %2534 = vst.msk [vmem:[%s203 + $0x159] sm:$0xff] %vm204, %v2502
      %2535 = vst.msk [vmem:[%s203 + $0x169] sm:$0xff] %vm204, %v2503
      %2536 = vst.msk [vmem:[%s203 + $0x171] sm:$0xff] %vm204, %v2504
      %2537 = vst.msk [vmem:[#allocation2 + $0x1] sm:$0xff] %vm204, %v2475
      %2538 = vst.msk [vmem:[#allocation2 + $0x9] sm:$0xff] %vm204, %v2476
      %2539 = vst.msk [vmem:[%s239 + $0x1] sm:$0xff] %vm204, %v2501
      %2540 = vst.msk [vmem:[%s239 + $0x9] sm:$0xff] %vm204, %v2502
      %v2541 = vld [vmem:[#allocation2 + $0x2] sm:$0x1]
      %v2542 = vld [vmem:[#allocation2 + $0x1a] sm:$0x1]
      %v2543 = vld [vmem:[#allocation2 + $0x32] sm:$0x1]
      %v2544 = vld [vmem:[#allocation2 + $0x4a] sm:$0x1]
      %v2545 = vld [vmem:[#allocation2 + $0x62] sm:$0x1]
      %v2546 = vld [vmem:[#allocation2 + $0x7a] sm:$0x1]
      %v2547 = vld [vmem:[#allocation2 + $0x92] sm:$0x1]
      %v2548 = vld [vmem:[#allocation2 + $0xaa] sm:$0x1]
      %v2549 = vld [vmem:[#allocation2 + $0xc2] sm:$0x1]
      %v2550 = vld [vmem:[#allocation2 + $0xda] sm:$0x1]
      %v2551 = vld [vmem:[#allocation2 + $0xf2] sm:$0x1]
      %v2552 = vld [vmem:[#allocation2 + $0x10a] sm:$0x1]
      %v2553 = vld [vmem:[#allocation2 + $0x122] sm:$0x1]
      %v2554 = vld [vmem:[#allocation2 + $0x13a] sm:$0x1]
      %v2555 = vld [vmem:[#allocation2 + $0x152] sm:$0x1]
      %v2556 = vld [vmem:[#allocation2 + $0x16a] sm:$0x1]
      %v2557 = vld [vmem:[#allocation2 + $0x182] sm:$0x1]
      %v2558 = vld [vmem:[#allocation2 + $0x19a] sm:$0x1]
      %2559 = vst.msk [vmem:[#allocation2] sm:$0x1] %vm260, %v2541
      %2560 = vst.msk [vmem:[#allocation2 + $0x18] sm:$0x1] %vm260, %v2542
      %2561 = vst.msk [vmem:[#allocation2 + $0x30] sm:$0x1] %vm260, %v2543
      %2562 = vst.msk [vmem:[#allocation2 + $0x48] sm:$0x1] %vm260, %v2544
      %2563 = vst.msk [vmem:[#allocation2 + $0x60] sm:$0x1] %vm260, %v2545
      %2564 = vst.msk [vmem:[#allocation2 + $0x78] sm:$0x1] %vm260, %v2546
      %2565 = vst.msk [vmem:[#allocation2 + $0x90] sm:$0x1] %vm260, %v2547
      %2566 = vst.msk [vmem:[#allocation2 + $0xa8] sm:$0x1] %vm260, %v2548
      %2567 = vst.msk [vmem:[#allocation2 + $0xc0] sm:$0x1] %vm260, %v2549
      %2568 = vst.msk [vmem:[#allocation2 + $0xd8] sm:$0x1] %vm260, %v2550
      %2569 = vst.msk [vmem:[#allocation2 + $0xf0] sm:$0x1] %vm260, %v2551
      %2570 = vst.msk [vmem:[#allocation2 + $0x108] sm:$0x1] %vm260, %v2552
      %2571 = vst.msk [vmem:[#allocation2 + $0x120] sm:$0x1] %vm260, %v2553
      %2572 = vst.msk [vmem:[#allocation2 + $0x138] sm:$0x1] %vm260, %v2554
      %2573 = vst.msk [vmem:[#allocation2 + $0x150] sm:$0x1] %vm260, %v2555
      %2574 = vst.msk [vmem:[#allocation2 + $0x168] sm:$0x1] %vm260, %v2556
      %2575 = vst.msk [vmem:[#allocation2 + $0x180] sm:$0x1] %vm260, %v2557
      %2576 = vst.msk [vmem:[#allocation2 + $0x198] sm:$0x1] %vm260, %v2558
      %v2577 = vld [vmem:[#allocation2 + $0xf] sm:$0x1]
      %v2578 = vld [vmem:[#allocation2 + $0x27] sm:$0x1]
      %v2579 = vld [vmem:[#allocation2 + $0x3f] sm:$0x1]
      %v2580 = vld [vmem:[#allocation2 + $0x57] sm:$0x1]
      %v2581 = vld [vmem:[#allocation2 + $0x6f] sm:$0x1]
      %v2582 = vld [vmem:[#allocation2 + $0x87] sm:$0x1]
      %v2583 = vld [vmem:[#allocation2 + $0x9f] sm:$0x1]
      %v2584 = vld [vmem:[#allocation2 + $0xb7] sm:$0x1]
      %v2585 = vld [vmem:[#allocation2 + $0xcf] sm:$0x1]
      %v2586 = vld [vmem:[#allocation2 + $0xe7] sm:$0x1]
      %v2587 = vld [vmem:[#allocation2 + $0xff] sm:$0x1]
      %v2588 = vld [vmem:[#allocation2 + $0x117] sm:$0x1]
      %v2589 = vld [vmem:[#allocation2 + $0x12f] sm:$0x1]
      %v2590 = vld [vmem:[#allocation2 + $0x147] sm:$0x1]
      %v2591 = vld [vmem:[#allocation2 + $0x15f] sm:$0x1]
      %v2592 = vld [vmem:[#allocation2 + $0x177] sm:$0x1]
      %v2593 = vld [vmem:[#allocation2 + $0x18f] sm:$0x1]
      %v2594 = vld [vmem:[#allocation2 + $0x1a7] sm:$0x1]
      %2595 = vst.msk [vmem:[#allocation2 + $0x11] sm:$0x1] %vm260, %v2577
      %2596 = vst.msk [vmem:[#allocation2 + $0x29] sm:$0x1] %vm260, %v2578
      %2597 = vst.msk [vmem:[#allocation2 + $0x41] sm:$0x1] %vm260, %v2579
      %2598 = vst.msk [vmem:[#allocation2 + $0x59] sm:$0x1] %vm260, %v2580
      %2599 = vst.msk [vmem:[#allocation2 + $0x71] sm:$0x1] %vm260, %v2581
      %2600 = vst.msk [vmem:[#allocation2 + $0x89] sm:$0x1] %vm260, %v2582
      %2601 = vst.msk [vmem:[#allocation2 + $0xa1] sm:$0x1] %vm260, %v2583
      %2602 = vst.msk [vmem:[#allocation2 + $0xb9] sm:$0x1] %vm260, %v2584
      %2603 = vst.msk [vmem:[#allocation2 + $0xd1] sm:$0x1] %vm260, %v2585
      %2604 = vst.msk [vmem:[#allocation2 + $0xe9] sm:$0x1] %vm260, %v2586
      %2605 = vst.msk [vmem:[#allocation2 + $0x101] sm:$0x1] %vm260, %v2587
      %2606 = vst.msk [vmem:[#allocation2 + $0x119] sm:$0x1] %vm260, %v2588
      %2607 = vst.msk [vmem:[#allocation2 + $0x131] sm:$0x1] %vm260, %v2589
      %2608 = vst.msk [vmem:[#allocation2 + $0x149] sm:$0x1] %vm260, %v2590
      %2609 = vst.msk [vmem:[#allocation2 + $0x161] sm:$0x1] %vm260, %v2591
      %2610 = vst.msk [vmem:[#allocation2 + $0x179] sm:$0x1] %vm260, %v2592
      %2611 = vst.msk [vmem:[#allocation2 + $0x191] sm:$0x1] %vm260, %v2593
      %2612 = vst.msk [vmem:[#allocation2 + $0x1a9] sm:$0x1] %vm260, %v2594
      %v2613 = vld [vmem:[#allocation2] sm:$0xff]
      %v2614 = vld [vmem:[#allocation2 + $0x8] sm:$0xff]
      %v2615 = vld [vmem:[#allocation2 + $0x18] sm:$0xff]
      %v2616 = vld [vmem:[#allocation2 + $0x20] sm:$0xff]
      %v2617 = vld [vmem:[#allocation2 + $0x30] sm:$0xff]
      %v2618 = vld [vmem:[#allocation2 + $0x38] sm:$0xff]
      %v2619 = vld [vmem:[#allocation2 + $0x48] sm:$0xff]
      %v2620 = vld [vmem:[#allocation2 + $0x50] sm:$0xff]
      %v2621 = vld [vmem:[#allocation2 + $0x60] sm:$0xff]
      %v2622 = vld [vmem:[#allocation2 + $0x68] sm:$0xff]
      %v2623 = vld [vmem:[#allocation2 + $0x78] sm:$0xff]
      %v2624 = vld [vmem:[#allocation2 + $0x80] sm:$0xff]
      %v2625 = vld [vmem:[#allocation2 + $0x90] sm:$0xff]
      %v2626 = vld [vmem:[#allocation2 + $0x98] sm:$0xff]
      %v2627 = vld [vmem:[#allocation2 + $0xa8] sm:$0xff]
      %v2628 = vld [vmem:[#allocation2 + $0xb0] sm:$0xff]
      %v2629 = vld [vmem:[#allocation2 + $0xc0] sm:$0xff]
      %v2630 = vld [vmem:[#allocation2 + $0xc8] sm:$0xff]
      %v2631 = vld [vmem:[#allocation2 + $0xd8] sm:$0xff]
      %v2632 = vld [vmem:[#allocation2 + $0xe0] sm:$0xff]
      %v2633 = vld [vmem:[#allocation2 + $0xf0] sm:$0xff]
      %v2634 = vld [vmem:[#allocation2 + $0xf8] sm:$0xff]
      %v2635 = vld [vmem:[#allocation2 + $0x108] sm:$0xff]
      %v2636 = vld [vmem:[#allocation2 + $0x110] sm:$0xff]
      %v2637 = vld [vmem:[#allocation2 + $0x120] sm:$0xff]
      %v2638 = vld [vmem:[#allocation2 + $0x128] sm:$0xff]
      %v2639 = vld [vmem:[#allocation2 + $0x138] sm:$0xff]
      %v2640 = vld [vmem:[#allocation2 + $0x140] sm:$0xff]
      %v2641 = vld [vmem:[#allocation2 + $0x150] sm:$0xff]
      %v2642 = vld [vmem:[#allocation2 + $0x158] sm:$0xff]
      %v2643 = vld [vmem:[#allocation2 + $0x168] sm:$0xff]
      %v2644 = vld [vmem:[#allocation2 + $0x170] sm:$0xff]
      %v2645 = vld [vmem:[#allocation2 + $0x1] sm:$0xff]
      %v2646 = vld [vmem:[#allocation2 + $0x9] sm:$0xff]
      %v2647 = vld [vmem:[#allocation2 + $0x19] sm:$0xff]
      %v2648 = vld [vmem:[#allocation2 + $0x21] sm:$0xff]
      %v2649 = vld [vmem:[#allocation2 + $0x31] sm:$0xff]
      %v2650 = vld [vmem:[#allocation2 + $0x39] sm:$0xff]
      %v2651 = vld [vmem:[#allocation2 + $0x49] sm:$0xff]
      %v2652 = vld [vmem:[#allocation2 + $0x51] sm:$0xff]
      %v2653 = vld [vmem:[#allocation2 + $0x61] sm:$0xff]
      %v2654 = vld [vmem:[#allocation2 + $0x69] sm:$0xff]
      %v2655 = vld [vmem:[#allocation2 + $0x79] sm:$0xff]
      %v2656 = vld [vmem:[#allocation2 + $0x81] sm:$0xff]
      %v2657 = vld [vmem:[#allocation2 + $0x91] sm:$0xff]
      %v2658 = vld [vmem:[#allocation2 + $0x99] sm:$0xff]
      %v2659 = vld [vmem:[#allocation2 + $0xa9] sm:$0xff]
      %v2660 = vld [vmem:[#allocation2 + $0xb1] sm:$0xff]
      %v2661 = vld [vmem:[#allocation2 + $0xc1] sm:$0xff]
      %v2662 = vld [vmem:[#allocation2 + $0xc9] sm:$0xff]
      %v2663 = vld [vmem:[#allocation2 + $0xd9] sm:$0xff]
      %v2664 = vld [vmem:[#allocation2 + $0xe1] sm:$0xff]
      %v2665 = vld [vmem:[#allocation2 + $0xf1] sm:$0xff]
      %v2666 = vld [vmem:[#allocation2 + $0xf9] sm:$0xff]
      %v2667 = vld [vmem:[#allocation2 + $0x109] sm:$0xff]
      %v2668 = vld [vmem:[#allocation2 + $0x111] sm:$0xff]
      %v2669 = vld [vmem:[#allocation2 + $0x121] sm:$0xff]
      %v2670 = vld [vmem:[#allocation2 + $0x129] sm:$0xff]
      %v2671 = vld [vmem:[#allocation2 + $0x139] sm:$0xff]
      %v2672 = vld [vmem:[#allocation2 + $0x141] sm:$0xff]
      %v2673 = vld [vmem:[#allocation2 + $0x151] sm:$0xff]
      %v2674 = vld [vmem:[#allocation2 + $0x159] sm:$0xff]
      %v2675 = vld [vmem:[#allocation2 + $0x169] sm:$0xff]
      %v2676 = vld [vmem:[#allocation2 + $0x171] sm:$0xff]
      %v2677 = vld [vmem:[#allocation2 + $0x2] sm:$0xff]
      %v2678 = vld [vmem:[#allocation2 + $0xa] sm:$0xff]
      %v2679 = vld [vmem:[#allocation2 + $0x1a] sm:$0xff]
      %v2680 = vld [vmem:[#allocation2 + $0x22] sm:$0xff]
      %v2681 = vld [vmem:[#allocation2 + $0x32] sm:$0xff]
      %v2682 = vld [vmem:[#allocation2 + $0x3a] sm:$0xff]
      %v2683 = vld [vmem:[#allocation2 + $0x4a] sm:$0xff]
      %v2684 = vld [vmem:[#allocation2 + $0x52] sm:$0xff]
      %v2685 = vld [vmem:[#allocation2 + $0x62] sm:$0xff]
      %v2686 = vld [vmem:[#allocation2 + $0x6a] sm:$0xff]
      %v2687 = vld [vmem:[#allocation2 + $0x7a] sm:$0xff]
      %v2688 = vld [vmem:[#allocation2 + $0x82] sm:$0xff]
      %v2689 = vld [vmem:[#allocation2 + $0x92] sm:$0xff]
      %v2690 = vld [vmem:[#allocation2 + $0x9a] sm:$0xff]
      %v2691 = vld [vmem:[#allocation2 + $0xaa] sm:$0xff]
      %v2692 = vld [vmem:[#allocation2 + $0xb2] sm:$0xff]
      %v2693 = vld [vmem:[#allocation2 + $0xc2] sm:$0xff]
      %v2694 = vld [vmem:[#allocation2 + $0xca] sm:$0xff]
      %v2695 = vld [vmem:[#allocation2 + $0xda] sm:$0xff]
      %v2696 = vld [vmem:[#allocation2 + $0xe2] sm:$0xff]
      %v2697 = vld [vmem:[#allocation2 + $0xf2] sm:$0xff]
      %v2698 = vld [vmem:[#allocation2 + $0xfa] sm:$0xff]
      %v2699 = vld [vmem:[#allocation2 + $0x10a] sm:$0xff]
      %v2700 = vld [vmem:[#allocation2 + $0x112] sm:$0xff]
      %v2701 = vld [vmem:[#allocation2 + $0x122] sm:$0xff]
      %v2702 = vld [vmem:[#allocation2 + $0x12a] sm:$0xff]
      %v2703 = vld [vmem:[#allocation2 + $0x13a] sm:$0xff]
      %v2704 = vld [vmem:[#allocation2 + $0x142] sm:$0xff]
      %v2705 = vld [vmem:[#allocation2 + $0x152] sm:$0xff]
      %v2706 = vld [vmem:[#allocation2 + $0x15a] sm:$0xff]
      %v2707 = vld [vmem:[#allocation2 + $0x16a] sm:$0xff]
      %v2708 = vld [vmem:[#allocation2 + $0x172] sm:$0xff]
      %v2709 = vld [vmem:[%s203] sm:$0xff]
      %v2710 = vld [vmem:[%s203 + $0x8] sm:$0xff]
      %v2711 = vld [vmem:[%s203 + $0x18] sm:$0xff]
      %v2712 = vld [vmem:[%s203 + $0x20] sm:$0xff]
      %v2713 = vld [vmem:[%s203 + $0x30] sm:$0xff]
      %v2714 = vld [vmem:[%s203 + $0x38] sm:$0xff]
      %v2715 = vld [vmem:[%s203 + $0x48] sm:$0xff]
      %v2716 = vld [vmem:[%s203 + $0x50] sm:$0xff]
      %v2717 = vld [vmem:[%s203 + $0x60] sm:$0xff]
      %v2718 = vld [vmem:[%s203 + $0x68] sm:$0xff]
      %v2719 = vld [vmem:[%s203 + $0x78] sm:$0xff]
      %v2720 = vld [vmem:[%s203 + $0x80] sm:$0xff]
      %v2721 = vld [vmem:[%s203 + $0x90] sm:$0xff]
      %v2722 = vld [vmem:[%s203 + $0x98] sm:$0xff]
      %v2723 = vld [vmem:[%s203 + $0xa8] sm:$0xff]
      %v2724 = vld [vmem:[%s203 + $0xb0] sm:$0xff]
      %v2725 = vld [vmem:[%s203 + $0xc0] sm:$0xff]
      %v2726 = vld [vmem:[%s203 + $0xc8] sm:$0xff]
      %v2727 = vld [vmem:[%s203 + $0xd8] sm:$0xff]
      %v2728 = vld [vmem:[%s203 + $0xe0] sm:$0xff]
      %v2729 = vld [vmem:[%s203 + $0xf0] sm:$0xff]
      %v2730 = vld [vmem:[%s203 + $0xf8] sm:$0xff]
      %v2731 = vld [vmem:[%s203 + $0x108] sm:$0xff]
      %v2732 = vld [vmem:[%s203 + $0x110] sm:$0xff]
      %v2733 = vld [vmem:[%s203 + $0x120] sm:$0xff]
      %v2734 = vld [vmem:[%s203 + $0x128] sm:$0xff]
      %v2735 = vld [vmem:[%s203 + $0x138] sm:$0xff]
      %v2736 = vld [vmem:[%s203 + $0x140] sm:$0xff]
      %v2737 = vld [vmem:[%s203 + $0x150] sm:$0xff]
      %v2738 = vld [vmem:[%s203 + $0x158] sm:$0xff]
      %v2739 = vld [vmem:[%s203 + $0x168] sm:$0xff]
      %v2740 = vld [vmem:[%s203 + $0x170] sm:$0xff]
      %v2741 = vld [vmem:[%s203 + $0x1] sm:$0xff]
      %v2742 = vld [vmem:[%s203 + $0x9] sm:$0xff]
      %v2743 = vld [vmem:[%s203 + $0x19] sm:$0xff]
      %v2744 = vld [vmem:[%s203 + $0x21] sm:$0xff]
      %v2745 = vld [vmem:[%s203 + $0x31] sm:$0xff]
      %v2746 = vld [vmem:[%s203 + $0x39] sm:$0xff]
      %v2747 = vld [vmem:[%s203 + $0x49] sm:$0xff]
      %v2748 = vld [vmem:[%s203 + $0x51] sm:$0xff]
      %v2749 = vld [vmem:[%s203 + $0x61] sm:$0xff]
      %v2750 = vld [vmem:[%s203 + $0x69] sm:$0xff]
      %v2751 = vld [vmem:[%s203 + $0x79] sm:$0xff]
      %v2752 = vld [vmem:[%s203 + $0x81] sm:$0xff]
      %v2753 = vld [vmem:[%s203 + $0x91] sm:$0xff]
      %v2754 = vld [vmem:[%s203 + $0x99] sm:$0xff]
      %v2755 = vld [vmem:[%s203 + $0xa9] sm:$0xff]
      %v2756 = vld [vmem:[%s203 + $0xb1] sm:$0xff]
      %v2757 = vld [vmem:[%s203 + $0xc1] sm:$0xff]
      %v2758 = vld [vmem:[%s203 + $0xc9] sm:$0xff]
      %v2759 = vld [vmem:[%s203 + $0xd9] sm:$0xff]
      %v2760 = vld [vmem:[%s203 + $0xe1] sm:$0xff]
      %v2761 = vld [vmem:[%s203 + $0xf1] sm:$0xff]
      %v2762 = vld [vmem:[%s203 + $0xf9] sm:$0xff]
      %v2763 = vld [vmem:[%s203 + $0x109] sm:$0xff]
      %v2764 = vld [vmem:[%s203 + $0x111] sm:$0xff]
      %v2765 = vld [vmem:[%s203 + $0x121] sm:$0xff]
      %v2766 = vld [vmem:[%s203 + $0x129] sm:$0xff]
      %v2767 = vld [vmem:[%s203 + $0x139] sm:$0xff]
      %v2768 = vld [vmem:[%s203 + $0x141] sm:$0xff]
      %v2769 = vld [vmem:[%s203 + $0x151] sm:$0xff]
      %v2770 = vld [vmem:[%s203 + $0x159] sm:$0xff]
      %v2771 = vld [vmem:[%s203 + $0x169] sm:$0xff]
      %v2772 = vld [vmem:[%s203 + $0x171] sm:$0xff]
      %v2773 = vld [vmem:[%s203 + $0x2] sm:$0xff]
      %v2774 = vld [vmem:[%s203 + $0xa] sm:$0xff]
      %v2775 = vld [vmem:[%s203 + $0x1a] sm:$0xff]
      %v2776 = vld [vmem:[%s203 + $0x22] sm:$0xff]
      %v2777 = vld [vmem:[%s203 + $0x32] sm:$0xff]
      %v2778 = vld [vmem:[%s203 + $0x3a] sm:$0xff]
      %v2779 = vld [vmem:[%s203 + $0x4a] sm:$0xff]
      %v2780 = vld [vmem:[%s203 + $0x52] sm:$0xff]
      %v2781 = vld [vmem:[%s203 + $0x62] sm:$0xff]
      %v2782 = vld [vmem:[%s203 + $0x6a] sm:$0xff]
      %v2783 = vld [vmem:[%s203 + $0x7a] sm:$0xff]
      %v2784 = vld [vmem:[%s203 + $0x82] sm:$0xff]
      %v2785 = vld [vmem:[%s203 + $0x92] sm:$0xff]
      %v2786 = vld [vmem:[%s203 + $0x9a] sm:$0xff]
      %v2787 = vld [vmem:[%s203 + $0xaa] sm:$0xff]
      %v2788 = vld [vmem:[%s203 + $0xb2] sm:$0xff]
      %v2789 = vld [vmem:[%s203 + $0xc2] sm:$0xff]
      %v2790 = vld [vmem:[%s203 + $0xca] sm:$0xff]
      %v2791 = vld [vmem:[%s203 + $0xda] sm:$0xff]
      %v2792 = vld [vmem:[%s203 + $0xe2] sm:$0xff]
      %v2793 = vld [vmem:[%s203 + $0xf2] sm:$0xff]
      %v2794 = vld [vmem:[%s203 + $0xfa] sm:$0xff]
      %v2795 = vld [vmem:[%s203 + $0x10a] sm:$0xff]
      %v2796 = vld [vmem:[%s203 + $0x112] sm:$0xff]
      %v2797 = vld [vmem:[%s203 + $0x122] sm:$0xff]
      %v2798 = vld [vmem:[%s203 + $0x12a] sm:$0xff]
      %v2799 = vld [vmem:[%s203 + $0x13a] sm:$0xff]
      %v2800 = vld [vmem:[%s203 + $0x142] sm:$0xff]
      %v2801 = vld [vmem:[%s203 + $0x152] sm:$0xff]
      %v2802 = vld [vmem:[%s203 + $0x15a] sm:$0xff]
      %v2803 = vld [vmem:[%s203 + $0x16a] sm:$0xff]
      %v2804 = vld [vmem:[%s203 + $0x172] sm:$0xff]
      %v2805 = vld [vmem:[%s507] sm:$0xff]
      %v2806 = vld [vmem:[%s507 + $0x8] sm:$0xff]
      %v2807 = vld [vmem:[%s507 + $0x18] sm:$0xff]
      %v2808 = vld [vmem:[%s507 + $0x20] sm:$0xff]
      %v2809 = vld [vmem:[%s507 + $0x30] sm:$0xff]
      %v2810 = vld [vmem:[%s507 + $0x38] sm:$0xff]
      %v2811 = vld [vmem:[%s507 + $0x48] sm:$0xff]
      %v2812 = vld [vmem:[%s507 + $0x50] sm:$0xff]
      %v2813 = vld [vmem:[%s507 + $0x60] sm:$0xff]
      %v2814 = vld [vmem:[%s507 + $0x68] sm:$0xff]
      %v2815 = vld [vmem:[%s507 + $0x78] sm:$0xff]
      %v2816 = vld [vmem:[%s507 + $0x80] sm:$0xff]
      %v2817 = vld [vmem:[%s507 + $0x90] sm:$0xff]
      %v2818 = vld [vmem:[%s507 + $0x98] sm:$0xff]
      %v2819 = vld [vmem:[%s507 + $0xa8] sm:$0xff]
      %v2820 = vld [vmem:[%s507 + $0xb0] sm:$0xff]
      %v2821 = vld [vmem:[%s507 + $0xc0] sm:$0xff]
      %v2822 = vld [vmem:[%s507 + $0xc8] sm:$0xff]
      %v2823 = vld [vmem:[%s507 + $0xd8] sm:$0xff]
      %v2824 = vld [vmem:[%s507 + $0xe0] sm:$0xff]
      %v2825 = vld [vmem:[%s507 + $0xf0] sm:$0xff]
      %v2826 = vld [vmem:[%s507 + $0xf8] sm:$0xff]
      %v2827 = vld [vmem:[%s507 + $0x108] sm:$0xff]
      %v2828 = vld [vmem:[%s507 + $0x110] sm:$0xff]
      %v2829 = vld [vmem:[%s507 + $0x120] sm:$0xff]
      %v2830 = vld [vmem:[%s507 + $0x128] sm:$0xff]
      %v2831 = vld [vmem:[%s507 + $0x138] sm:$0xff]
      %v2832 = vld [vmem:[%s507 + $0x140] sm:$0xff]
      %v2833 = vld [vmem:[%s507 + $0x150] sm:$0xff]
      %v2834 = vld [vmem:[%s507 + $0x158] sm:$0xff]
      %v2835 = vld [vmem:[%s507 + $0x168] sm:$0xff]
      %v2836 = vld [vmem:[%s507 + $0x170] sm:$0xff]
      %v2837 = vld [vmem:[%s507 + $0x1] sm:$0xff]
      %v2838 = vld [vmem:[%s507 + $0x9] sm:$0xff]
      %v2839 = vld [vmem:[%s507 + $0x19] sm:$0xff]
      %v2840 = vld [vmem:[%s507 + $0x21] sm:$0xff]
      %v2841 = vld [vmem:[%s507 + $0x31] sm:$0xff]
      %v2842 = vld [vmem:[%s507 + $0x39] sm:$0xff]
      %v2843 = vld [vmem:[%s507 + $0x49] sm:$0xff]
      %v2844 = vld [vmem:[%s507 + $0x51] sm:$0xff]
      %v2845 = vld [vmem:[%s507 + $0x61] sm:$0xff]
      %v2846 = vld [vmem:[%s507 + $0x69] sm:$0xff]
      %v2847 = vld [vmem:[%s507 + $0x79] sm:$0xff]
      %v2848 = vld [vmem:[%s507 + $0x81] sm:$0xff]
      %v2849 = vld [vmem:[%s507 + $0x91] sm:$0xff]
      %v2850 = vld [vmem:[%s507 + $0x99] sm:$0xff]
      %v2851 = vld [vmem:[%s507 + $0xa9] sm:$0xff]
      %v2852 = vld [vmem:[%s507 + $0xb1] sm:$0xff]
      %v2853 = vld [vmem:[%s507 + $0xc1] sm:$0xff]
      %v2854 = vld [vmem:[%s507 + $0xc9] sm:$0xff]
      %v2855 = vld [vmem:[%s507 + $0xd9] sm:$0xff]
      %v2856 = vld [vmem:[%s507 + $0xe1] sm:$0xff]
      %v2857 = vld [vmem:[%s507 + $0xf1] sm:$0xff]
      %v2858 = vld [vmem:[%s507 + $0xf9] sm:$0xff]
      %v2859 = vld [vmem:[%s507 + $0x109] sm:$0xff]
      %v2860 = vld [vmem:[%s507 + $0x111] sm:$0xff]
      %v2861 = vld [vmem:[%s507 + $0x121] sm:$0xff]
      %v2862 = vld [vmem:[%s507 + $0x129] sm:$0xff]
      %v2863 = vld [vmem:[%s507 + $0x139] sm:$0xff]
      %v2864 = vld [vmem:[%s507 + $0x141] sm:$0xff]
      %v2865 = vld [vmem:[%s507 + $0x151] sm:$0xff]
      %v2866 = vld [vmem:[%s507 + $0x159] sm:$0xff]
      %v2867 = vld [vmem:[%s507 + $0x169] sm:$0xff]
      %v2868 = vld [vmem:[%s507 + $0x171] sm:$0xff]
      %v2869 = vld [vmem:[%s507 + $0x2] sm:$0xff]
      %v2870 = vld [vmem:[%s507 + $0xa] sm:$0xff]
      %v2871 = vld [vmem:[%s507 + $0x1a] sm:$0xff]
      %v2872 = vld [vmem:[%s507 + $0x22] sm:$0xff]
      %v2873 = vld [vmem:[%s507 + $0x32] sm:$0xff]
      %v2874 = vld [vmem:[%s507 + $0x3a] sm:$0xff]
      %v2875 = vld [vmem:[%s507 + $0x4a] sm:$0xff]
      %v2876 = vld [vmem:[%s507 + $0x52] sm:$0xff]
      %v2877 = vld [vmem:[%s507 + $0x62] sm:$0xff]
      %v2878 = vld [vmem:[%s507 + $0x6a] sm:$0xff]
      %v2879 = vld [vmem:[%s507 + $0x7a] sm:$0xff]
      %v2880 = vld [vmem:[%s507 + $0x82] sm:$0xff]
      %v2881 = vld [vmem:[%s507 + $0x92] sm:$0xff]
      %v2882 = vld [vmem:[%s507 + $0x9a] sm:$0xff]
      %v2883 = vld [vmem:[%s507 + $0xaa] sm:$0xff]
      %v2884 = vld [vmem:[%s507 + $0xb2] sm:$0xff]
      %v2885 = vld [vmem:[%s507 + $0xc2] sm:$0xff]
      %v2886 = vld [vmem:[%s507 + $0xca] sm:$0xff]
      %v2887 = vld [vmem:[%s507 + $0xda] sm:$0xff]
      %v2888 = vld [vmem:[%s507 + $0xe2] sm:$0xff]
      %v2889 = vld [vmem:[%s507 + $0xf2] sm:$0xff]
      %v2890 = vld [vmem:[%s507 + $0xfa] sm:$0xff]
      %v2891 = vld [vmem:[%s507 + $0x10a] sm:$0xff]
      %v2892 = vld [vmem:[%s507 + $0x112] sm:$0xff]
      %v2893 = vld [vmem:[%s507 + $0x122] sm:$0xff]
      %v2894 = vld [vmem:[%s507 + $0x12a] sm:$0xff]
      %v2895 = vld [vmem:[%s507 + $0x13a] sm:$0xff]
      %v2896 = vld [vmem:[%s507 + $0x142] sm:$0xff]
      %v2897 = vld [vmem:[%s507 + $0x152] sm:$0xff]
      %v2898 = vld [vmem:[%s507 + $0x15a] sm:$0xff]
      %v2899 = vld [vmem:[%s507 + $0x16a] sm:$0xff]
      %v2900 = vld [vmem:[%s507 + $0x172] sm:$0xff]
      %2933 = vrot.lane.b32.xlu0 %v2645, 4
      %v2934 = vpop.permute.xlu0 %2933
      %2935 = vrot.lane.b32.xlu0 %v2646, 4
      %v2936 = vpop.permute.xlu0 %2935
      %2937 = vrot.lane.b32.xlu0 %v2647, 4
      %v2938 = vpop.permute.xlu0 %2937
      %2939 = vrot.lane.b32.xlu0 %v2648, 4
      %v2940 = vpop.permute.xlu0 %2939
      %2941 = vrot.lane.b32.xlu0 %v2649, 4
      %v2942 = vpop.permute.xlu0 %2941
      %2943 = vrot.lane.b32.xlu0 %v2650, 4
      %v2944 = vpop.permute.xlu0 %2943
      %2945 = vrot.lane.b32.xlu0 %v2651, 4
      %v2946 = vpop.permute.xlu0 %2945
      %2947 = vrot.lane.b32.xlu0 %v2652, 4
      %v2948 = vpop.permute.xlu0 %2947
      %2949 = vrot.lane.b32.xlu0 %v2653, 4
      %v2950 = vpop.permute.xlu0 %2949
      %2951 = vrot.lane.b32.xlu0 %v2654, 4
      %v2952 = vpop.permute.xlu0 %2951
      %2953 = vrot.lane.b32.xlu0 %v2655, 4
      %v2954 = vpop.permute.xlu0 %2953
      %2955 = vrot.lane.b32.xlu0 %v2656, 4
      %v2956 = vpop.permute.xlu0 %2955
      %2957 = vrot.lane.b32.xlu0 %v2657, 4
      %v2958 = vpop.permute.xlu0 %2957
      %2959 = vrot.lane.b32.xlu0 %v2658, 4
      %v2960 = vpop.permute.xlu0 %2959
      %2961 = vrot.lane.b32.xlu0 %v2659, 4
      %v2962 = vpop.permute.xlu0 %2961
      %2963 = vrot.lane.b32.xlu0 %v2660, 4
      %v2964 = vpop.permute.xlu0 %2963
      %2965 = vrot.lane.b32.xlu0 %v2661, 4
      %v2966 = vpop.permute.xlu0 %2965
      %2967 = vrot.lane.b32.xlu0 %v2662, 4
      %v2968 = vpop.permute.xlu0 %2967
      %2969 = vrot.lane.b32.xlu0 %v2663, 4
      %v2970 = vpop.permute.xlu0 %2969
      %2971 = vrot.lane.b32.xlu0 %v2664, 4
      %v2972 = vpop.permute.xlu0 %2971
      %2973 = vrot.lane.b32.xlu0 %v2665, 4
      %v2974 = vpop.permute.xlu0 %2973
      %2975 = vrot.lane.b32.xlu0 %v2666, 4
      %v2976 = vpop.permute.xlu0 %2975
      %2977 = vrot.lane.b32.xlu0 %v2667, 4
      %v2978 = vpop.permute.xlu0 %2977
      %2979 = vrot.lane.b32.xlu0 %v2668, 4
      %v2980 = vpop.permute.xlu0 %2979
      %2981 = vrot.lane.b32.xlu0 %v2669, 4
      %v2982 = vpop.permute.xlu0 %2981
      %2983 = vrot.lane.b32.xlu0 %v2670, 4
      %v2984 = vpop.permute.xlu0 %2983
      %2985 = vrot.lane.b32.xlu0 %v2671, 4
      %v2986 = vpop.permute.xlu0 %2985
      %2987 = vrot.lane.b32.xlu0 %v2672, 4
      %v2988 = vpop.permute.xlu0 %2987
      %2989 = vrot.lane.b32.xlu0 %v2673, 4
      %v2990 = vpop.permute.xlu0 %2989
      %2991 = vrot.lane.b32.xlu0 %v2674, 4
      %v2992 = vpop.permute.xlu0 %2991
      %2993 = vrot.lane.b32.xlu0 %v2675, 4
      %v2994 = vpop.permute.xlu0 %2993
      %2995 = vrot.lane.b32.xlu0 %v2676, 4
      %v2996 = vpop.permute.xlu0 %2995
      %3061 = vrot.lane.b32.xlu0 %v2677, 8
      %v3062 = vpop.permute.xlu0 %3061
      %3063 = vrot.lane.b32.xlu0 %v2678, 8
      %v3064 = vpop.permute.xlu0 %3063
      %3065 = vrot.lane.b32.xlu0 %v2679, 8
      %v3066 = vpop.permute.xlu0 %3065
      %3067 = vrot.lane.b32.xlu0 %v2680, 8
      %v3068 = vpop.permute.xlu0 %3067
      %3069 = vrot.lane.b32.xlu0 %v2681, 8
      %v3070 = vpop.permute.xlu0 %3069
      %3071 = vrot.lane.b32.xlu0 %v2682, 8
      %v3072 = vpop.permute.xlu0 %3071
      %3073 = vrot.lane.b32.xlu0 %v2683, 8
      %v3074 = vpop.permute.xlu0 %3073
      %3075 = vrot.lane.b32.xlu0 %v2684, 8
      %v3076 = vpop.permute.xlu0 %3075
      %3077 = vrot.lane.b32.xlu0 %v2685, 8
      %v3078 = vpop.permute.xlu0 %3077
      %3079 = vrot.lane.b32.xlu0 %v2686, 8
      %v3080 = vpop.permute.xlu0 %3079
      %3081 = vrot.lane.b32.xlu0 %v2687, 8
      %v3082 = vpop.permute.xlu0 %3081
      %3083 = vrot.lane.b32.xlu0 %v2688, 8
      %v3084 = vpop.permute.xlu0 %3083
      %3085 = vrot.lane.b32.xlu0 %v2689, 8
      %v3086 = vpop.permute.xlu0 %3085
      %3087 = vrot.lane.b32.xlu0 %v2690, 8
      %v3088 = vpop.permute.xlu0 %3087
      %3089 = vrot.lane.b32.xlu0 %v2691, 8
      %v3090 = vpop.permute.xlu0 %3089
      %3091 = vrot.lane.b32.xlu0 %v2692, 8
      %v3092 = vpop.permute.xlu0 %3091
      %3093 = vrot.lane.b32.xlu0 %v2693, 8
      %v3094 = vpop.permute.xlu0 %3093
      %3095 = vrot.lane.b32.xlu0 %v2694, 8
      %v3096 = vpop.permute.xlu0 %3095
      %3097 = vrot.lane.b32.xlu0 %v2695, 8
      %v3098 = vpop.permute.xlu0 %3097
      %3099 = vrot.lane.b32.xlu0 %v2696, 8
      %v3100 = vpop.permute.xlu0 %3099
      %3101 = vrot.lane.b32.xlu0 %v2697, 8
      %v3102 = vpop.permute.xlu0 %3101
      %3103 = vrot.lane.b32.xlu0 %v2698, 8
      %v3104 = vpop.permute.xlu0 %3103
      %3105 = vrot.lane.b32.xlu0 %v2699, 8
      %v3106 = vpop.permute.xlu0 %3105
      %3107 = vrot.lane.b32.xlu0 %v2700, 8
      %v3108 = vpop.permute.xlu0 %3107
      %3109 = vrot.lane.b32.xlu0 %v2701, 8
      %v3110 = vpop.permute.xlu0 %3109
      %3111 = vrot.lane.b32.xlu0 %v2702, 8
      %v3112 = vpop.permute.xlu0 %3111
      %3113 = vrot.lane.b32.xlu0 %v2703, 8
      %v3114 = vpop.permute.xlu0 %3113
      %3115 = vrot.lane.b32.xlu0 %v2704, 8
      %v3116 = vpop.permute.xlu0 %3115
      %3117 = vrot.lane.b32.xlu0 %v2705, 8
      %v3118 = vpop.permute.xlu0 %3117
      %3119 = vrot.lane.b32.xlu0 %v2706, 8
      %v3120 = vpop.permute.xlu0 %3119
      %3121 = vrot.lane.b32.xlu0 %v2707, 8
      %v3122 = vpop.permute.xlu0 %3121
      %3123 = vrot.lane.b32.xlu0 %v2708, 8
      %v3124 = vpop.permute.xlu0 %3123
      %3189 = vrot.lane.b32.xlu0 %v2709, 12
      %v3190 = vpop.permute.xlu0 %3189
      %3191 = vrot.lane.b32.xlu0 %v2710, 12
      %v3192 = vpop.permute.xlu0 %3191
      %3193 = vrot.lane.b32.xlu0 %v2711, 12
      %v3194 = vpop.permute.xlu0 %3193
      %3195 = vrot.lane.b32.xlu0 %v2712, 12
      %v3196 = vpop.permute.xlu0 %3195
      %3197 = vrot.lane.b32.xlu0 %v2713, 12
      %v3198 = vpop.permute.xlu0 %3197
      %3199 = vrot.lane.b32.xlu0 %v2714, 12
      %v3200 = vpop.permute.xlu0 %3199
      %3201 = vrot.lane.b32.xlu0 %v2715, 12
      %v3202 = vpop.permute.xlu0 %3201
      %3203 = vrot.lane.b32.xlu0 %v2716, 12
      %v3204 = vpop.permute.xlu0 %3203
      %3205 = vrot.lane.b32.xlu0 %v2717, 12
      %v3206 = vpop.permute.xlu0 %3205
      %3207 = vrot.lane.b32.xlu0 %v2718, 12
      %v3208 = vpop.permute.xlu0 %3207
      %3209 = vrot.lane.b32.xlu0 %v2719, 12
      %v3210 = vpop.permute.xlu0 %3209
      %3211 = vrot.lane.b32.xlu0 %v2720, 12
      %v3212 = vpop.permute.xlu0 %3211
      %3213 = vrot.lane.b32.xlu0 %v2721, 12
      %v3214 = vpop.permute.xlu0 %3213
      %3215 = vrot.lane.b32.xlu0 %v2722, 12
      %v3216 = vpop.permute.xlu0 %3215
      %3217 = vrot.lane.b32.xlu0 %v2723, 12
      %v3218 = vpop.permute.xlu0 %3217
      %3219 = vrot.lane.b32.xlu0 %v2724, 12
      %v3220 = vpop.permute.xlu0 %3219
      %3221 = vrot.lane.b32.xlu0 %v2725, 12
      %v3222 = vpop.permute.xlu0 %3221
      %3223 = vrot.lane.b32.xlu0 %v2726, 12
      %v3224 = vpop.permute.xlu0 %3223
      %3225 = vrot.lane.b32.xlu0 %v2727, 12
      %v3226 = vpop.permute.xlu0 %3225
      %3227 = vrot.lane.b32.xlu0 %v2728, 12
      %v3228 = vpop.permute.xlu0 %3227
      %3229 = vrot.lane.b32.xlu0 %v2729, 12
      %v3230 = vpop.permute.xlu0 %3229
      %3231 = vrot.lane.b32.xlu0 %v2730, 12
      %v3232 = vpop.permute.xlu0 %3231
      %3233 = vrot.lane.b32.xlu0 %v2731, 12
      %v3234 = vpop.permute.xlu0 %3233
      %3235 = vrot.lane.b32.xlu0 %v2732, 12
      %v3236 = vpop.permute.xlu0 %3235
      %3237 = vrot.lane.b32.xlu0 %v2733, 12
      %v3238 = vpop.permute.xlu0 %3237
      %3239 = vrot.lane.b32.xlu0 %v2734, 12
      %v3240 = vpop.permute.xlu0 %3239
      %3241 = vrot.lane.b32.xlu0 %v2735, 12
      %v3242 = vpop.permute.xlu0 %3241
      %3243 = vrot.lane.b32.xlu0 %v2736, 12
      %v3244 = vpop.permute.xlu0 %3243
      %3245 = vrot.lane.b32.xlu0 %v2737, 12
      %v3246 = vpop.permute.xlu0 %3245
      %3247 = vrot.lane.b32.xlu0 %v2738, 12
      %v3248 = vpop.permute.xlu0 %3247
      %3249 = vrot.lane.b32.xlu0 %v2739, 12
      %v3250 = vpop.permute.xlu0 %3249
      %3251 = vrot.lane.b32.xlu0 %v2740, 12
      %v3252 = vpop.permute.xlu0 %3251
      %3317 = vrot.lane.b32.xlu0 %v2741, 16
      %v3318 = vpop.permute.xlu0 %3317
      %3319 = vrot.lane.b32.xlu0 %v2742, 16
      %v3320 = vpop.permute.xlu0 %3319
      %3321 = vrot.lane.b32.xlu0 %v2743, 16
      %v3322 = vpop.permute.xlu0 %3321
      %3323 = vrot.lane.b32.xlu0 %v2744, 16
      %v3324 = vpop.permute.xlu0 %3323
      %3325 = vrot.lane.b32.xlu0 %v2745, 16
      %v3326 = vpop.permute.xlu0 %3325
      %3327 = vrot.lane.b32.xlu0 %v2746, 16
      %v3328 = vpop.permute.xlu0 %3327
      %3329 = vrot.lane.b32.xlu0 %v2747, 16
      %v3330 = vpop.permute.xlu0 %3329
      %3331 = vrot.lane.b32.xlu0 %v2748, 16
      %v3332 = vpop.permute.xlu0 %3331
      %3333 = vrot.lane.b32.xlu0 %v2749, 16
      %v3334 = vpop.permute.xlu0 %3333
      %3335 = vrot.lane.b32.xlu0 %v2750, 16
      %v3336 = vpop.permute.xlu0 %3335
      %3337 = vrot.lane.b32.xlu0 %v2751, 16
      %v3338 = vpop.permute.xlu0 %3337
      %3339 = vrot.lane.b32.xlu0 %v2752, 16
      %v3340 = vpop.permute.xlu0 %3339
      %3341 = vrot.lane.b32.xlu0 %v2753, 16
      %v3342 = vpop.permute.xlu0 %3341
      %3343 = vrot.lane.b32.xlu0 %v2754, 16
      %v3344 = vpop.permute.xlu0 %3343
      %3345 = vrot.lane.b32.xlu0 %v2755, 16
      %v3346 = vpop.permute.xlu0 %3345
      %3347 = vrot.lane.b32.xlu0 %v2756, 16
      %v3348 = vpop.permute.xlu0 %3347
      %3349 = vrot.lane.b32.xlu0 %v2757, 16
      %v3350 = vpop.permute.xlu0 %3349
      %3351 = vrot.lane.b32.xlu0 %v2758, 16
      %v3352 = vpop.permute.xlu0 %3351
      %3353 = vrot.lane.b32.xlu0 %v2759, 16
      %v3354 = vpop.permute.xlu0 %3353
      %3355 = vrot.lane.b32.xlu0 %v2760, 16
      %v3356 = vpop.permute.xlu0 %3355
      %3357 = vrot.lane.b32.xlu0 %v2761, 16
      %v3358 = vpop.permute.xlu0 %3357
      %3359 = vrot.lane.b32.xlu0 %v2762, 16
      %v3360 = vpop.permute.xlu0 %3359
      %3361 = vrot.lane.b32.xlu0 %v2763, 16
      %v3362 = vpop.permute.xlu0 %3361
      %3363 = vrot.lane.b32.xlu0 %v2764, 16
      %v3364 = vpop.permute.xlu0 %3363
      %3365 = vrot.lane.b32.xlu0 %v2765, 16
      %v3366 = vpop.permute.xlu0 %3365
      %3367 = vrot.lane.b32.xlu0 %v2766, 16
      %v3368 = vpop.permute.xlu0 %3367
      %3369 = vrot.lane.b32.xlu0 %v2767, 16
      %v3370 = vpop.permute.xlu0 %3369
      %3371 = vrot.lane.b32.xlu0 %v2768, 16
      %v3372 = vpop.permute.xlu0 %3371
      %3373 = vrot.lane.b32.xlu0 %v2769, 16
      %v3374 = vpop.permute.xlu0 %3373
      %3375 = vrot.lane.b32.xlu0 %v2770, 16
      %v3376 = vpop.permute.xlu0 %3375
      %3377 = vrot.lane.b32.xlu0 %v2771, 16
      %v3378 = vpop.permute.xlu0 %3377
      %3379 = vrot.lane.b32.xlu0 %v2772, 16
      %v3380 = vpop.permute.xlu0 %3379
      %3445 = vrot.lane.b32.xlu0 %v2773, 20
      %v3446 = vpop.permute.xlu0 %3445
      %3447 = vrot.lane.b32.xlu0 %v2774, 20
      %v3448 = vpop.permute.xlu0 %3447
      %3449 = vrot.lane.b32.xlu0 %v2775, 20
      %v3450 = vpop.permute.xlu0 %3449
      %3451 = vrot.lane.b32.xlu0 %v2776, 20
      %v3452 = vpop.permute.xlu0 %3451
      %3453 = vrot.lane.b32.xlu0 %v2777, 20
      %v3454 = vpop.permute.xlu0 %3453
      %3455 = vrot.lane.b32.xlu0 %v2778, 20
      %v3456 = vpop.permute.xlu0 %3455
      %3457 = vrot.lane.b32.xlu0 %v2779, 20
      %v3458 = vpop.permute.xlu0 %3457
      %3459 = vrot.lane.b32.xlu0 %v2780, 20
      %v3460 = vpop.permute.xlu0 %3459
      %3461 = vrot.lane.b32.xlu0 %v2781, 20
      %v3462 = vpop.permute.xlu0 %3461
      %3463 = vrot.lane.b32.xlu0 %v2782, 20
      %v3464 = vpop.permute.xlu0 %3463
      %3465 = vrot.lane.b32.xlu0 %v2783, 20
      %v3466 = vpop.permute.xlu0 %3465
      %3467 = vrot.lane.b32.xlu0 %v2784, 20
      %v3468 = vpop.permute.xlu0 %3467
      %3469 = vrot.lane.b32.xlu0 %v2785, 20
      %v3470 = vpop.permute.xlu0 %3469
      %3471 = vrot.lane.b32.xlu0 %v2786, 20
      %v3472 = vpop.permute.xlu0 %3471
      %3473 = vrot.lane.b32.xlu0 %v2787, 20
      %v3474 = vpop.permute.xlu0 %3473
      %3475 = vrot.lane.b32.xlu0 %v2788, 20
      %v3476 = vpop.permute.xlu0 %3475
      %3477 = vrot.lane.b32.xlu0 %v2789, 20
      %v3478 = vpop.permute.xlu0 %3477
      %3479 = vrot.lane.b32.xlu0 %v2790, 20
      %v3480 = vpop.permute.xlu0 %3479
      %3481 = vrot.lane.b32.xlu0 %v2791, 20
      %v3482 = vpop.permute.xlu0 %3481
      %3483 = vrot.lane.b32.xlu0 %v2792, 20
      %v3484 = vpop.permute.xlu0 %3483
      %3485 = vrot.lane.b32.xlu0 %v2793, 20
      %v3486 = vpop.permute.xlu0 %3485
      %3487 = vrot.lane.b32.xlu0 %v2794, 20
      %v3488 = vpop.permute.xlu0 %3487
      %3489 = vrot.lane.b32.xlu0 %v2795, 20
      %v3490 = vpop.permute.xlu0 %3489
      %3491 = vrot.lane.b32.xlu0 %v2796, 20
      %v3492 = vpop.permute.xlu0 %3491
      %3493 = vrot.lane.b32.xlu0 %v2797, 20
      %v3494 = vpop.permute.xlu0 %3493
      %3495 = vrot.lane.b32.xlu0 %v2798, 20
      %v3496 = vpop.permute.xlu0 %3495
      %3497 = vrot.lane.b32.xlu0 %v2799, 20
      %v3498 = vpop.permute.xlu0 %3497
      %3499 = vrot.lane.b32.xlu0 %v2800, 20
      %v3500 = vpop.permute.xlu0 %3499
      %3501 = vrot.lane.b32.xlu0 %v2801, 20
      %v3502 = vpop.permute.xlu0 %3501
      %3503 = vrot.lane.b32.xlu0 %v2802, 20
      %v3504 = vpop.permute.xlu0 %3503
      %3505 = vrot.lane.b32.xlu0 %v2803, 20
      %v3506 = vpop.permute.xlu0 %3505
      %3507 = vrot.lane.b32.xlu0 %v2804, 20
      %v3508 = vpop.permute.xlu0 %3507
      %3573 = vrot.lane.b32.xlu0 %v2805, 24
      %v3574 = vpop.permute.xlu0 %3573
      %3575 = vrot.lane.b32.xlu0 %v2806, 24
      %v3576 = vpop.permute.xlu0 %3575
      %3577 = vrot.lane.b32.xlu0 %v2807, 24
      %v3578 = vpop.permute.xlu0 %3577
      %3579 = vrot.lane.b32.xlu0 %v2808, 24
      %v3580 = vpop.permute.xlu0 %3579
      %3581 = vrot.lane.b32.xlu0 %v2809, 24
      %v3582 = vpop.permute.xlu0 %3581
      %3583 = vrot.lane.b32.xlu0 %v2810, 24
      %v3584 = vpop.permute.xlu0 %3583
      %3585 = vrot.lane.b32.xlu0 %v2811, 24
      %v3586 = vpop.permute.xlu0 %3585
      %3587 = vrot.lane.b32.xlu0 %v2812, 24
      %v3588 = vpop.permute.xlu0 %3587
      %3589 = vrot.lane.b32.xlu0 %v2813, 24
      %v3590 = vpop.permute.xlu0 %3589
      %3591 = vrot.lane.b32.xlu0 %v2814, 24
      %v3592 = vpop.permute.xlu0 %3591
      %3593 = vrot.lane.b32.xlu0 %v2815, 24
      %v3594 = vpop.permute.xlu0 %3593
      %3595 = vrot.lane.b32.xlu0 %v2816, 24
      %v3596 = vpop.permute.xlu0 %3595
      %3597 = vrot.lane.b32.xlu0 %v2817, 24
      %v3598 = vpop.permute.xlu0 %3597
      %3599 = vrot.lane.b32.xlu0 %v2818, 24
      %v3600 = vpop.permute.xlu0 %3599
      %3601 = vrot.lane.b32.xlu0 %v2819, 24
      %v3602 = vpop.permute.xlu0 %3601
      %3603 = vrot.lane.b32.xlu0 %v2820, 24
      %v3604 = vpop.permute.xlu0 %3603
      %3605 = vrot.lane.b32.xlu0 %v2821, 24
      %v3606 = vpop.permute.xlu0 %3605
      %3607 = vrot.lane.b32.xlu0 %v2822, 24
      %v3608 = vpop.permute.xlu0 %3607
      %3609 = vrot.lane.b32.xlu0 %v2823, 24
      %v3610 = vpop.permute.xlu0 %3609
      %3611 = vrot.lane.b32.xlu0 %v2824, 24
      %v3612 = vpop.permute.xlu0 %3611
      %3613 = vrot.lane.b32.xlu0 %v2825, 24
      %v3614 = vpop.permute.xlu0 %3613
      %3615 = vrot.lane.b32.xlu0 %v2826, 24
      %v3616 = vpop.permute.xlu0 %3615
      %3617 = vrot.lane.b32.xlu0 %v2827, 24
      %v3618 = vpop.permute.xlu0 %3617
      %3619 = vrot.lane.b32.xlu0 %v2828, 24
      %v3620 = vpop.permute.xlu0 %3619
      %3621 = vrot.lane.b32.xlu0 %v2829, 24
      %v3622 = vpop.permute.xlu0 %3621
      %3623 = vrot.lane.b32.xlu0 %v2830, 24
      %v3624 = vpop.permute.xlu0 %3623
      %3625 = vrot.lane.b32.xlu0 %v2831, 24
      %v3626 = vpop.permute.xlu0 %3625
      %3627 = vrot.lane.b32.xlu0 %v2832, 24
      %v3628 = vpop.permute.xlu0 %3627
      %3629 = vrot.lane.b32.xlu0 %v2833, 24
      %v3630 = vpop.permute.xlu0 %3629
      %3631 = vrot.lane.b32.xlu0 %v2834, 24
      %v3632 = vpop.permute.xlu0 %3631
      %3633 = vrot.lane.b32.xlu0 %v2835, 24
      %v3634 = vpop.permute.xlu0 %3633
      %3635 = vrot.lane.b32.xlu0 %v2836, 24
      %v3636 = vpop.permute.xlu0 %3635
      %3701 = vrot.lane.b32.xlu0 %v2837, 28
      %v3702 = vpop.permute.xlu0 %3701
      %3703 = vrot.lane.b32.xlu0 %v2838, 28
      %v3704 = vpop.permute.xlu0 %3703
      %3705 = vrot.lane.b32.xlu0 %v2839, 28
      %v3706 = vpop.permute.xlu0 %3705
      %3707 = vrot.lane.b32.xlu0 %v2840, 28
      %v3708 = vpop.permute.xlu0 %3707
      %3709 = vrot.lane.b32.xlu0 %v2841, 28
      %v3710 = vpop.permute.xlu0 %3709
      %3711 = vrot.lane.b32.xlu0 %v2842, 28
      %v3712 = vpop.permute.xlu0 %3711
      %3713 = vrot.lane.b32.xlu0 %v2843, 28
      %v3714 = vpop.permute.xlu0 %3713
      %3715 = vrot.lane.b32.xlu0 %v2844, 28
      %v3716 = vpop.permute.xlu0 %3715
      %3717 = vrot.lane.b32.xlu0 %v2845, 28
      %v3718 = vpop.permute.xlu0 %3717
      %3719 = vrot.lane.b32.xlu0 %v2846, 28
      %v3720 = vpop.permute.xlu0 %3719
      %3721 = vrot.lane.b32.xlu0 %v2847, 28
      %v3722 = vpop.permute.xlu0 %3721
      %3723 = vrot.lane.b32.xlu0 %v2848, 28
      %v3724 = vpop.permute.xlu0 %3723
      %3725 = vrot.lane.b32.xlu0 %v2849, 28
      %v3726 = vpop.permute.xlu0 %3725
      %3727 = vrot.lane.b32.xlu0 %v2850, 28
      %v3728 = vpop.permute.xlu0 %3727
      %3729 = vrot.lane.b32.xlu0 %v2851, 28
      %v3730 = vpop.permute.xlu0 %3729
      %3731 = vrot.lane.b32.xlu0 %v2852, 28
      %v3732 = vpop.permute.xlu0 %3731
      %3733 = vrot.lane.b32.xlu0 %v2853, 28
      %v3734 = vpop.permute.xlu0 %3733
      %3735 = vrot.lane.b32.xlu0 %v2854, 28
      %v3736 = vpop.permute.xlu0 %3735
      %3737 = vrot.lane.b32.xlu0 %v2855, 28
      %v3738 = vpop.permute.xlu0 %3737
      %3739 = vrot.lane.b32.xlu0 %v2856, 28
      %v3740 = vpop.permute.xlu0 %3739
      %3741 = vrot.lane.b32.xlu0 %v2857, 28
      %v3742 = vpop.permute.xlu0 %3741
      %3743 = vrot.lane.b32.xlu0 %v2858, 28
      %v3744 = vpop.permute.xlu0 %3743
      %3745 = vrot.lane.b32.xlu0 %v2859, 28
      %v3746 = vpop.permute.xlu0 %3745
      %3747 = vrot.lane.b32.xlu0 %v2860, 28
      %v3748 = vpop.permute.xlu0 %3747
      %3749 = vrot.lane.b32.xlu0 %v2861, 28
      %v3750 = vpop.permute.xlu0 %3749
      %3751 = vrot.lane.b32.xlu0 %v2862, 28
      %v3752 = vpop.permute.xlu0 %3751
      %3753 = vrot.lane.b32.xlu0 %v2863, 28
      %v3754 = vpop.permute.xlu0 %3753
      %3755 = vrot.lane.b32.xlu0 %v2864, 28
      %v3756 = vpop.permute.xlu0 %3755
      %3757 = vrot.lane.b32.xlu0 %v2865, 28
      %v3758 = vpop.permute.xlu0 %3757
      %3759 = vrot.lane.b32.xlu0 %v2866, 28
      %v3760 = vpop.permute.xlu0 %3759
      %3761 = vrot.lane.b32.xlu0 %v2867, 28
      %v3762 = vpop.permute.xlu0 %3761
      %3763 = vrot.lane.b32.xlu0 %v2868, 28
      %v3764 = vpop.permute.xlu0 %3763
      %3829 = vrot.lane.b32.xlu0 %v2869, 32
      %v3830 = vpop.permute.xlu0 %3829
      %3831 = vrot.lane.b32.xlu0 %v2870, 32
      %v3832 = vpop.permute.xlu0 %3831
      %3833 = vrot.lane.b32.xlu0 %v2871, 32
      %v3834 = vpop.permute.xlu0 %3833
      %3835 = vrot.lane.b32.xlu0 %v2872, 32
      %v3836 = vpop.permute.xlu0 %3835
      %3837 = vrot.lane.b32.xlu0 %v2873, 32
      %v3838 = vpop.permute.xlu0 %3837
      %3839 = vrot.lane.b32.xlu0 %v2874, 32
      %v3840 = vpop.permute.xlu0 %3839
      %3841 = vrot.lane.b32.xlu0 %v2875, 32
      %v3842 = vpop.permute.xlu0 %3841
      %3843 = vrot.lane.b32.xlu0 %v2876, 32
      %v3844 = vpop.permute.xlu0 %3843
      %3845 = vrot.lane.b32.xlu0 %v2877, 32
      %v3846 = vpop.permute.xlu0 %3845
      %3847 = vrot.lane.b32.xlu0 %v2878, 32
      %v3848 = vpop.permute.xlu0 %3847
      %3849 = vrot.lane.b32.xlu0 %v2879, 32
      %v3850 = vpop.permute.xlu0 %3849
      %3851 = vrot.lane.b32.xlu0 %v2880, 32
      %v3852 = vpop.permute.xlu0 %3851
      %3853 = vrot.lane.b32.xlu0 %v2881, 32
      %v3854 = vpop.permute.xlu0 %3853
      %3855 = vrot.lane.b32.xlu0 %v2882, 32
      %v3856 = vpop.permute.xlu0 %3855
      %3857 = vrot.lane.b32.xlu0 %v2883, 32
      %v3858 = vpop.permute.xlu0 %3857
      %3859 = vrot.lane.b32.xlu0 %v2884, 32
      %v3860 = vpop.permute.xlu0 %3859
      %3861 = vrot.lane.b32.xlu0 %v2885, 32
      %v3862 = vpop.permute.xlu0 %3861
      %3863 = vrot.lane.b32.xlu0 %v2886, 32
      %v3864 = vpop.permute.xlu0 %3863
      %3865 = vrot.lane.b32.xlu0 %v2887, 32
      %v3866 = vpop.permute.xlu0 %3865
      %3867 = vrot.lane.b32.xlu0 %v2888, 32
      %v3868 = vpop.permute.xlu0 %3867
      %3869 = vrot.lane.b32.xlu0 %v2889, 32
      %v3870 = vpop.permute.xlu0 %3869
      %3871 = vrot.lane.b32.xlu0 %v2890, 32
      %v3872 = vpop.permute.xlu0 %3871
      %3873 = vrot.lane.b32.xlu0 %v2891, 32
      %v3874 = vpop.permute.xlu0 %3873
      %3875 = vrot.lane.b32.xlu0 %v2892, 32
      %v3876 = vpop.permute.xlu0 %3875
      %3877 = vrot.lane.b32.xlu0 %v2893, 32
      %v3878 = vpop.permute.xlu0 %3877
      %3879 = vrot.lane.b32.xlu0 %v2894, 32
      %v3880 = vpop.permute.xlu0 %3879
      %3881 = vrot.lane.b32.xlu0 %v2895, 32
      %v3882 = vpop.permute.xlu0 %3881
      %3883 = vrot.lane.b32.xlu0 %v2896, 32
      %v3884 = vpop.permute.xlu0 %3883
      %3885 = vrot.lane.b32.xlu0 %v2897, 32
      %v3886 = vpop.permute.xlu0 %3885
      %3887 = vrot.lane.b32.xlu0 %v2898, 32
      %v3888 = vpop.permute.xlu0 %3887
      %3889 = vrot.lane.b32.xlu0 %v2899, 32
      %v3890 = vpop.permute.xlu0 %3889
      %3891 = vrot.lane.b32.xlu0 %v2900, 32
      %v3892 = vpop.permute.xlu0 %3891
      %v3925 = vsel %vm204, %v2613, %v2934
      %v3926 = vsel %vm204, %v2614, %v2936
      %v3927 = vsel %vm204, %v2615, %v2938
      %v3928 = vsel %vm204, %v2616, %v2940
      %v3929 = vsel %vm204, %v2617, %v2942
      %v3930 = vsel %vm204, %v2618, %v2944
      %v3931 = vsel %vm204, %v2619, %v2946
      %v3932 = vsel %vm204, %v2620, %v2948
      %v3933 = vsel %vm204, %v2621, %v2950
      %v3934 = vsel %vm204, %v2622, %v2952
      %v3935 = vsel %vm204, %v2623, %v2954
      %v3936 = vsel %vm204, %v2624, %v2956
      %v3937 = vsel %vm204, %v2625, %v2958
      %v3938 = vsel %vm204, %v2626, %v2960
      %v3939 = vsel %vm204, %v2627, %v2962
      %v3940 = vsel %vm204, %v2628, %v2964
      %v3941 = vsel %vm204, %v2629, %v2966
      %v3942 = vsel %vm204, %v2630, %v2968
      %v3943 = vsel %vm204, %v2631, %v2970
      %v3944 = vsel %vm204, %v2632, %v2972
      %v3945 = vsel %vm204, %v2633, %v2974
      %v3946 = vsel %vm204, %v2634, %v2976
      %v3947 = vsel %vm204, %v2635, %v2978
      %v3948 = vsel %vm204, %v2636, %v2980
      %v3949 = vsel %vm204, %v2637, %v2982
      %v3950 = vsel %vm204, %v2638, %v2984
      %v3951 = vsel %vm204, %v2639, %v2986
      %v3952 = vsel %vm204, %v2640, %v2988
      %v3953 = vsel %vm204, %v2641, %v2990
      %v3954 = vsel %vm204, %v2642, %v2992
      %v3955 = vsel %vm204, %v2643, %v2994
      %v3956 = vsel %vm204, %v2644, %v2996
      %v3957 = vsel %vm1660, %v3925, %v3062
      %v3958 = vsel %vm1660, %v3926, %v3064
      %v3959 = vsel %vm1660, %v3927, %v3066
      %v3960 = vsel %vm1660, %v3928, %v3068
      %v3961 = vsel %vm1660, %v3929, %v3070
      %v3962 = vsel %vm1660, %v3930, %v3072
      %v3963 = vsel %vm1660, %v3931, %v3074
      %v3964 = vsel %vm1660, %v3932, %v3076
      %v3965 = vsel %vm1660, %v3933, %v3078
      %v3966 = vsel %vm1660, %v3934, %v3080
      %v3967 = vsel %vm1660, %v3935, %v3082
      %v3968 = vsel %vm1660, %v3936, %v3084
      %v3969 = vsel %vm1660, %v3937, %v3086
      %v3970 = vsel %vm1660, %v3938, %v3088
      %v3971 = vsel %vm1660, %v3939, %v3090
      %v3972 = vsel %vm1660, %v3940, %v3092
      %v3973 = vsel %vm1660, %v3941, %v3094
      %v3974 = vsel %vm1660, %v3942, %v3096
      %v3975 = vsel %vm1660, %v3943, %v3098
      %v3976 = vsel %vm1660, %v3944, %v3100
      %v3977 = vsel %vm1660, %v3945, %v3102
      %v3978 = vsel %vm1660, %v3946, %v3104
      %v3979 = vsel %vm1660, %v3947, %v3106
      %v3980 = vsel %vm1660, %v3948, %v3108
      %v3981 = vsel %vm1660, %v3949, %v3110
      %v3982 = vsel %vm1660, %v3950, %v3112
      %v3983 = vsel %vm1660, %v3951, %v3114
      %v3984 = vsel %vm1660, %v3952, %v3116
      %v3985 = vsel %vm1660, %v3953, %v3118
      %v3986 = vsel %vm1660, %v3954, %v3120
      %v3987 = vsel %vm1660, %v3955, %v3122
      %v3988 = vsel %vm1660, %v3956, %v3124
      %v3989 = vsel %vm1693, %v3957, %v3190
      %v3990 = vsel %vm1693, %v3958, %v3192
      %v3991 = vsel %vm1693, %v3959, %v3194
      %v3992 = vsel %vm1693, %v3960, %v3196
      %v3993 = vsel %vm1693, %v3961, %v3198
      %v3994 = vsel %vm1693, %v3962, %v3200
      %v3995 = vsel %vm1693, %v3963, %v3202
      %v3996 = vsel %vm1693, %v3964, %v3204
      %v3997 = vsel %vm1693, %v3965, %v3206
      %v3998 = vsel %vm1693, %v3966, %v3208
      %v3999 = vsel %vm1693, %v3967, %v3210
      %v4000 = vsel %vm1693, %v3968, %v3212
      %v4001 = vsel %vm1693, %v3969, %v3214
      %v4002 = vsel %vm1693, %v3970, %v3216
      %v4003 = vsel %vm1693, %v3971, %v3218
      %v4004 = vsel %vm1693, %v3972, %v3220
      %v4005 = vsel %vm1693, %v3973, %v3222
      %v4006 = vsel %vm1693, %v3974, %v3224
      %v4007 = vsel %vm1693, %v3975, %v3226
      %v4008 = vsel %vm1693, %v3976, %v3228
      %v4009 = vsel %vm1693, %v3977, %v3230
      %v4010 = vsel %vm1693, %v3978, %v3232
      %v4011 = vsel %vm1693, %v3979, %v3234
      %v4012 = vsel %vm1693, %v3980, %v3236
      %v4013 = vsel %vm1693, %v3981, %v3238
      %v4014 = vsel %vm1693, %v3982, %v3240
      %v4015 = vsel %vm1693, %v3983, %v3242
      %v4016 = vsel %vm1693, %v3984, %v3244
      %v4017 = vsel %vm1693, %v3985, %v3246
      %v4018 = vsel %vm1693, %v3986, %v3248
      %v4019 = vsel %vm1693, %v3987, %v3250
      %v4020 = vsel %vm1693, %v3988, %v3252
      %v4021 = vsel %vm1726, %v3989, %v3318
      %v4022 = vsel %vm1726, %v3990, %v3320
      %v4023 = vsel %vm1726, %v3991, %v3322
      %v4024 = vsel %vm1726, %v3992, %v3324
      %v4025 = vsel %vm1726, %v3993, %v3326
      %v4026 = vsel %vm1726, %v3994, %v3328
      %v4027 = vsel %vm1726, %v3995, %v3330
      %v4028 = vsel %vm1726, %v3996, %v3332
      %v4029 = vsel %vm1726, %v3997, %v3334
      %v4030 = vsel %vm1726, %v3998, %v3336
      %v4031 = vsel %vm1726, %v3999, %v3338
      %v4032 = vsel %vm1726, %v4000, %v3340
      %v4033 = vsel %vm1726, %v4001, %v3342
      %v4034 = vsel %vm1726, %v4002, %v3344
      %v4035 = vsel %vm1726, %v4003, %v3346
      %v4036 = vsel %vm1726, %v4004, %v3348
      %v4037 = vsel %vm1726, %v4005, %v3350
      %v4038 = vsel %vm1726, %v4006, %v3352
      %v4039 = vsel %vm1726, %v4007, %v3354
      %v4040 = vsel %vm1726, %v4008, %v3356
      %v4041 = vsel %vm1726, %v4009, %v3358
      %v4042 = vsel %vm1726, %v4010, %v3360
      %v4043 = vsel %vm1726, %v4011, %v3362
      %v4044 = vsel %vm1726, %v4012, %v3364
      %v4045 = vsel %vm1726, %v4013, %v3366
      %v4046 = vsel %vm1726, %v4014, %v3368
      %v4047 = vsel %vm1726, %v4015, %v3370
      %v4048 = vsel %vm1726, %v4016, %v3372
      %v4049 = vsel %vm1726, %v4017, %v3374
      %v4050 = vsel %vm1726, %v4018, %v3376
      %v4051 = vsel %vm1726, %v4019, %v3378
      %v4052 = vsel %vm1726, %v4020, %v3380
      %v4053 = vsel %vm1759, %v4021, %v3446
      %v4054 = vsel %vm1759, %v4022, %v3448
      %v4055 = vsel %vm1759, %v4023, %v3450
      %v4056 = vsel %vm1759, %v4024, %v3452
      %v4057 = vsel %vm1759, %v4025, %v3454
      %v4058 = vsel %vm1759, %v4026, %v3456
      %v4059 = vsel %vm1759, %v4027, %v3458
      %v4060 = vsel %vm1759, %v4028, %v3460
      %v4061 = vsel %vm1759, %v4029, %v3462
      %v4062 = vsel %vm1759, %v4030, %v3464
      %v4063 = vsel %vm1759, %v4031, %v3466
      %v4064 = vsel %vm1759, %v4032, %v3468
      %v4065 = vsel %vm1759, %v4033, %v3470
      %v4066 = vsel %vm1759, %v4034, %v3472
      %v4067 = vsel %vm1759, %v4035, %v3474
      %v4068 = vsel %vm1759, %v4036, %v3476
      %v4069 = vsel %vm1759, %v4037, %v3478
      %v4070 = vsel %vm1759, %v4038, %v3480
      %v4071 = vsel %vm1759, %v4039, %v3482
      %v4072 = vsel %vm1759, %v4040, %v3484
      %v4073 = vsel %vm1759, %v4041, %v3486
      %v4074 = vsel %vm1759, %v4042, %v3488
      %v4075 = vsel %vm1759, %v4043, %v3490
      %v4076 = vsel %vm1759, %v4044, %v3492
      %v4077 = vsel %vm1759, %v4045, %v3494
      %v4078 = vsel %vm1759, %v4046, %v3496
      %v4079 = vsel %vm1759, %v4047, %v3498
      %v4080 = vsel %vm1759, %v4048, %v3500
      %v4081 = vsel %vm1759, %v4049, %v3502
      %v4082 = vsel %vm1759, %v4050, %v3504
      %v4083 = vsel %vm1759, %v4051, %v3506
      %v4084 = vsel %vm1759, %v4052, %v3508
      %v4085 = vsel %vm1792, %v4053, %v3574
      %v4086 = vsel %vm1792, %v4054, %v3576
      %v4087 = vsel %vm1792, %v4055, %v3578
      %v4088 = vsel %vm1792, %v4056, %v3580
      %v4089 = vsel %vm1792, %v4057, %v3582
      %v4090 = vsel %vm1792, %v4058, %v3584
      %v4091 = vsel %vm1792, %v4059, %v3586
      %v4092 = vsel %vm1792, %v4060, %v3588
      %v4093 = vsel %vm1792, %v4061, %v3590
      %v4094 = vsel %vm1792, %v4062, %v3592
      %v4095 = vsel %vm1792, %v4063, %v3594
      %v4096 = vsel %vm1792, %v4064, %v3596
      %v4097 = vsel %vm1792, %v4065, %v3598
      %v4098 = vsel %vm1792, %v4066, %v3600
      %v4099 = vsel %vm1792, %v4067, %v3602
      %v4100 = vsel %vm1792, %v4068, %v3604
      %v4101 = vsel %vm1792, %v4069, %v3606
      %v4102 = vsel %vm1792, %v4070, %v3608
      %v4103 = vsel %vm1792, %v4071, %v3610
      %v4104 = vsel %vm1792, %v4072, %v3612
      %v4105 = vsel %vm1792, %v4073, %v3614
      %v4106 = vsel %vm1792, %v4074, %v3616
      %v4107 = vsel %vm1792, %v4075, %v3618
      %v4108 = vsel %vm1792, %v4076, %v3620
      %v4109 = vsel %vm1792, %v4077, %v3622
      %v4110 = vsel %vm1792, %v4078, %v3624
      %v4111 = vsel %vm1792, %v4079, %v3626
      %v4112 = vsel %vm1792, %v4080, %v3628
      %v4113 = vsel %vm1792, %v4081, %v3630
      %v4114 = vsel %vm1792, %v4082, %v3632
      %v4115 = vsel %vm1792, %v4083, %v3634
      %v4116 = vsel %vm1792, %v4084, %v3636
      %v4117 = vsel %vm1825, %v4085, %v3702
      %v4118 = vsel %vm1825, %v4086, %v3704
      %v4119 = vsel %vm1825, %v4087, %v3706
      %v4120 = vsel %vm1825, %v4088, %v3708
      %v4121 = vsel %vm1825, %v4089, %v3710
      %v4122 = vsel %vm1825, %v4090, %v3712
      %v4123 = vsel %vm1825, %v4091, %v3714
      %v4124 = vsel %vm1825, %v4092, %v3716
      %v4125 = vsel %vm1825, %v4093, %v3718
      %v4126 = vsel %vm1825, %v4094, %v3720
      %v4127 = vsel %vm1825, %v4095, %v3722
      %v4128 = vsel %vm1825, %v4096, %v3724
      %v4129 = vsel %vm1825, %v4097, %v3726
      %v4130 = vsel %vm1825, %v4098, %v3728
      %v4131 = vsel %vm1825, %v4099, %v3730
      %v4132 = vsel %vm1825, %v4100, %v3732
      %v4133 = vsel %vm1825, %v4101, %v3734
      %v4134 = vsel %vm1825, %v4102, %v3736
      %v4135 = vsel %vm1825, %v4103, %v3738
      %v4136 = vsel %vm1825, %v4104, %v3740
      %v4137 = vsel %vm1825, %v4105, %v3742
      %v4138 = vsel %vm1825, %v4106, %v3744
      %v4139 = vsel %vm1825, %v4107, %v3746
      %v4140 = vsel %vm1825, %v4108, %v3748
      %v4141 = vsel %vm1825, %v4109, %v3750
      %v4142 = vsel %vm1825, %v4110, %v3752
      %v4143 = vsel %vm1825, %v4111, %v3754
      %v4144 = vsel %vm1825, %v4112, %v3756
      %v4145 = vsel %vm1825, %v4113, %v3758
      %v4146 = vsel %vm1825, %v4114, %v3760
      %v4147 = vsel %vm1825, %v4115, %v3762
      %v4148 = vsel %vm1825, %v4116, %v3764
      %v4149 = vsel %vm1858, %v4117, %v3830
      %v4150 = vsel %vm1858, %v4118, %v3832
      %v4151 = vsel %vm1858, %v4119, %v3834
      %v4152 = vsel %vm1858, %v4120, %v3836
      %v4153 = vsel %vm1858, %v4121, %v3838
      %v4154 = vsel %vm1858, %v4122, %v3840
      %v4155 = vsel %vm1858, %v4123, %v3842
      %v4156 = vsel %vm1858, %v4124, %v3844
      %v4157 = vsel %vm1858, %v4125, %v3846
      %v4158 = vsel %vm1858, %v4126, %v3848
      %v4159 = vsel %vm1858, %v4127, %v3850
      %v4160 = vsel %vm1858, %v4128, %v3852
      %v4161 = vsel %vm1858, %v4129, %v3854
      %v4162 = vsel %vm1858, %v4130, %v3856
      %v4163 = vsel %vm1858, %v4131, %v3858
      %v4164 = vsel %vm1858, %v4132, %v3860
      %v4165 = vsel %vm1858, %v4133, %v3862
      %v4166 = vsel %vm1858, %v4134, %v3864
      %v4167 = vsel %vm1858, %v4135, %v3866
      %v4168 = vsel %vm1858, %v4136, %v3868
      %v4169 = vsel %vm1858, %v4137, %v3870
      %v4170 = vsel %vm1858, %v4138, %v3872
      %v4171 = vsel %vm1858, %v4139, %v3874
      %v4172 = vsel %vm1858, %v4140, %v3876
      %v4173 = vsel %vm1858, %v4141, %v3878
      %v4174 = vsel %vm1858, %v4142, %v3880
      %v4175 = vsel %vm1858, %v4143, %v3882
      %v4176 = vsel %vm1858, %v4144, %v3884
      %v4177 = vsel %vm1858, %v4145, %v3886
      %v4178 = vsel %vm1858, %v4146, %v3888
      %v4179 = vsel %vm1858, %v4147, %v3890
      %v4180 = vsel %vm1858, %v4148, %v3892
      %v4181 = vld [vmem:[%s2] sm:$0xff]
      %v4182 = vld [vmem:[%s2 + $0x8] sm:$0xff]
      %v4183 = vld [vmem:[%s2 + $0x10] sm:$0xff]
      %v4184 = vld [vmem:[%s2 + $0x18] sm:$0xff]
      %v4185 = vld [vmem:[%s2 + $0x20] sm:$0xf]
      %v4187 = vsel %vm1896, %v4149, 0
      %v4190 = vsel %vm1896, %v4150, 0
      %v4193 = vsel %vm1896, %v4151, 0
      %v4196 = vsel %vm1896, %v4152, 0
      %v4199 = vsel %vm1896, %v4153, 0
      %v4202 = vsel %vm1896, %v4154, 0
      %v4205 = vsel %vm1896, %v4155, 0
      %v4208 = vsel %vm1896, %v4156, 0
      %v4211 = vsel %vm1896, %v4157, 0
      %v4214 = vsel %vm1896, %v4158, 0
      %v4217 = vsel %vm1896, %v4159, 0
      %v4220 = vsel %vm1896, %v4160, 0
      %v4223 = vsel %vm1896, %v4161, 0
      %v4226 = vsel %vm1896, %v4162, 0
      %v4229 = vsel %vm1896, %v4163, 0
      %v4232 = vsel %vm1896, %v4164, 0
      %v4235 = vsel %vm1896, %v4165, 0
      %v4238 = vsel %vm1896, %v4166, 0
      %v4241 = vsel %vm1896, %v4167, 0
      %v4244 = vsel %vm1896, %v4168, 0
      %v4247 = vsel %vm1896, %v4169, 0
      %v4250 = vsel %vm1896, %v4170, 0
      %v4253 = vsel %vm1896, %v4171, 0
      %v4256 = vsel %vm1896, %v4172, 0
      %v4259 = vsel %vm1896, %v4173, 0
      %v4262 = vsel %vm1896, %v4174, 0
      %v4265 = vsel %vm1896, %v4175, 0
      %v4268 = vsel %vm1896, %v4176, 0
      %v4271 = vsel %vm1896, %v4177, 0
      %v4274 = vsel %vm1896, %v4178, 0
      %v4277 = vsel %vm1896, %v4179, 0
      %v4280 = vsel %vm1896, %v4180, 0
      %v4283 = vsel %vm1993, %v4185, 0
      %4285 = vmatprep.subr.mxu0 0.0
      %4286 = vmatpush1.msra.mxu0 %v4181
      %4287 = vmatprep.subr.mxu0 0.0
      %4288 = vmatpush1.msra.mxu0 %v4182
      %4289 = vmatprep.subr.mxu0 0.0
      %4290 = vmatpush1.msra.mxu0 %v4183
      %4291 = vmatprep.subr.mxu0 0.0
      %4292 = vmatpush1.msra.mxu0 %v4184
      %4293 = vmatprep.subr.mxu0 0.0
      %4294 = vmatpush1.msra.mxu0 %v4283
      %4295 = vmatprep.subr.mxu0 0.0
      %4296 = vmatpush1.msra.mxu0 0.0
      %4297 = vmatprep.subr.mxu0 0.0
      %4298 = vmatpush1.msra.mxu0 0.0
      %4299 = vmatprep.subr.mxu0 0.0
      %4300 = vmatpush1.msra.mxu0 0.0
      %4301 = vmatprep.subr.mxu0 0.0
      %4302 = vmatpush1.msra.mxu0 0.0
      %4303 = vmatprep.subr.mxu0 0.0
      %4304 = vmatpush1.msra.mxu0 0.0
      %4305 = vmatprep.subr.mxu0 0.0
      %4306 = vmatpush1.msra.mxu0 0.0
      %4307 = vmatprep.subr.mxu0 0.0
      %4308 = vmatpush1.msra.mxu0 0.0
      %4309 = vmatprep.subr.mxu0 0.0
      %4310 = vmatpush1.msra.mxu0 0.0
      %4311 = vmatprep.subr.mxu0 0.0
      %4312 = vmatpush1.msra.mxu0 0.0
      %4313 = vmatprep.subr.mxu0 0.0
      %4314 = vmatpush1.msra.mxu0 0.0
      %4315 = vmatprep.subr.mxu0 0.0
      %4316 = vmatpush1.msra.mxu0 0.0
      %4317 = vmatprep.subr.mxu0 0.0
      %4318 = vmatpush1.msra.mxu0 0.0
      %4319 = vmatprep.subr.mxu0 0.0
      %4320 = vmatpush1.msra.mxu0 0.0
      %4321 = vmatprep.subr.mxu0 0.0
      %4322 = vmatpush1.msra.mxu0 0.0
      %4323 = vmatprep.subr.mxu0 0.0
      %4324 = vmatpush1.msra.mxu0 0.0
      %4325 = vmatprep.subr.mxu0 0.0
      %4326 = vmatpush1.msra.mxu0 0.0
      %4327 = vmatprep.subr.mxu0 0.0
      %4328 = vmatpush1.msra.mxu0 0.0
      %4329 = vmatprep.subr.mxu0 0.0
      %4330 = vmatpush1.msra.mxu0 0.0
      %4331 = vmatprep.subr.mxu0 0.0
      %4332 = vmatpush1.msra.mxu0 0.0
      %4333 = vmatprep.subr.mxu0 0.0
      %4334 = vmatpush1.msra.mxu0 0.0
      %4335 = vmatprep.subr.mxu0 0.0
      %4336 = vmatpush1.msra.mxu0 0.0
      %4337 = vmatprep.subr.mxu0 0.0
      %4338 = vmatpush1.msra.mxu0 0.0
      %4339 = vmatprep.subr.mxu0 0.0
      %4340 = vmatpush1.msra.mxu0 0.0
      %4341 = vmatprep.subr.mxu0 0.0
      %4342 = vmatpush1.msra.mxu0 0.0
      %4343 = vmatprep.subr.mxu0 0.0
      %4344 = vmatpush1.msra.mxu0 0.0
      %4345 = vmatprep.subr.mxu0 0.0
      %4346 = vmatpush1.msra.mxu0 0.0
      %4347 = vmatprep.subr.mxu0 0.0
      %4348 = vmatpush1.msra.mxu0 0.0
      %4349 = vmatprep.mubr.f32.mxu0 0.0
      %4350 = vmatmul.mubr.f32.gmra.mrb[0].mxu0 %v4187
      %v4351 = vpop.f32.mrb[0].mxu0
      %v4352 = vadd.f32 0.0, %v4351
      %v4353 = vpop.f32.mrb[0].mxu0
      %4354 = vmatprep.mubr.f32.mxu0 0.0
      %4355 = vmatmul.mubr.f32.gmra.mrb[0].mxu0 %v4190
      %v4356 = vpop.f32.mrb[0].mxu0
      %v4357 = vadd.f32 0.0, %v4356
      %v4358 = vpop.f32.mrb[0].mxu0
      %4359 = vmatprep.mubr.f32.mxu0 0.0
      %4360 = vmatmul.mubr.f32.gmra.mrb[0].mxu0 %v4193
      %v4361 = vpop.f32.mrb[0].mxu0
      %v4362 = vadd.f32 0.0, %v4361
      %v4363 = vpop.f32.mrb[0].mxu0
      %4364 = vmatprep.mubr.f32.mxu0 0.0
      %4365 = vmatmul.mubr.f32.gmra.mrb[0].mxu0 %v4196
      %v4366 = vpop.f32.mrb[0].mxu0
      %v4367 = vadd.f32 0.0, %v4366
      %v4368 = vpop.f32.mrb[0].mxu0
      %4369 = vmatprep.mubr.f32.mxu0 0.0
      %4370 = vmatmul.mubr.f32.gmra.mrb[0].mxu0 %v4199
      %v4371 = vpop.f32.mrb[0].mxu0
      %v4372 = vadd.f32 0.0, %v4371
      %v4373 = vpop.f32.mrb[0].mxu0
      %4374 = vmatprep.mubr.f32.mxu0 0.0
      %4375 = vmatmul.mubr.f32.gmra.mrb[0].mxu0 %v4202
      %v4376 = vpop.f32.mrb[0].mxu0
      %v4377 = vadd.f32 0.0, %v4376
      %v4378 = vpop.f32.mrb[0].mxu0
      %4379 = vmatprep.mubr.f32.mxu0 0.0
      %4380 = vmatmul.mubr.f32.gmra.mrb[0].mxu0 %v4205
      %v4381 = vpop.f32.mrb[0].mxu0
      %v4382 = vadd.f32 0.0, %v4381
      %v4383 = vpop.f32.mrb[0].mxu0
      %4384 = vmatprep.mubr.f32.mxu0 0.0
      %4385 = vmatmul.mubr.f32.gmra.mrb[0].mxu0 %v4208
      %v4386 = vpop.f32.mrb[0].mxu0
      %v4387 = vadd.f32 0.0, %v4386
      %v4388 = vpop.f32.mrb[0].mxu0
      %4389 = vmatprep.mubr.f32.mxu0 0.0
      %4390 = vmatmul.mubr.f32.gmra.mrb[0].mxu0 %v4211
      %v4391 = vpop.f32.mrb[0].mxu0
      %v4392 = vadd.f32 0.0, %v4391
      %v4393 = vpop.f32.mrb[0].mxu0
      %4394 = vmatprep.mubr.f32.mxu0 0.0
      %4395 = vmatmul.mubr.f32.gmra.mrb[0].mxu0 %v4214
      %v4396 = vpop.f32.mrb[0].mxu0
      %v4397 = vadd.f32 0.0, %v4396
      %v4398 = vpop.f32.mrb[0].mxu0
      %4399 = vmatprep.mubr.f32.mxu0 0.0
      %4400 = vmatmul.mubr.f32.gmra.mrb[0].mxu0 %v4217
      %v4401 = vpop.f32.mrb[0].mxu0
      %v4402 = vadd.f32 0.0, %v4401
      %v4403 = vpop.f32.mrb[0].mxu0
      %4404 = vmatprep.mubr.f32.mxu0 0.0
      %4405 = vmatmul.mubr.f32.gmra.mrb[0].mxu0 %v4220
      %v4406 = vpop.f32.mrb[0].mxu0
      %v4407 = vadd.f32 0.0, %v4406
      %v4408 = vpop.f32.mrb[0].mxu0
      %4409 = vmatprep.mubr.f32.mxu0 0.0
      %4410 = vmatmul.mubr.f32.gmra.mrb[0].mxu0 %v4223
      %v4411 = vpop.f32.mrb[0].mxu0
      %v4412 = vadd.f32 0.0, %v4411
      %v4413 = vpop.f32.mrb[0].mxu0
      %4414 = vmatprep.mubr.f32.mxu0 0.0
      %4415 = vmatmul.mubr.f32.gmra.mrb[0].mxu0 %v4226
      %v4416 = vpop.f32.mrb[0].mxu0
      %v4417 = vadd.f32 0.0, %v4416
      %v4418 = vpop.f32.mrb[0].mxu0
      %4419 = vmatprep.mubr.f32.mxu0 0.0
      %4420 = vmatmul.mubr.f32.gmra.mrb[0].mxu0 %v4229
      %v4421 = vpop.f32.mrb[0].mxu0
      %v4422 = vadd.f32 0.0, %v4421
      %v4423 = vpop.f32.mrb[0].mxu0
      %4424 = vmatprep.mubr.f32.mxu0 0.0
      %4425 = vmatmul.mubr.f32.gmra.mrb[0].mxu0 %v4232
      %v4426 = vpop.f32.mrb[0].mxu0
      %v4427 = vadd.f32 0.0, %v4426
      %v4428 = vpop.f32.mrb[0].mxu0
      %4429 = vmatprep.mubr.f32.mxu0 0.0
      %4430 = vmatmul.mubr.f32.gmra.mrb[0].mxu0 %v4235
      %v4431 = vpop.f32.mrb[0].mxu0
      %v4432 = vadd.f32 0.0, %v4431
      %v4433 = vpop.f32.mrb[0].mxu0
      %4434 = vmatprep.mubr.f32.mxu0 0.0
      %4435 = vmatmul.mubr.f32.gmra.mrb[0].mxu0 %v4238
      %v4436 = vpop.f32.mrb[0].mxu0
      %v4437 = vadd.f32 0.0, %v4436
      %v4438 = vpop.f32.mrb[0].mxu0
      %4439 = vmatprep.mubr.f32.mxu0 0.0
      %4440 = vmatmul.mubr.f32.gmra.mrb[0].mxu0 %v4241
      %v4441 = vpop.f32.mrb[0].mxu0
      %v4442 = vadd.f32 0.0, %v4441
      %v4443 = vpop.f32.mrb[0].mxu0
      %4444 = vmatprep.mubr.f32.mxu0 0.0
      %4445 = vmatmul.mubr.f32.gmra.mrb[0].mxu0 %v4244
      %v4446 = vpop.f32.mrb[0].mxu0
      %v4447 = vadd.f32 0.0, %v4446
      %v4448 = vpop.f32.mrb[0].mxu0
      %4449 = vmatprep.mubr.f32.mxu0 0.0
      %4450 = vmatmul.mubr.f32.gmra.mrb[0].mxu0 %v4247
      %v4451 = vpop.f32.mrb[0].mxu0
      %v4452 = vadd.f32 0.0, %v4451
      %v4453 = vpop.f32.mrb[0].mxu0
      %4454 = vmatprep.mubr.f32.mxu0 0.0
      %4455 = vmatmul.mubr.f32.gmra.mrb[0].mxu0 %v4250
      %v4456 = vpop.f32.mrb[0].mxu0
      %v4457 = vadd.f32 0.0, %v4456
      %v4458 = vpop.f32.mrb[0].mxu0
      %4459 = vmatprep.mubr.f32.mxu0 0.0
      %4460 = vmatmul.mubr.f32.gmra.mrb[0].mxu0 %v4253
      %v4461 = vpop.f32.mrb[0].mxu0
      %v4462 = vadd.f32 0.0, %v4461
      %v4463 = vpop.f32.mrb[0].mxu0
      %4464 = vmatprep.mubr.f32.mxu0 0.0
      %4465 = vmatmul.mubr.f32.gmra.mrb[0].mxu0 %v4256
      %v4466 = vpop.f32.mrb[0].mxu0
      %v4467 = vadd.f32 0.0, %v4466
      %v4468 = vpop.f32.mrb[0].mxu0
      %4469 = vmatprep.mubr.f32.mxu0 0.0
      %4470 = vmatmul.mubr.f32.gmra.mrb[0].mxu0 %v4259
      %v4471 = vpop.f32.mrb[0].mxu0
      %v4472 = vadd.f32 0.0, %v4471
      %v4473 = vpop.f32.mrb[0].mxu0
      %4474 = vmatprep.mubr.f32.mxu0 0.0
      %4475 = vmatmul.mubr.f32.gmra.mrb[0].mxu0 %v4262
      %v4476 = vpop.f32.mrb[0].mxu0
      %v4477 = vadd.f32 0.0, %v4476
      %v4478 = vpop.f32.mrb[0].mxu0
      %4479 = vmatprep.mubr.f32.mxu0 0.0
      %4480 = vmatmul.mubr.f32.gmra.mrb[0].mxu0 %v4265
      %v4481 = vpop.f32.mrb[0].mxu0
      %v4482 = vadd.f32 0.0, %v4481
      %v4483 = vpop.f32.mrb[0].mxu0
      %4484 = vmatprep.mubr.f32.mxu0 0.0
      %4485 = vmatmul.mubr.f32.gmra.mrb[0].mxu0 %v4268
      %v4486 = vpop.f32.mrb[0].mxu0
      %v4487 = vadd.f32 0.0, %v4486
      %v4488 = vpop.f32.mrb[0].mxu0
      %4489 = vmatprep.mubr.f32.mxu0 0.0
      %4490 = vmatmul.mubr.f32.gmra.mrb[0].mxu0 %v4271
      %v4491 = vpop.f32.mrb[0].mxu0
      %v4492 = vadd.f32 0.0, %v4491
      %v4493 = vpop.f32.mrb[0].mxu0
      %4494 = vmatprep.mubr.f32.mxu0 0.0
      %4495 = vmatmul.mubr.f32.gmra.mrb[0].mxu0 %v4274
      %v4496 = vpop.f32.mrb[0].mxu0
      %v4497 = vadd.f32 0.0, %v4496
      %v4498 = vpop.f32.mrb[0].mxu0
      %4499 = vmatprep.mubr.f32.mxu0 0.0
      %4500 = vmatmul.mubr.f32.gmra.mrb[0].mxu0 %v4277
      %v4501 = vpop.f32.mrb[0].mxu0
      %v4502 = vadd.f32 0.0, %v4501
      %v4503 = vpop.f32.mrb[0].mxu0
      %4504 = vmatprep.mubr.f32.mxu0 0.0
      %4505 = vmatmul.mubr.f32.gmra.mrb[0].mxu0 %v4280
      %v4506 = vpop.f32.mrb[0].mxu0
      %v4507 = vadd.f32 0.0, %v4506
      %v4508 = vpop.f32.mrb[0].mxu0
      %4509 = vdwg.mxu0
      %4510 = vmatprep.subr.mxu0 0.0
      %4511 = vmatpush1.msra.mxu0 %v4352
      %4512 = vmatprep.subr.mxu0 0.0
      %4513 = vmatpush1.msra.mxu0 %v4357
      %4514 = vmatprep.subr.mxu0 0.0
      %4515 = vmatpush1.msra.mxu0 %v4362
      %4516 = vmatprep.subr.mxu0 0.0
      %4517 = vmatpush1.msra.mxu0 %v4367
      %4518 = vmatprep.subr.mxu0 0.0
      %4519 = vmatpush1.msra.mxu0 %v4372
      %4520 = vmatprep.subr.mxu0 0.0
      %4521 = vmatpush1.msra.mxu0 %v4377
      %4522 = vmatprep.subr.mxu0 0.0
      %4523 = vmatpush1.msra.mxu0 %v4382
      %4524 = vmatprep.subr.mxu0 0.0
      %4525 = vmatpush1.msra.mxu0 %v4387
      %4526 = vmatprep.subr.mxu0 0.0
      %4527 = vmatpush1.msra.mxu0 %v4392
      %4528 = vmatprep.subr.mxu0 0.0
      %4529 = vmatpush1.msra.mxu0 %v4397
      %4530 = vmatprep.subr.mxu0 0.0
      %4531 = vmatpush1.msra.mxu0 %v4402
      %4532 = vmatprep.subr.mxu0 0.0
      %4533 = vmatpush1.msra.mxu0 %v4407
      %4534 = vmatprep.subr.mxu0 0.0
      %4535 = vmatpush1.msra.mxu0 %v4412
      %4536 = vmatprep.subr.mxu0 0.0
      %4537 = vmatpush1.msra.mxu0 %v4417
      %4538 = vmatprep.subr.mxu0 0.0
      %4539 = vmatpush1.msra.mxu0 %v4422
      %4540 = vmatprep.subr.mxu0 0.0
      %4541 = vmatpush1.msra.mxu0 %v4427
      %4542 = vmatprep.subr.mxu0 0.0
      %4543 = vmatpush1.msra.mxu0 %v4432
      %4544 = vmatprep.subr.mxu0 0.0
      %4545 = vmatpush1.msra.mxu0 %v4437
      %4546 = vmatprep.subr.mxu0 0.0
      %4547 = vmatpush1.msra.mxu0 %v4442
      %4548 = vmatprep.subr.mxu0 0.0
      %4549 = vmatpush1.msra.mxu0 %v4447
      %4550 = vmatprep.subr.mxu0 0.0
      %4551 = vmatpush1.msra.mxu0 %v4452
      %4552 = vmatprep.subr.mxu0 0.0
      %4553 = vmatpush1.msra.mxu0 %v4457
      %4554 = vmatprep.subr.mxu0 0.0
      %4555 = vmatpush1.msra.mxu0 %v4462
      %4556 = vmatprep.subr.mxu0 0.0
      %4557 = vmatpush1.msra.mxu0 %v4467
      %4558 = vmatprep.subr.mxu0 0.0
      %4559 = vmatpush1.msra.mxu0 %v4472
      %4560 = vmatprep.subr.mxu0 0.0
      %4561 = vmatpush1.msra.mxu0 %v4477
      %4562 = vmatprep.subr.mxu0 0.0
      %4563 = vmatpush1.msra.mxu0 %v4482
      %4564 = vmatprep.subr.mxu0 0.0
      %4565 = vmatpush1.msra.mxu0 %v4487
      %4566 = vmatprep.subr.mxu0 0.0
      %4567 = vmatpush1.msra.mxu0 %v4492
      %4568 = vmatprep.subr.mxu0 0.0
      %4569 = vmatpush1.msra.mxu0 %v4497
      %4570 = vmatprep.subr.mxu0 0.0
      %4571 = vmatpush1.msra.mxu0 %v4502
      %4572 = vmatprep.subr.mxu0 0.0
      %4573 = vmatpush1.msra.mxu0 %v4507
      %4574 = vmatprep.mubr.f32.mxu0 1.0
      %4575 = vmatmul.mubr.f32.gmra.mrb[0].mxu0 1.0
      %v4576 = vpop.f32.mrb[0].mxu0
      %v4577 = vadd.f32 0.0, %v4576
      %v4578 = vpop.f32.mrb[0].mxu0
      %4579 = vdwg.mxu0
      %v4580 = vmul.f32 %v4352, %v4352
      %v4581 = vmul.f32 %v4357, %v4357
      %v4582 = vmul.f32 %v4362, %v4362
      %v4583 = vmul.f32 %v4367, %v4367
      %v4584 = vmul.f32 %v4372, %v4372
      %v4585 = vmul.f32 %v4377, %v4377
      %v4586 = vmul.f32 %v4382, %v4382
      %v4587 = vmul.f32 %v4387, %v4387
      %v4588 = vmul.f32 %v4392, %v4392
      %v4589 = vmul.f32 %v4397, %v4397
      %v4590 = vmul.f32 %v4402, %v4402
      %v4591 = vmul.f32 %v4407, %v4407
      %v4592 = vmul.f32 %v4412, %v4412
      %v4593 = vmul.f32 %v4417, %v4417
      %v4594 = vmul.f32 %v4422, %v4422
      %v4595 = vmul.f32 %v4427, %v4427
      %v4596 = vmul.f32 %v4432, %v4432
      %v4597 = vmul.f32 %v4437, %v4437
      %v4598 = vmul.f32 %v4442, %v4442
      %v4599 = vmul.f32 %v4447, %v4447
      %v4600 = vmul.f32 %v4452, %v4452
      %v4601 = vmul.f32 %v4457, %v4457
      %v4602 = vmul.f32 %v4462, %v4462
      %v4603 = vmul.f32 %v4467, %v4467
      %v4604 = vmul.f32 %v4472, %v4472
      %v4605 = vmul.f32 %v4477, %v4477
      %v4606 = vmul.f32 %v4482, %v4482
      %v4607 = vmul.f32 %v4487, %v4487
      %v4608 = vmul.f32 %v4492, %v4492
      %v4609 = vmul.f32 %v4497, %v4497
      %v4610 = vmul.f32 %v4502, %v4502
      %v4611 = vmul.f32 %v4507, %v4507
      %4612 = vmatprep.subr.mxu0 0.0
      %4613 = vmatpush1.msra.mxu0 %v4580
      %4614 = vmatprep.subr.mxu0 0.0
      %4615 = vmatpush1.msra.mxu0 %v4581
      %4616 = vmatprep.subr.mxu0 0.0
      %4617 = vmatpush1.msra.mxu0 %v4582
      %4618 = vmatprep.subr.mxu0 0.0
      %4619 = vmatpush1.msra.mxu0 %v4583
      %4620 = vmatprep.subr.mxu0 0.0
      %4621 = vmatpush1.msra.mxu0 %v4584
      %4622 = vmatprep.subr.mxu0 0.0
      %4623 = vmatpush1.msra.mxu0 %v4585
      %4624 = vmatprep.subr.mxu0 0.0
      %4625 = vmatpush1.msra.mxu0 %v4586
      %4626 = vmatprep.subr.mxu0 0.0
      %4627 = vmatpush1.msra.mxu0 %v4587
      %4628 = vmatprep.subr.mxu0 0.0
      %4629 = vmatpush1.msra.mxu0 %v4588
      %4630 = vmatprep.subr.mxu0 0.0
      %4631 = vmatpush1.msra.mxu0 %v4589
      %4632 = vmatprep.subr.mxu0 0.0
      %4633 = vmatpush1.msra.mxu0 %v4590
      %4634 = vmatprep.subr.mxu0 0.0
      %4635 = vmatpush1.msra.mxu0 %v4591
      %4636 = vmatprep.subr.mxu0 0.0
      %4637 = vmatpush1.msra.mxu0 %v4592
      %4638 = vmatprep.subr.mxu0 0.0
      %4639 = vmatpush1.msra.mxu0 %v4593
      %4640 = vmatprep.subr.mxu0 0.0
      %4641 = vmatpush1.msra.mxu0 %v4594
      %4642 = vmatprep.subr.mxu0 0.0
      %4643 = vmatpush1.msra.mxu0 %v4595
      %4644 = vmatprep.subr.mxu0 0.0
      %4645 = vmatpush1.msra.mxu0 %v4596
      %4646 = vmatprep.subr.mxu0 0.0
      %4647 = vmatpush1.msra.mxu0 %v4597
      %4648 = vmatprep.subr.mxu0 0.0
      %4649 = vmatpush1.msra.mxu0 %v4598
      %4650 = vmatprep.subr.mxu0 0.0
      %4651 = vmatpush1.msra.mxu0 %v4599
      %4652 = vmatprep.subr.mxu0 0.0
      %4653 = vmatpush1.msra.mxu0 %v4600
      %4654 = vmatprep.subr.mxu0 0.0
      %4655 = vmatpush1.msra.mxu0 %v4601
      %4656 = vmatprep.subr.mxu0 0.0
      %4657 = vmatpush1.msra.mxu0 %v4602
      %4658 = vmatprep.subr.mxu0 0.0
      %4659 = vmatpush1.msra.mxu0 %v4603
      %4660 = vmatprep.subr.mxu0 0.0
      %4661 = vmatpush1.msra.mxu0 %v4604
      %4662 = vmatprep.subr.mxu0 0.0
      %4663 = vmatpush1.msra.mxu0 %v4605
      %4664 = vmatprep.subr.mxu0 0.0
      %4665 = vmatpush1.msra.mxu0 %v4606
      %4666 = vmatprep.subr.mxu0 0.0
      %4667 = vmatpush1.msra.mxu0 %v4607
      %4668 = vmatprep.subr.mxu0 0.0
      %4669 = vmatpush1.msra.mxu0 %v4608
      %4670 = vmatprep.subr.mxu0 0.0
      %4671 = vmatpush1.msra.mxu0 %v4609
      %4672 = vmatprep.subr.mxu0 0.0
      %4673 = vmatpush1.msra.mxu0 %v4610
      %4674 = vmatprep.subr.mxu0 0.0
      %4675 = vmatpush1.msra.mxu0 %v4611
      %4676 = vmatprep.mubr.f32.mxu0 1.0
      %4677 = vmatmul.mubr.f32.gmra.mrb[0].mxu0 1.0
      %v4678 = vpop.f32.mrb[0].mxu0
      %v4679 = vadd.f32 0.0, %v4678
      %v4680 = vpop.f32.mrb[0].mxu0
      %4681 = vdwg.mxu0
      %v4682 = vmul.f32 %v4577, 0.00390625
      %v4683 = vmul.f32 %v4679, 0.00390625
      %v4684 = vmul.f32 %v4682, %v4682
      %v4685 = vsub.f32 %v4683, %v4684
      %v4686 = vmax.f32 %v4685, 0.0
      %v4687 = vlaneseq
      %v4688 = vshrl.u32 %v4687, 7
      %v4689 = vsub.s32 0, %v4688
      %v4690 = vrot.slane %v4682, %v4689
      %v4691 = vsub.f32 %v4352, %v4690
      %v4692 = vsub.f32 %v4357, %v4690
      %v4693 = vsub.f32 %v4362, %v4690
      %v4694 = vsub.f32 %v4367, %v4690
      %v4695 = vsub.f32 %v4372, %v4690
      %v4696 = vsub.f32 %v4377, %v4690
      %v4697 = vsub.f32 %v4382, %v4690
      %v4698 = vsub.f32 %v4387, %v4690
      %v4699 = vsub.f32 %v4392, %v4690
      %v4700 = vsub.f32 %v4397, %v4690
      %v4701 = vsub.f32 %v4402, %v4690
      %v4702 = vsub.f32 %v4407, %v4690
      %v4703 = vsub.f32 %v4412, %v4690
      %v4704 = vsub.f32 %v4417, %v4690
      %v4705 = vsub.f32 %v4422, %v4690
      %v4706 = vsub.f32 %v4427, %v4690
      %v4707 = vsub.f32 %v4432, %v4690
      %v4708 = vsub.f32 %v4437, %v4690
      %v4709 = vsub.f32 %v4442, %v4690
      %v4710 = vsub.f32 %v4447, %v4690
      %v4711 = vsub.f32 %v4452, %v4690
      %v4712 = vsub.f32 %v4457, %v4690
      %v4713 = vsub.f32 %v4462, %v4690
      %v4714 = vsub.f32 %v4467, %v4690
      %v4715 = vsub.f32 %v4472, %v4690
      %v4716 = vsub.f32 %v4477, %v4690
      %v4717 = vsub.f32 %v4482, %v4690
      %v4718 = vsub.f32 %v4487, %v4690
      %v4719 = vsub.f32 %v4492, %v4690
      %v4720 = vsub.f32 %v4497, %v4690
      %v4721 = vsub.f32 %v4502, %v4690
      %v4722 = vsub.f32 %v4507, %v4690
      %v4723 = vadd.f32 %v4686, 1e-05
      %v4724 = vrsqrt.pop %v4723
      %v4725 = vlaneseq
      %v4726 = vshrl.u32 %v4725, 7
      %v4727 = vsub.s32 0, %v4726
      %v4728 = vrot.slane %v4724, %v4727
      %v4729 = vmul.f32 %v4691, %v4728
      %v4730 = vmul.f32 %v4692, %v4728
      %v4731 = vmul.f32 %v4693, %v4728
      %v4732 = vmul.f32 %v4694, %v4728
      %v4733 = vmul.f32 %v4695, %v4728
      %v4734 = vmul.f32 %v4696, %v4728
      %v4735 = vmul.f32 %v4697, %v4728
      %v4736 = vmul.f32 %v4698, %v4728
      %v4737 = vmul.f32 %v4699, %v4728
      %v4738 = vmul.f32 %v4700, %v4728
      %v4739 = vmul.f32 %v4701, %v4728
      %v4740 = vmul.f32 %v4702, %v4728
      %v4741 = vmul.f32 %v4703, %v4728
      %v4742 = vmul.f32 %v4704, %v4728
      %v4743 = vmul.f32 %v4705, %v4728
      %v4744 = vmul.f32 %v4706, %v4728
      %v4745 = vmul.f32 %v4707, %v4728
      %v4746 = vmul.f32 %v4708, %v4728
      %v4747 = vmul.f32 %v4709, %v4728
      %v4748 = vmul.f32 %v4710, %v4728
      %v4749 = vmul.f32 %v4711, %v4728
      %v4750 = vmul.f32 %v4712, %v4728
      %v4751 = vmul.f32 %v4713, %v4728
      %v4752 = vmul.f32 %v4714, %v4728
      %v4753 = vmul.f32 %v4715, %v4728
      %v4754 = vmul.f32 %v4716, %v4728
      %v4755 = vmul.f32 %v4717, %v4728
      %v4756 = vmul.f32 %v4718, %v4728
      %v4757 = vmul.f32 %v4719, %v4728
      %v4758 = vmul.f32 %v4720, %v4728
      %v4759 = vmul.f32 %v4721, %v4728
      %v4760 = vmul.f32 %v4722, %v4728
      %v4761 = vadd.f32 %v171, %v4729
      %v4762 = vadd.f32 %v172, %v4730
      %v4763 = vadd.f32 %v173, %v4731
      %v4764 = vadd.f32 %v174, %v4732
      %v4765 = vadd.f32 %v175, %v4733
      %v4766 = vadd.f32 %v176, %v4734
      %v4767 = vadd.f32 %v177, %v4735
      %v4768 = vadd.f32 %v178, %v4736
      %v4769 = vadd.f32 %v179, %v4737
      %v4770 = vadd.f32 %v180, %v4738
      %v4771 = vadd.f32 %v181, %v4739
      %v4772 = vadd.f32 %v182, %v4740
      %v4773 = vadd.f32 %v183, %v4741
      %v4774 = vadd.f32 %v184, %v4742
      %v4775 = vadd.f32 %v185, %v4743
      %v4776 = vadd.f32 %v186, %v4744
      %v4777 = vadd.f32 %v187, %v4745
      %v4778 = vadd.f32 %v188, %v4746
      %v4779 = vadd.f32 %v189, %v4747
      %v4780 = vadd.f32 %v190, %v4748
      %v4781 = vadd.f32 %v191, %v4749
      %v4782 = vadd.f32 %v192, %v4750
      %v4783 = vadd.f32 %v193, %v4751
      %v4784 = vadd.f32 %v194, %v4752
      %v4785 = vadd.f32 %v195, %v4753
      %v4786 = vadd.f32 %v196, %v4754
      %v4787 = vadd.f32 %v197, %v4755
      %v4788 = vadd.f32 %v198, %v4756
      %v4789 = vadd.f32 %v199, %v4757
      %v4790 = vadd.f32 %v200, %v4758
      %v4791 = vadd.f32 %v201, %v4759
      %v4792 = vadd.f32 %v202, %v4760
      %4793 = vst.msk [vmem:[%s170] sm:$0xff] %vm204, %v4761
      %4794 = vst.msk [vmem:[%s170 + $0x8] sm:$0xff] %vm204, %v4762
      %4795 = vst.msk [vmem:[%s170 + $0x10] sm:$0xff] %vm204, %v4763
      %4796 = vst.msk [vmem:[%s170 + $0x18] sm:$0xff] %vm204, %v4764
      %4797 = vst.msk [vmem:[%s170 + $0x20] sm:$0xff] %vm204, %v4765
      %4798 = vst.msk [vmem:[%s170 + $0x28] sm:$0xff] %vm204, %v4766
      %4799 = vst.msk [vmem:[%s170 + $0x30] sm:$0xff] %vm204, %v4767
      %4800 = vst.msk [vmem:[%s170 + $0x38] sm:$0xff] %vm204, %v4768
      %4801 = vst.msk [vmem:[%s170 + $0x40] sm:$0xff] %vm204, %v4769
      %4802 = vst.msk [vmem:[%s170 + $0x48] sm:$0xff] %vm204, %v4770
      %4803 = vst.msk [vmem:[%s170 + $0x50] sm:$0xff] %vm204, %v4771
      %4804 = vst.msk [vmem:[%s170 + $0x58] sm:$0xff] %vm204, %v4772
      %4805 = vst.msk [vmem:[%s170 + $0x60] sm:$0xff] %vm204, %v4773
      %4806 = vst.msk [vmem:[%s170 + $0x68] sm:$0xff] %vm204, %v4774
      %4807 = vst.msk [vmem:[%s170 + $0x70] sm:$0xff] %vm204, %v4775
      %4808 = vst.msk [vmem:[%s170 + $0x78] sm:$0xff] %vm204, %v4776
      %4809 = vst.msk [vmem:[%s170 + $0x80] sm:$0xff] %vm204, %v4777
      %4810 = vst.msk [vmem:[%s170 + $0x88] sm:$0xff] %vm204, %v4778
      %4811 = vst.msk [vmem:[%s170 + $0x90] sm:$0xff] %vm204, %v4779
      %4812 = vst.msk [vmem:[%s170 + $0x98] sm:$0xff] %vm204, %v4780
      %4813 = vst.msk [vmem:[%s170 + $0xa0] sm:$0xff] %vm204, %v4781
      %4814 = vst.msk [vmem:[%s170 + $0xa8] sm:$0xff] %vm204, %v4782
      %4815 = vst.msk [vmem:[%s170 + $0xb0] sm:$0xff] %vm204, %v4783
      %4816 = vst.msk [vmem:[%s170 + $0xb8] sm:$0xff] %vm204, %v4784
      %4817 = vst.msk [vmem:[%s170 + $0xc0] sm:$0xff] %vm204, %v4785
      %4818 = vst.msk [vmem:[%s170 + $0xc8] sm:$0xff] %vm204, %v4786
      %4819 = vst.msk [vmem:[%s170 + $0xd0] sm:$0xff] %vm204, %v4787
      %4820 = vst.msk [vmem:[%s170 + $0xd8] sm:$0xff] %vm204, %v4788
      %4821 = vst.msk [vmem:[%s170 + $0xe0] sm:$0xff] %vm204, %v4789
      %4822 = vst.msk [vmem:[%s170 + $0xe8] sm:$0xff] %vm204, %v4790
      %4823 = vst.msk [vmem:[%s170 + $0xf0] sm:$0xff] %vm204, %v4791
      %4824 = vst.msk [vmem:[%s170 + $0xf8] sm:$0xff] %vm204, %v4792
      %p4825 = scmp.lt.s32.totalorder %s14, 1
      %s4826 = scalar_select %p4825, %s14, 1
      %s4827 = smul.addr %s4826, 32
      %s4828 = smul.addr %s4827, 8
      %s4829 = scalar_lea.vmem %s3, %s4828
      // Predicated region
      $region33: #{_fwd_exact.1} parent=31 // pred_check
        %p4830 = pneg %p100
      $region34: #{_fwd_exact.1} parent=31 // pred_check_branch
        %4832 = sbr.rel (%p4830) target = $region36
      $region35: #{_fwd_exact.1} parent=31 // pred_region
        _
      $region36: #{_fwd_exact.1} parent=31 // pred_fallthru
        _
    $region32: #{_fwd_exact.1} parent=5 // pred_fallthru
      _
    %p4833 = scmp.le.s32.totalorder 2, %s9
    // Predicated region
    $region37: #{_fwd_exact.1} parent=5 // pred_check
      %p4834 = pneg %p4833
    $region38: #{_fwd_exact.1} parent=5 // pred_check_branch
      %4836 = sbr.rel (%p4834) target = $region40
    $region39: #{_fwd_exact.1} parent=5 // pred_region
      %s4837 = ssub.s32 %s9, 2
      // Predicated region
      $region41: #{_fwd_exact.1} parent=39 // pred_check
        %p4838 = pneg %p106
      $region42: #{_fwd_exact.1} parent=39 // pred_check_branch
        %4840 = sbr.rel (%p4838) target = $region44
      $region43: #{_fwd_exact.1} parent=39 // pred_region
        %p4841 = scmp.lt.s32.totalorder %s15, 1
        %s4842 = scalar_select %p4841, %s15, 1
        %s4843 = smul.addr %s4842, 32
        %s4844 = smul.addr %s4843, 8
        %s4845 = scalar_lea.vmem %s3, %s4844
      $region44: #{_fwd_exact.1} parent=39 // pred_fallthru
        _
    $region40: #{_fwd_exact.1} parent=5 // pred_fallthru
      _
  $region6: #{_fwd_exact.1} parent=0 // loop_footer
    %s13 = sadd.s32 1, %s9
  $region7: #{_fwd_exact.1} parent=0 // loop_footer_branch
    %8 = sbr.rel target = $region3
  $region8: #{_fwd_exact.1} parent=0 // loop_exit
    _

</llo_original>
